<compile_context>
chip_gen: v7x
topology: tpu7x:2x2x1
jax: 0.10.0
libtpu: 0.0.40
codegen_flags: <defaults>
</compile_context>

<pallas_src>
import jax
import jax.numpy as jnp
from jax.experimental import pallas as pl
from jax.experimental.pallas import tpu as pltpu


# ----------------------------------------------------------------------------
# Fused kernel: one grid step == TB batch elements, all layers stay in VMEM.
# ----------------------------------------------------------------------------

def _encoder_kernel(x_ref,
                    w1_ref, b1_ref, bm1_ref, p1_ref,
                    w2_ref, b2_ref, bm2_ref, p2_ref,
                    w3_ref, b3_ref, bm3_ref, p3_ref,
                    fcw_ref, fcb_ref, pm_ref, ss_ref,
                    o_ref):
    f32 = jnp.float32

    def conv_relu_pool(x, w_ref, b_ref, bm_ref, pool_ref):
        # x: (R, Cin) channel-last, batch folded into rows (R = TB * L_cur).
        # w_ref: (3, Cin, Cout) taps.  bm_ref: (2, R, 1) border-valid masks.
        # pool_ref: (R//2, R) precomputed 0/1 even-row selection.
        R = x.shape[0]
        xw0 = jnp.dot(x, w_ref[0], preferred_element_type=f32)   # tap -1
        xw1 = jnp.dot(x, w_ref[1], preferred_element_type=f32)   # tap  0
        xw2 = jnp.dot(x, w_ref[2], preferred_element_type=f32)   # tap +1
        # padding=1 via XLU rolls + VPU masks that zero the sample seams.
        ml = bm_ref[0]                                            # (R, 1)
        mr = bm_ref[1]                                            # (R, 1)
        y = (xw1
             + ml * pltpu.roll(xw0, shift=1, axis=0)
             + mr * pltpu.roll(xw2, shift=R - 1, axis=0))
        a = jnp.maximum(y + b_ref[...], 0.0)                      # bias + ReLU
        # MaxPool1d(2,2): max with next row (VPU+XLU), then keep even rows.
        m = jnp.maximum(a, pltpu.roll(a, shift=R - 1, axis=0))
        return jnp.dot(pool_ref[...], m, preferred_element_type=f32)

    h = x_ref[...].astype(f32)                                    # (TB*L, Cin)
    h = conv_relu_pool(h, w1_ref, b1_ref, bm1_ref, p1_ref)        # (TB*L/2, 16)
    h = conv_relu_pool(h, w2_ref, b2_ref, bm2_ref, p2_ref)        # (TB*L/4, 32)
    h = conv_relu_pool(h, w3_ref, b3_ref, bm3_ref, p3_ref)        # (TB*L8, 64)

    # Linear over the NCL flatten.  fcw packed as (L8, 64, H):
    #   q[r, :] = h[r, :] @ fcw[r % L8]          (dense matmuls + VPU mask)
    #   out[s,:] = sum over that sample's rows   (one 0/1 summation matmul)
    L8 = fcw_ref.shape[0]
    q = pm_ref[0] * jnp.dot(h, fcw_ref[0], preferred_element_type=f32)
    for l in range(1, L8):
        q = q + pm_ref[l] * jnp.dot(h, fcw_ref[l], preferred_element_type=f32)
    out = jnp.dot(ss_ref[...], q, preferred_element_type=f32) + fcb_ref[...]
    o_ref[...] = jnp.maximum(out, 0.0).astype(o_ref.dtype)


# ----------------------------------------------------------------------------
# Wrapper: one pallas_call, grid over blocks of TB batch elements
# ----------------------------------------------------------------------------

def encoder_apply(packed, x_ncl):
    """x_ncl: (N, Cin, L) as in PyTorch.  Returns (N, hidden)."""
    N, Cin, L = x_ncl.shape
    assert L % 8 == 0, "input_length must be divisible by 8"
    H = packed["fc_b"].shape[-1]
    L8 = L // 8
    f32 = jnp.float32

    # Tiling: fold TB samples per grid step (target ~256 matmul rows), TB a
    # multiple of 8 so every folded row count is a multiple of 8; grid >= 2 so
    # both v7x TensorCores get work.  Batch is zero-padded to steps * TB.
    TB = max(8, (256 // L) // 8 * 8)
    TB = min(TB, max(8, -(-N // 8) * 8))
    steps = max(2, -(-N // TB))
    N_pad = steps * TB

    R1, R2, R3, R4 = TB * L, TB * L // 2, TB * L // 4, TB * L8

    # Channel-last, batch-folded input (module-boundary transpose/reshape).
    x_nlc = jnp.transpose(x_ncl, (0, 2, 1)).astype(f32)
    if N_pad > N:
        x_nlc = jnp.pad(x_nlc, ((0, N_pad - N), (0, 0), (0, 0)))
    x_flat = x_nlc.reshape(N_pad * L, Cin)

    # Grid-invariant 0/1 constants, built ONCE here (not per grid step).
    def border_mask(R, Lc):
        pos = jnp.arange(R, dtype=jnp.int32) % Lc
        left = (pos != 0).astype(f32)        # invalid for the tap at offset -1
        right = (pos != Lc - 1).astype(f32)  # invalid for the tap at offset +1
        return jnp.stack([left, right], axis=0)[:, :, None]        # (2, R, 1)

    def even_select(R):
        r = jnp.arange(R // 2, dtype=jnp.int32)[:, None]
        c = jnp.arange(R, dtype=jnp.int32)[None, :]
        return (c == 2 * r).astype(f32)                            # (R//2, R)

    bm1 = border_mask(R1, L)
    bm2 = border_mask(R2, L // 2)
    bm3 = border_mask(R3, L // 4)
    p1, p2, p3 = even_select(R1), even_select(R2), even_select(R3)

    pos4 = jnp.arange(R4, dtype=jnp.int32)
    pm = (pos4[None, :] % L8 ==
          jnp.arange(L8, dtype=jnp.int32)[:, None]).astype(f32)[:, :, None]   # (L8, R4, 1)
    ss = (pos4[None, :] // L8 ==
          jnp.arange(TB, dtype=jnp.int32)[:, None]).astype(f32)               # (TB, R4)

    def whole(a):
        nd = a.ndim
        return pl.BlockSpec(a.shape, lambda n, _nd=nd: (0,) * _nd)

    out = pl.pallas_call(
        _encoder_kernel,
        out_shape=jax.ShapeDtypeStruct((N_pad, H), jnp.float32),
        grid_spec=pltpu.PrefetchScalarGridSpec(
            num_scalar_prefetch=0,
            grid=(steps,),
            in_specs=[
                pl.BlockSpec((TB * L, Cin), lambda n: (n, 0)),
                whole(packed["w1"]), whole(packed["b1"]), whole(bm1), whole(p1),
                whole(packed["w2"]), whole(packed["b2"]), whole(bm2), whole(p2),
                whole(packed["w3"]), whole(packed["b3"]), whole(bm3), whole(p3),
                whole(packed["fc_w"]), whole(packed["fc_b"]), whole(pm), whole(ss),
            ],
            out_specs=pl.BlockSpec((TB, H), lambda n: (n, 0)),
        ),
        compiler_params=pltpu.CompilerParams(
            dimension_semantics=("parallel",),
            vmem_limit_bytes=32 * 1024 * 1024,
        ),
    )(x_flat,
      packed["w1"], packed["b1"], bm1, p1,
      packed["w2"], packed["b2"], bm2, p2,
      packed["w3"], packed["b3"], bm3, p3,
      packed["fc_w"], packed["fc_b"], pm, ss)

    return out[:N]


# ----------------------------------------------------------------------------
# Parameters: PyTorch-layout init + one-time packing into kernel layouts
# ----------------------------------------------------------------------------

def _uniform(key, shape, bound):
    return jax.random.uniform(key, shape, jnp.float32, -bound, bound)


def init_encoder_params(key, input_channels, input_length, hidden_size):
    """PyTorch-layout params: Conv1d (Cout, Cin, k), Linear (out, in)."""
    L8 = input_length // 8
    ks = jax.random.split(key, 8)

    def conv(kw, kb, cout, cin, k):
        bound = 1.0 / (cin * k) ** 0.5
        return _uniform(kw, (cout, cin, k), bound), _uniform(kb, (cout,), bound)

    p = {}
    p["conv1_w"], p["conv1_b"] = conv(ks[0], ks[1], 16, input_channels, 3)
    p["conv2_w"], p["conv2_b"] = conv(ks[2], ks[3], 32, 16, 3)
    p["conv3_w"], p["conv3_b"] = conv(ks[4], ks[5], 64, 32, 3)
    fan_in = 64 * L8
    bound = 1.0 / fan_in ** 0.5
    p["fc_w"] = _uniform(ks[6], (hidden_size, fan_in), bound)      # (out, in)
    p["fc_b"] = _uniform(ks[7], (hidden_size,), bound)
    return p


def pack_encoder_params(p, input_length, hidden_size):
    """One-time packing so the traced forward contains no weight reshuffles."""
    L8 = input_length // 8

    def pack_conv(w, b):
        # (Cout, Cin, k) -> taps (k, Cin, Cout); bias -> (1, Cout) lane vector
        return jnp.transpose(w, (2, 1, 0)), b.reshape(1, -1)

    packed = {}
    packed["w1"], packed["b1"] = pack_conv(p["conv1_w"], p["conv1_b"])
    packed["w2"], packed["b2"] = pack_conv(p["conv2_w"], p["conv2_b"])
    packed["w3"], packed["b3"] = pack_conv(p["conv3_w"], p["conv3_b"])
    # Linear: PyTorch does flat @ W.T with flat index = c * L8 + l (NCL flatten).
    w = jnp.transpose(p["fc_w"])                    # (64*L8, H), row = c*L8 + l
    w = w.reshape(64, L8, hidden_size)              # (c, l, H)
    packed["fc_w"] = jnp.transpose(w, (1, 0, 2))    # (l, c, H) == (L8, 64, H)
    packed["fc_b"] = p["fc_b"].reshape(1, hidden_size)
    return packed


# ----------------------------------------------------------------------------
# Pure-JAX reference (mirrors the PyTorch module) for a correctness check
# ----------------------------------------------------------------------------

def encoder_reference(p, x):
    hi = jax.lax.Precision.HIGHEST

    def conv1d(x, w, b):
        y = jax.lax.conv_general_dilated(
            x, w, window_strides=(1,), padding=((1, 1),),
            dimension_numbers=("NCH", "OIH", "NCH"), precision=hi)
        return y + b[None, :, None]

    def pool(x):
        N, C, L = x.shape
        return jnp.max(x.reshape(N, C, L // 2, 2), axis=-1)

    h = pool(jax.nn.relu(conv1d(x, p["conv1_w"], p["conv1_b"])))
    h = pool(jax.nn.relu(conv1d(h, p["conv2_w"], p["conv2_b"])))
    h = pool(jax.nn.relu(conv1d(h, p["conv3_w"], p["conv3_b"])))
    h = h.reshape(x.shape[0], -1)
    return jax.nn.relu(jnp.dot(h, p["fc_w"].T, precision=hi) + p["fc_b"])


# ----------------------------------------------------------------------------
# Main
# ----------------------------------------------------------------------------

if __name__ == "__main__":
    batch = 2
    input_channels = 4
    input_length = 16          # must be divisible by 8
    hidden_size = 32

    root = jax.random.PRNGKey(0)
    k_param, k_x = jax.random.split(root)

    params = init_encoder_params(k_param, input_channels, input_length, hidden_size)
    packed = pack_encoder_params(params, input_length, hidden_size)
    x = jax.random.normal(k_x, (batch, input_channels, input_length), jnp.float32)

    fwd = jax.jit(encoder_apply)
    out = fwd(packed, x)
    jax.block_until_ready(out)

    assert out.shape == (batch, hidden_size)
    assert bool(jnp.all(jnp.isfinite(out)))

    ref = encoder_reference(params, x)
    max_err = float(jnp.max(jnp.abs(out - ref)))
    assert max_err < 1e-3, f"mismatch vs reference: max abs err {max_err}"

    print("KERNEL_OK")
</pallas_src>

<mosaic_0001>
module attributes {stable_mosaic.version = 11 : i64} {
  func.func @_encoder_kernel(%arg0: i32, %arg1: memref<128x4xf32, #tpu.memory_space<vmem>>, %arg2: memref<3x4x16xf32, #tpu.memory_space<vmem>>, %arg3: memref<1x16xf32, #tpu.memory_space<vmem>>, %arg4: memref<2x128x1xf32, #tpu.memory_space<vmem>>, %arg5: memref<64x128xf32, #tpu.memory_space<vmem>>, %arg6: memref<3x16x32xf32, #tpu.memory_space<vmem>>, %arg7: memref<1x32xf32, #tpu.memory_space<vmem>>, %arg8: memref<2x64x1xf32, #tpu.memory_space<vmem>>, %arg9: memref<32x64xf32, #tpu.memory_space<vmem>>, %arg10: memref<3x32x64xf32, #tpu.memory_space<vmem>>, %arg11: memref<1x64xf32, #tpu.memory_space<vmem>>, %arg12: memref<2x32x1xf32, #tpu.memory_space<vmem>>, %arg13: memref<16x32xf32, #tpu.memory_space<vmem>>, %arg14: memref<2x64x32xf32, #tpu.memory_space<vmem>>, %arg15: memref<1x32xf32, #tpu.memory_space<vmem>>, %arg16: memref<2x16x1xf32, #tpu.memory_space<vmem>>, %arg17: memref<8x16xf32, #tpu.memory_space<vmem>>, %arg18: memref<8x32xf32, #tpu.memory_space<vmem>>) attributes {dimension_semantics = [#tpu.dimension_semantics<parallel>], iteration_bounds = array<i64: 2>, scalar_prefetch = 0 : i64, scratch_operands = 0 : i64, tpu.core_type = #tpu.core_type<tc>, window_params = [{transform_indices = @transform_0, window_bounds = array<i64: 128, 4>}, {pipeline_mode = #tpu.pipeline_mode<synchronous>, transform_indices = @transform_1, window_bounds = array<i64: 3, 4, 16>}, {pipeline_mode = #tpu.pipeline_mode<synchronous>, transform_indices = @transform_2, window_bounds = array<i64: 1, 16>}, {pipeline_mode = #tpu.pipeline_mode<synchronous>, transform_indices = @transform_3, window_bounds = array<i64: 2, 128, 1>}, {pipeline_mode = #tpu.pipeline_mode<synchronous>, transform_indices = @transform_4, window_bounds = array<i64: 64, 128>}, {pipeline_mode = #tpu.pipeline_mode<synchronous>, transform_indices = @transform_5, window_bounds = array<i64: 3, 16, 32>}, {pipeline_mode = #tpu.pipeline_mode<synchronous>, transform_indices = @transform_6, window_bounds = array<i64: 1, 32>}, {pipeline_mode = #tpu.pipeline_mode<synchronous>, transform_indices = @transform_7, window_bounds = array<i64: 2, 64, 1>}, {pipeline_mode = #tpu.pipeline_mode<synchronous>, transform_indices = @transform_8, window_bounds = array<i64: 32, 64>}, {pipeline_mode = #tpu.pipeline_mode<synchronous>, transform_indices = @transform_9, window_bounds = array<i64: 3, 32, 64>}, {pipeline_mode = #tpu.pipeline_mode<synchronous>, transform_indices = @transform_10, window_bounds = array<i64: 1, 64>}, {pipeline_mode = #tpu.pipeline_mode<synchronous>, transform_indices = @transform_11, window_bounds = array<i64: 2, 32, 1>}, {pipeline_mode = #tpu.pipeline_mode<synchronous>, transform_indices = @transform_12, window_bounds = array<i64: 16, 32>}, {pipeline_mode = #tpu.pipeline_mode<synchronous>, transform_indices = @transform_13, window_bounds = array<i64: 2, 64, 32>}, {pipeline_mode = #tpu.pipeline_mode<synchronous>, transform_indices = @transform_14, window_bounds = array<i64: 1, 32>}, {pipeline_mode = #tpu.pipeline_mode<synchronous>, transform_indices = @transform_15, window_bounds = array<i64: 2, 16, 1>}, {pipeline_mode = #tpu.pipeline_mode<synchronous>, transform_indices = @transform_16, window_bounds = array<i64: 8, 16>}, {transform_indices = @transform_17, window_bounds = array<i64: 8, 32>}]} {
    %c0 = arith.constant 0 : index
    %c0_0 = arith.constant 0 : index
    %0 = vector.load %arg1[%c0, %c0_0] : memref<128x4xf32, #tpu.memory_space<vmem>>, vector<128x4xf32>
    %c0_1 = arith.constant 0 : index
    %c0_2 = arith.constant 0 : index
    %c0_3 = arith.constant 0 : index
    %1 = vector.load %arg2[%c0_1, %c0_2, %c0_3] : memref<3x4x16xf32, #tpu.memory_space<vmem>>, vector<1x4x16xf32>
    %2 = vector.shape_cast %1 : vector<1x4x16xf32> to vector<4x16xf32>
    %cst = arith.constant dense<0.000000e+00> : vector<128x16xf32>
    %3 = tpu.matmul %0, %2, %cst {dimension_numbers = #tpu.dot_dimension_numbers<[1], [0], [0], [1], [0, 0, 1, 1], [], []>} : vector<128x4xf32>, vector<4x16xf32>, vector<128x16xf32> -> vector<128x16xf32>
    %c1 = arith.constant 1 : index
    %c0_4 = arith.constant 0 : index
    %c0_5 = arith.constant 0 : index
    %4 = vector.load %arg2[%c1, %c0_4, %c0_5] : memref<3x4x16xf32, #tpu.memory_space<vmem>>, vector<1x4x16xf32>
    %5 = vector.shape_cast %4 : vector<1x4x16xf32> to vector<4x16xf32>
    %cst_6 = arith.constant dense<0.000000e+00> : vector<128x16xf32>
    %6 = tpu.matmul %0, %5, %cst_6 {dimension_numbers = #tpu.dot_dimension_numbers<[1], [0], [0], [1], [0, 0, 1, 1], [], []>} : vector<128x4xf32>, vector<4x16xf32>, vector<128x16xf32> -> vector<128x16xf32>
    %c2 = arith.constant 2 : index
    %c0_7 = arith.constant 0 : index
    %c0_8 = arith.constant 0 : index
    %7 = vector.load %arg2[%c2, %c0_7, %c0_8] : memref<3x4x16xf32, #tpu.memory_space<vmem>>, vector<1x4x16xf32>
    %8 = vector.shape_cast %7 : vector<1x4x16xf32> to vector<4x16xf32>
    %cst_9 = arith.constant dense<0.000000e+00> : vector<128x16xf32>
    %9 = tpu.matmul %0, %8, %cst_9 {dimension_numbers = #tpu.dot_dimension_numbers<[1], [0], [0], [1], [0, 0, 1, 1], [], []>} : vector<128x4xf32>, vector<4x16xf32>, vector<128x16xf32> -> vector<128x16xf32>
    %c0_10 = arith.constant 0 : index
    %c0_11 = arith.constant 0 : index
    %c0_12 = arith.constant 0 : index
    %10 = vector.load %arg4[%c0_10, %c0_11, %c0_12] : memref<2x128x1xf32, #tpu.memory_space<vmem>>, vector<1x128x1xf32>
    %11 = vector.shape_cast %10 : vector<1x128x1xf32> to vector<128x1xf32>
    %c1_13 = arith.constant 1 : index
    %c0_14 = arith.constant 0 : index
    %c0_15 = arith.constant 0 : index
    %12 = vector.load %arg4[%c1_13, %c0_14, %c0_15] : memref<2x128x1xf32, #tpu.memory_space<vmem>>, vector<1x128x1xf32>
    %13 = vector.shape_cast %12 : vector<1x128x1xf32> to vector<128x1xf32>
    %c1_i32 = arith.constant 1 : i32
    %14 = tpu.dynamic_rotate %3 by %c1_i32 dim 0 : vector<128x16xf32>, i32 -> vector<128x16xf32>
    %15 = vector.broadcast %11 : vector<128x1xf32> to vector<128x16xf32>
    %16 = arith.mulf %15, %14 : vector<128x16xf32>
    %17 = arith.addf %6, %16 : vector<128x16xf32>
    %c127_i32 = arith.constant 127 : i32
    %18 = tpu.dynamic_rotate %9 by %c127_i32 dim 0 : vector<128x16xf32>, i32 -> vector<128x16xf32>
    %19 = vector.broadcast %13 : vector<128x1xf32> to vector<128x16xf32>
    %20 = arith.mulf %19, %18 : vector<128x16xf32>
    %21 = arith.addf %17, %20 : vector<128x16xf32>
    %c0_16 = arith.constant 0 : index
    %c0_17 = arith.constant 0 : index
    %22 = vector.load %arg3[%c0_16, %c0_17] : memref<1x16xf32, #tpu.memory_space<vmem>>, vector<1x16xf32>
    %23 = vector.broadcast %22 : vector<1x16xf32> to vector<128x16xf32>
    %24 = arith.addf %21, %23 : vector<128x16xf32>
    %cst_18 = arith.constant 0.000000e+00 : f32
    %25 = vector.broadcast %cst_18 : f32 to vector<128x16xf32>
    %26 = arith.maximumf %24, %25 : vector<128x16xf32>
    %c127_i32_19 = arith.constant 127 : i32
    %27 = tpu.dynamic_rotate %26 by %c127_i32_19 dim 0 : vector<128x16xf32>, i32 -> vector<128x16xf32>
    %28 = arith.maximumf %26, %27 : vector<128x16xf32>
    %c0_20 = arith.constant 0 : index
    %c0_21 = arith.constant 0 : index
    %29 = vector.load %arg5[%c0_20, %c0_21] : memref<64x128xf32, #tpu.memory_space<vmem>>, vector<64x128xf32>
    %cst_22 = arith.constant dense<0.000000e+00> : vector<64x16xf32>
    %30 = tpu.matmul %29, %28, %cst_22 {dimension_numbers = #tpu.dot_dimension_numbers<[1], [0], [0], [1], [0, 0, 1, 1], [], []>} : vector<64x128xf32>, vector<128x16xf32>, vector<64x16xf32> -> vector<64x16xf32>
    %c0_23 = arith.constant 0 : index
    %c0_24 = arith.constant 0 : index
    %c0_25 = arith.constant 0 : index
    %31 = vector.load %arg6[%c0_23, %c0_24, %c0_25] : memref<3x16x32xf32, #tpu.memory_space<vmem>>, vector<1x16x32xf32>
    %32 = vector.shape_cast %31 : vector<1x16x32xf32> to vector<16x32xf32>
    %cst_26 = arith.constant dense<0.000000e+00> : vector<64x32xf32>
    %33 = tpu.matmul %30, %32, %cst_26 {dimension_numbers = #tpu.dot_dimension_numbers<[1], [0], [0], [1], [0, 0, 1, 1], [], []>} : vector<64x16xf32>, vector<16x32xf32>, vector<64x32xf32> -> vector<64x32xf32>
    %c1_27 = arith.constant 1 : index
    %c0_28 = arith.constant 0 : index
    %c0_29 = arith.constant 0 : index
    %34 = vector.load %arg6[%c1_27, %c0_28, %c0_29] : memref<3x16x32xf32, #tpu.memory_space<vmem>>, vector<1x16x32xf32>
    %35 = vector.shape_cast %34 : vector<1x16x32xf32> to vector<16x32xf32>
    %cst_30 = arith.constant dense<0.000000e+00> : vector<64x32xf32>
    %36 = tpu.matmul %30, %35, %cst_30 {dimension_numbers = #tpu.dot_dimension_numbers<[1], [0], [0], [1], [0, 0, 1, 1], [], []>} : vector<64x16xf32>, vector<16x32xf32>, vector<64x32xf32> -> vector<64x32xf32>
    %c2_31 = arith.constant 2 : index
    %c0_32 = arith.constant 0 : index
    %c0_33 = arith.constant 0 : index
    %37 = vector.load %arg6[%c2_31, %c0_32, %c0_33] : memref<3x16x32xf32, #tpu.memory_space<vmem>>, vector<1x16x32xf32>
    %38 = vector.shape_cast %37 : vector<1x16x32xf32> to vector<16x32xf32>
    %cst_34 = arith.constant dense<0.000000e+00> : vector<64x32xf32>
    %39 = tpu.matmul %30, %38, %cst_34 {dimension_numbers = #tpu.dot_dimension_numbers<[1], [0], [0], [1], [0, 0, 1, 1], [], []>} : vector<64x16xf32>, vector<16x32xf32>, vector<64x32xf32> -> vector<64x32xf32>
    %c0_35 = arith.constant 0 : index
    %c0_36 = arith.constant 0 : index
    %c0_37 = arith.constant 0 : index
    %40 = vector.load %arg8[%c0_35, %c0_36, %c0_37] : memref<2x64x1xf32, #tpu.memory_space<vmem>>, vector<1x64x1xf32>
    %41 = vector.shape_cast %40 : vector<1x64x1xf32> to vector<64x1xf32>
    %c1_38 = arith.constant 1 : index
    %c0_39 = arith.constant 0 : index
    %c0_40 = arith.constant 0 : index
    %42 = vector.load %arg8[%c1_38, %c0_39, %c0_40] : memref<2x64x1xf32, #tpu.memory_space<vmem>>, vector<1x64x1xf32>
    %43 = vector.shape_cast %42 : vector<1x64x1xf32> to vector<64x1xf32>
    %c1_i32_41 = arith.constant 1 : i32
    %44 = tpu.dynamic_rotate %33 by %c1_i32_41 dim 0 : vector<64x32xf32>, i32 -> vector<64x32xf32>
    %45 = vector.broadcast %41 : vector<64x1xf32> to vector<64x32xf32>
    %46 = arith.mulf %45, %44 : vector<64x32xf32>
    %47 = arith.addf %36, %46 : vector<64x32xf32>
    %c63_i32 = arith.constant 63 : i32
    %48 = tpu.dynamic_rotate %39 by %c63_i32 dim 0 : vector<64x32xf32>, i32 -> vector<64x32xf32>
    %49 = vector.broadcast %43 : vector<64x1xf32> to vector<64x32xf32>
    %50 = arith.mulf %49, %48 : vector<64x32xf32>
    %51 = arith.addf %47, %50 : vector<64x32xf32>
    %c0_42 = arith.constant 0 : index
    %c0_43 = arith.constant 0 : index
    %52 = vector.load %arg7[%c0_42, %c0_43] : memref<1x32xf32, #tpu.memory_space<vmem>>, vector<1x32xf32>
    %53 = vector.broadcast %52 : vector<1x32xf32> to vector<64x32xf32>
    %54 = arith.addf %51, %53 : vector<64x32xf32>
    %cst_44 = arith.constant 0.000000e+00 : f32
    %55 = vector.broadcast %cst_44 : f32 to vector<64x32xf32>
    %56 = arith.maximumf %54, %55 : vector<64x32xf32>
    %c63_i32_45 = arith.constant 63 : i32
    %57 = tpu.dynamic_rotate %56 by %c63_i32_45 dim 0 : vector<64x32xf32>, i32 -> vector<64x32xf32>
    %58 = arith.maximumf %56, %57 : vector<64x32xf32>
    %c0_46 = arith.constant 0 : index
    %c0_47 = arith.constant 0 : index
    %59 = vector.load %arg9[%c0_46, %c0_47] : memref<32x64xf32, #tpu.memory_space<vmem>>, vector<32x64xf32>
    %cst_48 = arith.constant dense<0.000000e+00> : vector<32x32xf32>
    %60 = tpu.matmul %59, %58, %cst_48 {dimension_numbers = #tpu.dot_dimension_numbers<[1], [0], [0], [1], [0, 0, 1, 1], [], []>} : vector<32x64xf32>, vector<64x32xf32>, vector<32x32xf32> -> vector<32x32xf32>
    %c0_49 = arith.constant 0 : index
    %c0_50 = arith.constant 0 : index
    %c0_51 = arith.constant 0 : index
    %61 = vector.load %arg10[%c0_49, %c0_50, %c0_51] : memref<3x32x64xf32, #tpu.memory_space<vmem>>, vector<1x32x64xf32>
    %62 = vector.shape_cast %61 : vector<1x32x64xf32> to vector<32x64xf32>
    %cst_52 = arith.constant dense<0.000000e+00> : vector<32x64xf32>
    %63 = tpu.matmul %60, %62, %cst_52 {dimension_numbers = #tpu.dot_dimension_numbers<[1], [0], [0], [1], [0, 0, 1, 1], [], []>} : vector<32x32xf32>, vector<32x64xf32>, vector<32x64xf32> -> vector<32x64xf32>
    %c1_53 = arith.constant 1 : index
    %c0_54 = arith.constant 0 : index
    %c0_55 = arith.constant 0 : index
    %64 = vector.load %arg10[%c1_53, %c0_54, %c0_55] : memref<3x32x64xf32, #tpu.memory_space<vmem>>, vector<1x32x64xf32>
    %65 = vector.shape_cast %64 : vector<1x32x64xf32> to vector<32x64xf32>
    %cst_56 = arith.constant dense<0.000000e+00> : vector<32x64xf32>
    %66 = tpu.matmul %60, %65, %cst_56 {dimension_numbers = #tpu.dot_dimension_numbers<[1], [0], [0], [1], [0, 0, 1, 1], [], []>} : vector<32x32xf32>, vector<32x64xf32>, vector<32x64xf32> -> vector<32x64xf32>
    %c2_57 = arith.constant 2 : index
    %c0_58 = arith.constant 0 : index
    %c0_59 = arith.constant 0 : index
    %67 = vector.load %arg10[%c2_57, %c0_58, %c0_59] : memref<3x32x64xf32, #tpu.memory_space<vmem>>, vector<1x32x64xf32>
    %68 = vector.shape_cast %67 : vector<1x32x64xf32> to vector<32x64xf32>
    %cst_60 = arith.constant dense<0.000000e+00> : vector<32x64xf32>
    %69 = tpu.matmul %60, %68, %cst_60 {dimension_numbers = #tpu.dot_dimension_numbers<[1], [0], [0], [1], [0, 0, 1, 1], [], []>} : vector<32x32xf32>, vector<32x64xf32>, vector<32x64xf32> -> vector<32x64xf32>
    %c0_61 = arith.constant 0 : index
    %c0_62 = arith.constant 0 : index
    %c0_63 = arith.constant 0 : index
    %70 = vector.load %arg12[%c0_61, %c0_62, %c0_63] : memref<2x32x1xf32, #tpu.memory_space<vmem>>, vector<1x32x1xf32>
    %71 = vector.shape_cast %70 : vector<1x32x1xf32> to vector<32x1xf32>
    %c1_64 = arith.constant 1 : index
    %c0_65 = arith.constant 0 : index
    %c0_66 = arith.constant 0 : index
    %72 = vector.load %arg12[%c1_64, %c0_65, %c0_66] : memref<2x32x1xf32, #tpu.memory_space<vmem>>, vector<1x32x1xf32>
    %73 = vector.shape_cast %72 : vector<1x32x1xf32> to vector<32x1xf32>
    %c1_i32_67 = arith.constant 1 : i32
    %74 = tpu.dynamic_rotate %63 by %c1_i32_67 dim 0 : vector<32x64xf32>, i32 -> vector<32x64xf32>
    %75 = vector.broadcast %71 : vector<32x1xf32> to vector<32x64xf32>
    %76 = arith.mulf %75, %74 : vector<32x64xf32>
    %77 = arith.addf %66, %76 : vector<32x64xf32>
    %c31_i32 = arith.constant 31 : i32
    %78 = tpu.dynamic_rotate %69 by %c31_i32 dim 0 : vector<32x64xf32>, i32 -> vector<32x64xf32>
    %79 = vector.broadcast %73 : vector<32x1xf32> to vector<32x64xf32>
    %80 = arith.mulf %79, %78 : vector<32x64xf32>
    %81 = arith.addf %77, %80 : vector<32x64xf32>
    %c0_68 = arith.constant 0 : index
    %c0_69 = arith.constant 0 : index
    %82 = vector.load %arg11[%c0_68, %c0_69] : memref<1x64xf32, #tpu.memory_space<vmem>>, vector<1x64xf32>
    %83 = vector.broadcast %82 : vector<1x64xf32> to vector<32x64xf32>
    %84 = arith.addf %81, %83 : vector<32x64xf32>
    %cst_70 = arith.constant 0.000000e+00 : f32
    %85 = vector.broadcast %cst_70 : f32 to vector<32x64xf32>
    %86 = arith.maximumf %84, %85 : vector<32x64xf32>
    %c31_i32_71 = arith.constant 31 : i32
    %87 = tpu.dynamic_rotate %86 by %c31_i32_71 dim 0 : vector<32x64xf32>, i32 -> vector<32x64xf32>
    %88 = arith.maximumf %86, %87 : vector<32x64xf32>
    %c0_72 = arith.constant 0 : index
    %c0_73 = arith.constant 0 : index
    %89 = vector.load %arg13[%c0_72, %c0_73] : memref<16x32xf32, #tpu.memory_space<vmem>>, vector<16x32xf32>
    %cst_74 = arith.constant dense<0.000000e+00> : vector<16x64xf32>
    %90 = tpu.matmul %89, %88, %cst_74 {dimension_numbers = #tpu.dot_dimension_numbers<[1], [0], [0], [1], [0, 0, 1, 1], [], []>} : vector<16x32xf32>, vector<32x64xf32>, vector<16x64xf32> -> vector<16x64xf32>
    %c0_75 = arith.constant 0 : index
    %c0_76 = arith.constant 0 : index
    %c0_77 = arith.constant 0 : index
    %91 = vector.load %arg16[%c0_75, %c0_76, %c0_77] : memref<2x16x1xf32, #tpu.memory_space<vmem>>, vector<1x16x1xf32>
    %92 = vector.shape_cast %91 : vector<1x16x1xf32> to vector<16x1xf32>
    %c0_78 = arith.constant 0 : index
    %c0_79 = arith.constant 0 : index
    %c0_80 = arith.constant 0 : index
    %93 = vector.load %arg14[%c0_78, %c0_79, %c0_80] : memref<2x64x32xf32, #tpu.memory_space<vmem>>, vector<1x64x32xf32>
    %94 = vector.shape_cast %93 : vector<1x64x32xf32> to vector<64x32xf32>
    %cst_81 = arith.constant dense<0.000000e+00> : vector<16x32xf32>
    %95 = tpu.matmul %90, %94, %cst_81 {dimension_numbers = #tpu.dot_dimension_numbers<[1], [0], [0], [1], [0, 0, 1, 1], [], []>} : vector<16x64xf32>, vector<64x32xf32>, vector<16x32xf32> -> vector<16x32xf32>
    %96 = vector.broadcast %92 : vector<16x1xf32> to vector<16x32xf32>
    %97 = arith.mulf %96, %95 : vector<16x32xf32>
    %c1_82 = arith.constant 1 : index
    %c0_83 = arith.constant 0 : index
    %c0_84 = arith.constant 0 : index
    %98 = vector.load %arg16[%c1_82, %c0_83, %c0_84] : memref<2x16x1xf32, #tpu.memory_space<vmem>>, vector<1x16x1xf32>
    %99 = vector.shape_cast %98 : vector<1x16x1xf32> to vector<16x1xf32>
    %c1_85 = arith.constant 1 : index
    %c0_86 = arith.constant 0 : index
    %c0_87 = arith.constant 0 : index
    %100 = vector.load %arg14[%c1_85, %c0_86, %c0_87] : memref<2x64x32xf32, #tpu.memory_space<vmem>>, vector<1x64x32xf32>
    %101 = vector.shape_cast %100 : vector<1x64x32xf32> to vector<64x32xf32>
    %cst_88 = arith.constant dense<0.000000e+00> : vector<16x32xf32>
    %102 = tpu.matmul %90, %101, %cst_88 {dimension_numbers = #tpu.dot_dimension_numbers<[1], [0], [0], [1], [0, 0, 1, 1], [], []>} : vector<16x64xf32>, vector<64x32xf32>, vector<16x32xf32> -> vector<16x32xf32>
    %103 = vector.broadcast %99 : vector<16x1xf32> to vector<16x32xf32>
    %104 = arith.mulf %103, %102 : vector<16x32xf32>
    %105 = arith.addf %97, %104 : vector<16x32xf32>
    %c0_89 = arith.constant 0 : index
    %c0_90 = arith.constant 0 : index
    %106 = vector.load %arg17[%c0_89, %c0_90] : memref<8x16xf32, #tpu.memory_space<vmem>>, vector<8x16xf32>
    %cst_91 = arith.constant dense<0.000000e+00> : vector<8x32xf32>
    %107 = tpu.matmul %106, %105, %cst_91 {dimension_numbers = #tpu.dot_dimension_numbers<[1], [0], [0], [1], [0, 0, 1, 1], [], []>} : vector<8x16xf32>, vector<16x32xf32>, vector<8x32xf32> -> vector<8x32xf32>
    %c0_92 = arith.constant 0 : index
    %c0_93 = arith.constant 0 : index
    %108 = vector.load %arg15[%c0_92, %c0_93] : memref<1x32xf32, #tpu.memory_space<vmem>>, vector<1x32xf32>
    %109 = vector.broadcast %108 : vector<1x32xf32> to vector<8x32xf32>
    %110 = arith.addf %107, %109 : vector<8x32xf32>
    %cst_94 = arith.constant 0.000000e+00 : f32
    %111 = vector.broadcast %cst_94 : f32 to vector<8x32xf32>
    %112 = arith.maximumf %110, %111 : vector<8x32xf32>
    %c0_95 = arith.constant 0 : index
    %c0_96 = arith.constant 0 : index
    %113 = vector.load %arg18[%c0_95, %c0_96] : memref<8x32xf32, #tpu.memory_space<vmem>>, vector<8x32xf32>
    tpu.vector_store %arg18[%c0_95, %c0_96], %112 {strides = array<i32>} : memref<8x32xf32, #tpu.memory_space<vmem>>, vector<8x32xf32>,
    return
  }
  func.func @transform_0(%arg0: i32) -> (i32, i32) {
    %c0_i32 = arith.constant 0 : i32
    %c0_i32_0 = arith.constant 0 : i32
    return %arg0, %c0_i32 : i32, i32
  }
  func.func @transform_1(%arg0: i32) -> (i32, i32, i32) {
    %c0_i32 = arith.constant 0 : i32
    %c0_i32_0 = arith.constant 0 : i32
    %c0_i32_1 = arith.constant 0 : i32
    %c0_i32_2 = arith.constant 0 : i32
    return %c0_i32, %c0_i32_0, %c0_i32_1 : i32, i32, i32
  }
  func.func @transform_2(%arg0: i32) -> (i32, i32) {
    %c0_i32 = arith.constant 0 : i32
    %c0_i32_0 = arith.constant 0 : i32
    %c0_i32_1 = arith.constant 0 : i32
    return %c0_i32, %c0_i32_0 : i32, i32
  }
  func.func @transform_3(%arg0: i32) -> (i32, i32, i32) {
    %c0_i32 = arith.constant 0 : i32
    %c0_i32_0 = arith.constant 0 : i32
    %c0_i32_1 = arith.constant 0 : i32
    %c0_i32_2 = arith.constant 0 : i32
    return %c0_i32, %c0_i32_0, %c0_i32_1 : i32, i32, i32
  }
  func.func @transform_4(%arg0: i32) -> (i32, i32) {
    %c0_i32 = arith.constant 0 : i32
    %c0_i32_0 = arith.constant 0 : i32
    %c0_i32_1 = arith.constant 0 : i32
    return %c0_i32, %c0_i32_0 : i32, i32
  }
  func.func @transform_5(%arg0: i32) -> (i32, i32, i32) {
    %c0_i32 = arith.constant 0 : i32
    %c0_i32_0 = arith.constant 0 : i32
    %c0_i32_1 = arith.constant 0 : i32
    %c0_i32_2 = arith.constant 0 : i32
    return %c0_i32, %c0_i32_0, %c0_i32_1 : i32, i32, i32
  }
  func.func @transform_6(%arg0: i32) -> (i32, i32) {
    %c0_i32 = arith.constant 0 : i32
    %c0_i32_0 = arith.constant 0 : i32
    %c0_i32_1 = arith.constant 0 : i32
    return %c0_i32, %c0_i32_0 : i32, i32
  }
  func.func @transform_7(%arg0: i32) -> (i32, i32, i32) {
    %c0_i32 = arith.constant 0 : i32
    %c0_i32_0 = arith.constant 0 : i32
    %c0_i32_1 = arith.constant 0 : i32
    %c0_i32_2 = arith.constant 0 : i32
    return %c0_i32, %c0_i32_0, %c0_i32_1 : i32, i32, i32
  }
  func.func @transform_8(%arg0: i32) -> (i32, i32) {
    %c0_i32 = arith.constant 0 : i32
    %c0_i32_0 = arith.constant 0 : i32
    %c0_i32_1 = arith.constant 0 : i32
    return %c0_i32, %c0_i32_0 : i32, i32
  }
  func.func @transform_9(%arg0: i32) -> (i32, i32, i32) {
    %c0_i32 = arith.constant 0 : i32
    %c0_i32_0 = arith.constant 0 : i32
    %c0_i32_1 = arith.constant 0 : i32
    %c0_i32_2 = arith.constant 0 : i32
    return %c0_i32, %c0_i32_0, %c0_i32_1 : i32, i32, i32
  }
  func.func @transform_10(%arg0: i32) -> (i32, i32) {
    %c0_i32 = arith.constant 0 : i32
    %c0_i32_0 = arith.constant 0 : i32
    %c0_i32_1 = arith.constant 0 : i32
    return %c0_i32, %c0_i32_0 : i32, i32
  }
  func.func @transform_11(%arg0: i32) -> (i32, i32, i32) {
    %c0_i32 = arith.constant 0 : i32
    %c0_i32_0 = arith.constant 0 : i32
    %c0_i32_1 = arith.constant 0 : i32
    %c0_i32_2 = arith.constant 0 : i32
    return %c0_i32, %c0_i32_0, %c0_i32_1 : i32, i32, i32
  }
  func.func @transform_12(%arg0: i32) -> (i32, i32) {
    %c0_i32 = arith.constant 0 : i32
    %c0_i32_0 = arith.constant 0 : i32
    %c0_i32_1 = arith.constant 0 : i32
    return %c0_i32, %c0_i32_0 : i32, i32
  }
  func.func @transform_13(%arg0: i32) -> (i32, i32, i32) {
    %c0_i32 = arith.constant 0 : i32
    %c0_i32_0 = arith.constant 0 : i32
    %c0_i32_1 = arith.constant 0 : i32
    %c0_i32_2 = arith.constant 0 : i32
    return %c0_i32, %c0_i32_0, %c0_i32_1 : i32, i32, i32
  }
  func.func @transform_14(%arg0: i32) -> (i32, i32) {
    %c0_i32 = arith.constant 0 : i32
    %c0_i32_0 = arith.constant 0 : i32
    %c0_i32_1 = arith.constant 0 : i32
    return %c0_i32, %c0_i32_0 : i32, i32
  }
  func.func @transform_15(%arg0: i32) -> (i32, i32, i32) {
    %c0_i32 = arith.constant 0 : i32
    %c0_i32_0 = arith.constant 0 : i32
    %c0_i32_1 = arith.constant 0 : i32
    %c0_i32_2 = arith.constant 0 : i32
    return %c0_i32, %c0_i32_0, %c0_i32_1 : i32, i32, i32
  }
  func.func @transform_16(%arg0: i32) -> (i32, i32) {
    %c0_i32 = arith.constant 0 : i32
    %c0_i32_0 = arith.constant 0 : i32
    %c0_i32_1 = arith.constant 0 : i32
    return %c0_i32, %c0_i32_0 : i32, i32
  }
  func.func @transform_17(%arg0: i32) -> (i32, i32) {
    %c0_i32 = arith.constant 0 : i32
    %c0_i32_0 = arith.constant 0 : i32
    return %arg0, %c0_i32 : i32, i32
  }
}

</mosaic_0001>

<llo_original>
// kernel: encoder_apply.1
$region0: #{encoder_apply.1}
  #allocation0 [shape = 'u32[]', space=smem, size = 0x4, offset = 0x4, fixed_abs, tag = 'smem constant byte address 0x4 - core index']
  #allocation1 [shape = 'u32[144,128]{1,0:T(1,128)}', space=vmem, size = 0x12000, scoped, tag = 'internal scratch']
  %s0 = inlined_call_operand.vmem [shape: f32[256,4], index: 0, kind: input, shape index: {}]
  %s1 = inlined_call_operand.vmem [shape: f32[3,4,16], index: 1, kind: input, shape index: {}]
  %s2 = inlined_call_operand.vmem [shape: f32[1,16], index: 2, kind: input, shape index: {}]
  %s3 = inlined_call_operand.vmem [shape: f32[2,128,1], index: 3, kind: input, shape index: {}]
  %s4 = inlined_call_operand.vmem [shape: f32[64,128], index: 4, kind: input, shape index: {}]
  %s5 = inlined_call_operand.vmem [shape: f32[3,16,32], index: 5, kind: input, shape index: {}]
  %s6 = inlined_call_operand.vmem [shape: f32[1,32], index: 6, kind: input, shape index: {}]
  %s7 = inlined_call_operand.vmem [shape: f32[2,64,1], index: 7, kind: input, shape index: {}]
  %s8 = inlined_call_operand.vmem [shape: f32[32,64], index: 8, kind: input, shape index: {}]
  %s9 = inlined_call_operand.vmem [shape: f32[3,32,64], index: 9, kind: input, shape index: {}]
  %s10 = inlined_call_operand.vmem [shape: f32[1,64], index: 10, kind: input, shape index: {}]
  %s11 = inlined_call_operand.vmem [shape: f32[2,32,1], index: 11, kind: input, shape index: {}]
  %s12 = inlined_call_operand.vmem [shape: f32[16,32], index: 12, kind: input, shape index: {}]
  %s13 = inlined_call_operand.vmem [shape: f32[2,64,32], index: 13, kind: input, shape index: {}]
  %s14 = inlined_call_operand.vmem [shape: f32[1,32], index: 14, kind: input, shape index: {}]
  %s15 = inlined_call_operand.vmem [shape: f32[2,16,1], index: 15, kind: input, shape index: {}]
  %s16 = inlined_call_operand.vmem [shape: f32[8,16], index: 16, kind: input, shape index: {}]
  %s17 = inlined_call_operand.vmem [shape: f32[16,32], index: 17, kind: output, shape index: {}]
  %s18 = sld [smem:[#allocation0]]
  $region101: #{encoder_apply.1} parent=0
    _
  %s20 = ssub.s32 1, %s18
  %s21 = scalar_select 0, %s20, %s18
  loop: start=0, step=1, limit=4
  $region2: #{encoder_apply.1} parent=0 // loop_pre_header
    _
  $region3: #{encoder_apply.1} parent=0 // loop_header
    %s23 = sphi 0, %s27
    %p24 = scmp.ge.s32.totalorder %s23, 4
    %s33 = sphi 0, %s35
    %s36 = sphi 0, %s33
    %s37 = sphi 0, %s36
    %s53 = sphi 0, %s37
    %s57 = sphi 0, %s57
    %s59 = sphi 0, %s57
    %s60 = sphi 0, %s59
    %s74 = sphi 0, %s60
    %s78 = sphi 0, %s78
    %s80 = sphi 0, %s78
    %s81 = sphi 0, %s80
    %s95 = sphi 0, %s81
    %s99 = sphi 0, %s99
    %s101 = sphi 0, %s99
    %s102 = sphi 0, %s101
    %s116 = sphi 0, %s102
    %s120 = sphi 0, %s120
    %s122 = sphi 0, %s120
    %s123 = sphi 0, %s122
    %s137 = sphi 0, %s123
    %s141 = sphi 0, %s141
    %s143 = sphi 0, %s141
    %s144 = sphi 0, %s143
    %s158 = sphi 0, %s144
    %s162 = sphi 0, %s162
    %s164 = sphi 0, %s162
    %s165 = sphi 0, %s164
    %s179 = sphi 0, %s165
    %s183 = sphi 0, %s183
    %s185 = sphi 0, %s183
    %s186 = sphi 0, %s185
    %s200 = sphi 0, %s186
    %s204 = sphi 0, %s204
    %s206 = sphi 0, %s204
    %s207 = sphi 0, %s206
    %s221 = sphi 0, %s207
    %s225 = sphi 0, %s225
    %s227 = sphi 0, %s225
    %s228 = sphi 0, %s227
    %s242 = sphi 0, %s228
    %s246 = sphi 0, %s246
    %s248 = sphi 0, %s246
    %s249 = sphi 0, %s248
    %s263 = sphi 0, %s249
    %s267 = sphi 0, %s267
    %s269 = sphi 0, %s267
    %s270 = sphi 0, %s269
    %s284 = sphi 0, %s270
    %s288 = sphi 0, %s288
    %s290 = sphi 0, %s288
    %s291 = sphi 0, %s290
    %s305 = sphi 0, %s291
    %s309 = sphi 0, %s309
    %s311 = sphi 0, %s309
    %s312 = sphi 0, %s311
    %s326 = sphi 0, %s312
    %s330 = sphi 0, %s330
    %s332 = sphi 0, %s330
    %s333 = sphi 0, %s332
    %s347 = sphi 0, %s333
    %s351 = sphi 0, %s351
    %s353 = sphi 0, %s351
    %s354 = sphi 0, %s353
    %s368 = sphi 0, %s354
    %s372 = sphi 0, %s372
    %s374 = sphi 0, %s372
    %s375 = sphi 0, %s374
    %s389 = sphi 0, %s375
    %s395 = sphi 0, %s397
    %s398 = sphi 0, %s395
    %s399 = sphi 0, %s398
    %s415 = sphi 0, %s399
  $region4: #{encoder_apply.1} parent=0 // loop_header_branch
    %26 = sbr.rel (%p24) target = $region8
  $region5: #{encoder_apply.1} parent=0 // loop_body
    %s28 = ssub.s32 %s23, 1
    %s29 = ssub.s32 %s23, 2
    %s30 = sadd.s32 %s23, 1
    %s31 = ssub.s32 %s23, %s30
    %p32 = scmp.eq.s32.totalorder %s31, 0
    %s34 = sadd.s32 %s33, 1
    %s35 = scalar_select %p32, %s33, %s34
    %p38 = pneg %p32
    %p39 = scmp.eq.s32.totalorder %s23, 1
    %p40 = por %p38, %p39
    %p41 = scmp.ne.s32.totalorder %s33, %s36
    %p42 = scmp.eq.s32.totalorder %s23, 0
    %p43 = por %p41, %p42
    %p44 = scmp.ne.s32.totalorder %s33, %s36
    %p45 = scmp.eq.s32.totalorder %s28, 1
    %p46 = por %p44, %p45
    %p47 = scmp.ne.s32.totalorder %s36, %s37
    %p48 = scmp.eq.s32.totalorder %s28, 0
    %p49 = por %p47, %p48
    %p50 = scmp.ne.s32.totalorder %s36, %s37
    %p51 = scmp.eq.s32.totalorder %s29, 1
    %p52 = por %p50, %p51
    %p54 = scmp.ne.s32.totalorder %s37, %s53
    %p55 = scmp.eq.s32.totalorder %s29, 0
    %p56 = por %p54, %p55
    %s58 = sadd.s32 %s57, 1
    %p61 = scmp.eq.s32.totalorder %s23, 1
    %p62 = scmp.ne.s32.totalorder %s57, %s59
    %p63 = scmp.eq.s32.totalorder %s23, 0
    %p64 = por %p62, %p63
    %p65 = scmp.ne.s32.totalorder %s57, %s59
    %p66 = scmp.eq.s32.totalorder %s28, 1
    %p67 = por %p65, %p66
    %p68 = scmp.ne.s32.totalorder %s59, %s60
    %p69 = scmp.eq.s32.totalorder %s28, 0
    %p70 = por %p68, %p69
    %p71 = scmp.ne.s32.totalorder %s59, %s60
    %p72 = scmp.eq.s32.totalorder %s29, 1
    %p73 = por %p71, %p72
    %p75 = scmp.ne.s32.totalorder %s60, %s74
    %p76 = scmp.eq.s32.totalorder %s29, 0
    %p77 = por %p75, %p76
    %s79 = sadd.s32 %s78, 1
    %p82 = scmp.eq.s32.totalorder %s23, 1
    %p83 = scmp.ne.s32.totalorder %s78, %s80
    %p84 = scmp.eq.s32.totalorder %s23, 0
    %p85 = por %p83, %p84
    %p86 = scmp.ne.s32.totalorder %s78, %s80
    %p87 = scmp.eq.s32.totalorder %s28, 1
    %p88 = por %p86, %p87
    %p89 = scmp.ne.s32.totalorder %s80, %s81
    %p90 = scmp.eq.s32.totalorder %s28, 0
    %p91 = por %p89, %p90
    %p92 = scmp.ne.s32.totalorder %s80, %s81
    %p93 = scmp.eq.s32.totalorder %s29, 1
    %p94 = por %p92, %p93
    %p96 = scmp.ne.s32.totalorder %s81, %s95
    %p97 = scmp.eq.s32.totalorder %s29, 0
    %p98 = por %p96, %p97
    %s100 = sadd.s32 %s99, 1
    %p103 = scmp.eq.s32.totalorder %s23, 1
    %p104 = scmp.ne.s32.totalorder %s99, %s101
    %p105 = scmp.eq.s32.totalorder %s23, 0
    %p106 = por %p104, %p105
    %p107 = scmp.ne.s32.totalorder %s99, %s101
    %p108 = scmp.eq.s32.totalorder %s28, 1
    %p109 = por %p107, %p108
    %p110 = scmp.ne.s32.totalorder %s101, %s102
    %p111 = scmp.eq.s32.totalorder %s28, 0
    %p112 = por %p110, %p111
    %p113 = scmp.ne.s32.totalorder %s101, %s102
    %p114 = scmp.eq.s32.totalorder %s29, 1
    %p115 = por %p113, %p114
    %p117 = scmp.ne.s32.totalorder %s102, %s116
    %p118 = scmp.eq.s32.totalorder %s29, 0
    %p119 = por %p117, %p118
    %s121 = sadd.s32 %s120, 1
    %p124 = scmp.eq.s32.totalorder %s23, 1
    %p125 = scmp.ne.s32.totalorder %s120, %s122
    %p126 = scmp.eq.s32.totalorder %s23, 0
    %p127 = por %p125, %p126
    %p128 = scmp.ne.s32.totalorder %s120, %s122
    %p129 = scmp.eq.s32.totalorder %s28, 1
    %p130 = por %p128, %p129
    %p131 = scmp.ne.s32.totalorder %s122, %s123
    %p132 = scmp.eq.s32.totalorder %s28, 0
    %p133 = por %p131, %p132
    %p134 = scmp.ne.s32.totalorder %s122, %s123
    %p135 = scmp.eq.s32.totalorder %s29, 1
    %p136 = por %p134, %p135
    %p138 = scmp.ne.s32.totalorder %s123, %s137
    %p139 = scmp.eq.s32.totalorder %s29, 0
    %p140 = por %p138, %p139
    %s142 = sadd.s32 %s141, 1
    %p145 = scmp.eq.s32.totalorder %s23, 1
    %p146 = scmp.ne.s32.totalorder %s141, %s143
    %p147 = scmp.eq.s32.totalorder %s23, 0
    %p148 = por %p146, %p147
    %p149 = scmp.ne.s32.totalorder %s141, %s143
    %p150 = scmp.eq.s32.totalorder %s28, 1
    %p151 = por %p149, %p150
    %p152 = scmp.ne.s32.totalorder %s143, %s144
    %p153 = scmp.eq.s32.totalorder %s28, 0
    %p154 = por %p152, %p153
    %p155 = scmp.ne.s32.totalorder %s143, %s144
    %p156 = scmp.eq.s32.totalorder %s29, 1
    %p157 = por %p155, %p156
    %p159 = scmp.ne.s32.totalorder %s144, %s158
    %p160 = scmp.eq.s32.totalorder %s29, 0
    %p161 = por %p159, %p160
    %s163 = sadd.s32 %s162, 1
    %p166 = scmp.eq.s32.totalorder %s23, 1
    %p167 = scmp.ne.s32.totalorder %s162, %s164
    %p168 = scmp.eq.s32.totalorder %s23, 0
    %p169 = por %p167, %p168
    %p170 = scmp.ne.s32.totalorder %s162, %s164
    %p171 = scmp.eq.s32.totalorder %s28, 1
    %p172 = por %p170, %p171
    %p173 = scmp.ne.s32.totalorder %s164, %s165
    %p174 = scmp.eq.s32.totalorder %s28, 0
    %p175 = por %p173, %p174
    %p176 = scmp.ne.s32.totalorder %s164, %s165
    %p177 = scmp.eq.s32.totalorder %s29, 1
    %p178 = por %p176, %p177
    %p180 = scmp.ne.s32.totalorder %s165, %s179
    %p181 = scmp.eq.s32.totalorder %s29, 0
    %p182 = por %p180, %p181
    %s184 = sadd.s32 %s183, 1
    %p187 = scmp.eq.s32.totalorder %s23, 1
    %p188 = scmp.ne.s32.totalorder %s183, %s185
    %p189 = scmp.eq.s32.totalorder %s23, 0
    %p190 = por %p188, %p189
    %p191 = scmp.ne.s32.totalorder %s183, %s185
    %p192 = scmp.eq.s32.totalorder %s28, 1
    %p193 = por %p191, %p192
    %p194 = scmp.ne.s32.totalorder %s185, %s186
    %p195 = scmp.eq.s32.totalorder %s28, 0
    %p196 = por %p194, %p195
    %p197 = scmp.ne.s32.totalorder %s185, %s186
    %p198 = scmp.eq.s32.totalorder %s29, 1
    %p199 = por %p197, %p198
    %p201 = scmp.ne.s32.totalorder %s186, %s200
    %p202 = scmp.eq.s32.totalorder %s29, 0
    %p203 = por %p201, %p202
    %s205 = sadd.s32 %s204, 1
    %p208 = scmp.eq.s32.totalorder %s23, 1
    %p209 = scmp.ne.s32.totalorder %s204, %s206
    %p210 = scmp.eq.s32.totalorder %s23, 0
    %p211 = por %p209, %p210
    %p212 = scmp.ne.s32.totalorder %s204, %s206
    %p213 = scmp.eq.s32.totalorder %s28, 1
    %p214 = por %p212, %p213
    %p215 = scmp.ne.s32.totalorder %s206, %s207
    %p216 = scmp.eq.s32.totalorder %s28, 0
    %p217 = por %p215, %p216
    %p218 = scmp.ne.s32.totalorder %s206, %s207
    %p219 = scmp.eq.s32.totalorder %s29, 1
    %p220 = por %p218, %p219
    %p222 = scmp.ne.s32.totalorder %s207, %s221
    %p223 = scmp.eq.s32.totalorder %s29, 0
    %p224 = por %p222, %p223
    %s226 = sadd.s32 %s225, 1
    %p229 = scmp.eq.s32.totalorder %s23, 1
    %p230 = scmp.ne.s32.totalorder %s225, %s227
    %p231 = scmp.eq.s32.totalorder %s23, 0
    %p232 = por %p230, %p231
    %p233 = scmp.ne.s32.totalorder %s225, %s227
    %p234 = scmp.eq.s32.totalorder %s28, 1
    %p235 = por %p233, %p234
    %p236 = scmp.ne.s32.totalorder %s227, %s228
    %p237 = scmp.eq.s32.totalorder %s28, 0
    %p238 = por %p236, %p237
    %p239 = scmp.ne.s32.totalorder %s227, %s228
    %p240 = scmp.eq.s32.totalorder %s29, 1
    %p241 = por %p239, %p240
    %p243 = scmp.ne.s32.totalorder %s228, %s242
    %p244 = scmp.eq.s32.totalorder %s29, 0
    %p245 = por %p243, %p244
    %s247 = sadd.s32 %s246, 1
    %p250 = scmp.eq.s32.totalorder %s23, 1
    %p251 = scmp.ne.s32.totalorder %s246, %s248
    %p252 = scmp.eq.s32.totalorder %s23, 0
    %p253 = por %p251, %p252
    %p254 = scmp.ne.s32.totalorder %s246, %s248
    %p255 = scmp.eq.s32.totalorder %s28, 1
    %p256 = por %p254, %p255
    %p257 = scmp.ne.s32.totalorder %s248, %s249
    %p258 = scmp.eq.s32.totalorder %s28, 0
    %p259 = por %p257, %p258
    %p260 = scmp.ne.s32.totalorder %s248, %s249
    %p261 = scmp.eq.s32.totalorder %s29, 1
    %p262 = por %p260, %p261
    %p264 = scmp.ne.s32.totalorder %s249, %s263
    %p265 = scmp.eq.s32.totalorder %s29, 0
    %p266 = por %p264, %p265
    %s268 = sadd.s32 %s267, 1
    %p271 = scmp.eq.s32.totalorder %s23, 1
    %p272 = scmp.ne.s32.totalorder %s267, %s269
    %p273 = scmp.eq.s32.totalorder %s23, 0
    %p274 = por %p272, %p273
    %p275 = scmp.ne.s32.totalorder %s267, %s269
    %p276 = scmp.eq.s32.totalorder %s28, 1
    %p277 = por %p275, %p276
    %p278 = scmp.ne.s32.totalorder %s269, %s270
    %p279 = scmp.eq.s32.totalorder %s28, 0
    %p280 = por %p278, %p279
    %p281 = scmp.ne.s32.totalorder %s269, %s270
    %p282 = scmp.eq.s32.totalorder %s29, 1
    %p283 = por %p281, %p282
    %p285 = scmp.ne.s32.totalorder %s270, %s284
    %p286 = scmp.eq.s32.totalorder %s29, 0
    %p287 = por %p285, %p286
    %s289 = sadd.s32 %s288, 1
    %p292 = scmp.eq.s32.totalorder %s23, 1
    %p293 = scmp.ne.s32.totalorder %s288, %s290
    %p294 = scmp.eq.s32.totalorder %s23, 0
    %p295 = por %p293, %p294
    %p296 = scmp.ne.s32.totalorder %s288, %s290
    %p297 = scmp.eq.s32.totalorder %s28, 1
    %p298 = por %p296, %p297
    %p299 = scmp.ne.s32.totalorder %s290, %s291
    %p300 = scmp.eq.s32.totalorder %s28, 0
    %p301 = por %p299, %p300
    %p302 = scmp.ne.s32.totalorder %s290, %s291
    %p303 = scmp.eq.s32.totalorder %s29, 1
    %p304 = por %p302, %p303
    %p306 = scmp.ne.s32.totalorder %s291, %s305
    %p307 = scmp.eq.s32.totalorder %s29, 0
    %p308 = por %p306, %p307
    %s310 = sadd.s32 %s309, 1
    %p313 = scmp.eq.s32.totalorder %s23, 1
    %p314 = scmp.ne.s32.totalorder %s309, %s311
    %p315 = scmp.eq.s32.totalorder %s23, 0
    %p316 = por %p314, %p315
    %p317 = scmp.ne.s32.totalorder %s309, %s311
    %p318 = scmp.eq.s32.totalorder %s28, 1
    %p319 = por %p317, %p318
    %p320 = scmp.ne.s32.totalorder %s311, %s312
    %p321 = scmp.eq.s32.totalorder %s28, 0
    %p322 = por %p320, %p321
    %p323 = scmp.ne.s32.totalorder %s311, %s312
    %p324 = scmp.eq.s32.totalorder %s29, 1
    %p325 = por %p323, %p324
    %p327 = scmp.ne.s32.totalorder %s312, %s326
    %p328 = scmp.eq.s32.totalorder %s29, 0
    %p329 = por %p327, %p328
    %s331 = sadd.s32 %s330, 1
    %p334 = scmp.eq.s32.totalorder %s23, 1
    %p335 = scmp.ne.s32.totalorder %s330, %s332
    %p336 = scmp.eq.s32.totalorder %s23, 0
    %p337 = por %p335, %p336
    %p338 = scmp.ne.s32.totalorder %s330, %s332
    %p339 = scmp.eq.s32.totalorder %s28, 1
    %p340 = por %p338, %p339
    %p341 = scmp.ne.s32.totalorder %s332, %s333
    %p342 = scmp.eq.s32.totalorder %s28, 0
    %p343 = por %p341, %p342
    %p344 = scmp.ne.s32.totalorder %s332, %s333
    %p345 = scmp.eq.s32.totalorder %s29, 1
    %p346 = por %p344, %p345
    %p348 = scmp.ne.s32.totalorder %s333, %s347
    %p349 = scmp.eq.s32.totalorder %s29, 0
    %p350 = por %p348, %p349
    %s352 = sadd.s32 %s351, 1
    %p355 = scmp.eq.s32.totalorder %s23, 1
    %p356 = scmp.ne.s32.totalorder %s351, %s353
    %p357 = scmp.eq.s32.totalorder %s23, 0
    %p358 = por %p356, %p357
    %p359 = scmp.ne.s32.totalorder %s351, %s353
    %p360 = scmp.eq.s32.totalorder %s28, 1
    %p361 = por %p359, %p360
    %p362 = scmp.ne.s32.totalorder %s353, %s354
    %p363 = scmp.eq.s32.totalorder %s28, 0
    %p364 = por %p362, %p363
    %p365 = scmp.ne.s32.totalorder %s353, %s354
    %p366 = scmp.eq.s32.totalorder %s29, 1
    %p367 = por %p365, %p366
    %p369 = scmp.ne.s32.totalorder %s354, %s368
    %p370 = scmp.eq.s32.totalorder %s29, 0
    %p371 = por %p369, %p370
    %s373 = sadd.s32 %s372, 1
    %p376 = scmp.eq.s32.totalorder %s23, 1
    %p377 = scmp.ne.s32.totalorder %s372, %s374
    %p378 = scmp.eq.s32.totalorder %s23, 0
    %p379 = por %p377, %p378
    %p380 = scmp.ne.s32.totalorder %s372, %s374
    %p381 = scmp.eq.s32.totalorder %s28, 1
    %p382 = por %p380, %p381
    %p383 = scmp.ne.s32.totalorder %s374, %s375
    %p384 = scmp.eq.s32.totalorder %s28, 0
    %p385 = por %p383, %p384
    %p386 = scmp.ne.s32.totalorder %s374, %s375
    %p387 = scmp.eq.s32.totalorder %s29, 1
    %p388 = por %p386, %p387
    %p390 = scmp.ne.s32.totalorder %s375, %s389
    %p391 = scmp.eq.s32.totalorder %s29, 0
    %p392 = por %p390, %p391
    %s393 = ssub.s32 %s23, %s30
    %p394 = scmp.eq.s32.totalorder %s393, 0
    %s396 = sadd.s32 %s395, 1
    %s397 = scalar_select %p394, %s395, %s396
    %p400 = pneg %p394
    %p401 = scmp.eq.s32.totalorder %s23, 1
    %p402 = por %p400, %p401
    %p403 = scmp.ne.s32.totalorder %s395, %s398
    %p404 = scmp.eq.s32.totalorder %s23, 0
    %p405 = por %p403, %p404
    %p406 = scmp.ne.s32.totalorder %s395, %s398
    %p407 = scmp.eq.s32.totalorder %s28, 1
    %p408 = por %p406, %p407
    %p409 = scmp.ne.s32.totalorder %s398, %s399
    %p410 = scmp.eq.s32.totalorder %s28, 0
    %p411 = por %p409, %p410
    %p412 = scmp.ne.s32.totalorder %s398, %s399
    %p413 = scmp.eq.s32.totalorder %s29, 1
    %p414 = por %p412, %p413
    %p416 = scmp.ne.s32.totalorder %s399, %s415
    %p417 = scmp.eq.s32.totalorder %s29, 0
    %p418 = por %p416, %p417
    %p419 = scmp.le.s32.totalorder 1, %s23
    %p420 = scmp.lt.s32.totalorder %s23, 3
    %p421 = pnand %p419, %p420
    %p422 = pneg %p421
    // Predicated region
    $region9: #{encoder_apply.1} parent=5 // pred_check
      _
    $region10: #{encoder_apply.1} parent=5 // pred_check_branch
      %424 = sbr.rel (%p421) target = $region12
    $region11: #{encoder_apply.1} parent=5 // pred_region
      %s425 = ssub.s32 %s23, 1
      // Predicated region
      $region13: #{encoder_apply.1} parent=11 // pred_check
        %p426 = pneg %p70
      $region14: #{encoder_apply.1} parent=11 // pred_check_branch
        %428 = sbr.rel (%p426) target = $region16
      $region15: #{encoder_apply.1} parent=11 // pred_region
        _
      $region16: #{encoder_apply.1} parent=11 // pred_fallthru
        _
      // Predicated region
      $region17: #{encoder_apply.1} parent=11 // pred_check
        %p429 = pneg %p91
      $region18: #{encoder_apply.1} parent=11 // pred_check_branch
        %431 = sbr.rel (%p429) target = $region20
      $region19: #{encoder_apply.1} parent=11 // pred_region
        _
      $region20: #{encoder_apply.1} parent=11 // pred_fallthru
        _
      // Predicated region
      $region21: #{encoder_apply.1} parent=11 // pred_check
        %p432 = pneg %p112
      $region22: #{encoder_apply.1} parent=11 // pred_check_branch
        %434 = sbr.rel (%p432) target = $region24
      $region23: #{encoder_apply.1} parent=11 // pred_region
        _
      $region24: #{encoder_apply.1} parent=11 // pred_fallthru
        _
      // Predicated region
      $region25: #{encoder_apply.1} parent=11 // pred_check
        %p435 = pneg %p133
      $region26: #{encoder_apply.1} parent=11 // pred_check_branch
        %437 = sbr.rel (%p435) target = $region28
      $region27: #{encoder_apply.1} parent=11 // pred_region
        _
      $region28: #{encoder_apply.1} parent=11 // pred_fallthru
        _
      // Predicated region
      $region29: #{encoder_apply.1} parent=11 // pred_check
        %p438 = pneg %p154
      $region30: #{encoder_apply.1} parent=11 // pred_check_branch
        %440 = sbr.rel (%p438) target = $region32
      $region31: #{encoder_apply.1} parent=11 // pred_region
        _
      $region32: #{encoder_apply.1} parent=11 // pred_fallthru
        _
      // Predicated region
      $region33: #{encoder_apply.1} parent=11 // pred_check
        %p441 = pneg %p175
      $region34: #{encoder_apply.1} parent=11 // pred_check_branch
        %443 = sbr.rel (%p441) target = $region36
      $region35: #{encoder_apply.1} parent=11 // pred_region
        _
      $region36: #{encoder_apply.1} parent=11 // pred_fallthru
        _
      // Predicated region
      $region37: #{encoder_apply.1} parent=11 // pred_check
        %p444 = pneg %p196
      $region38: #{encoder_apply.1} parent=11 // pred_check_branch
        %446 = sbr.rel (%p444) target = $region40
      $region39: #{encoder_apply.1} parent=11 // pred_region
        _
      $region40: #{encoder_apply.1} parent=11 // pred_fallthru
        _
      // Predicated region
      $region41: #{encoder_apply.1} parent=11 // pred_check
        %p447 = pneg %p217
      $region42: #{encoder_apply.1} parent=11 // pred_check_branch
        %449 = sbr.rel (%p447) target = $region44
      $region43: #{encoder_apply.1} parent=11 // pred_region
        _
      $region44: #{encoder_apply.1} parent=11 // pred_fallthru
        _
      // Predicated region
      $region45: #{encoder_apply.1} parent=11 // pred_check
        %p450 = pneg %p238
      $region46: #{encoder_apply.1} parent=11 // pred_check_branch
        %452 = sbr.rel (%p450) target = $region48
      $region47: #{encoder_apply.1} parent=11 // pred_region
        _
      $region48: #{encoder_apply.1} parent=11 // pred_fallthru
        _
      // Predicated region
      $region49: #{encoder_apply.1} parent=11 // pred_check
        %p453 = pneg %p259
      $region50: #{encoder_apply.1} parent=11 // pred_check_branch
        %455 = sbr.rel (%p453) target = $region52
      $region51: #{encoder_apply.1} parent=11 // pred_region
        _
      $region52: #{encoder_apply.1} parent=11 // pred_fallthru
        _
      // Predicated region
      $region53: #{encoder_apply.1} parent=11 // pred_check
        %p456 = pneg %p280
      $region54: #{encoder_apply.1} parent=11 // pred_check_branch
        %458 = sbr.rel (%p456) target = $region56
      $region55: #{encoder_apply.1} parent=11 // pred_region
        _
      $region56: #{encoder_apply.1} parent=11 // pred_fallthru
        _
      // Predicated region
      $region57: #{encoder_apply.1} parent=11 // pred_check
        %p459 = pneg %p301
      $region58: #{encoder_apply.1} parent=11 // pred_check_branch
        %461 = sbr.rel (%p459) target = $region60
      $region59: #{encoder_apply.1} parent=11 // pred_region
        _
      $region60: #{encoder_apply.1} parent=11 // pred_fallthru
        _
      // Predicated region
      $region61: #{encoder_apply.1} parent=11 // pred_check
        %p462 = pneg %p322
      $region62: #{encoder_apply.1} parent=11 // pred_check_branch
        %464 = sbr.rel (%p462) target = $region64
      $region63: #{encoder_apply.1} parent=11 // pred_region
        _
      $region64: #{encoder_apply.1} parent=11 // pred_fallthru
        _
      // Predicated region
      $region65: #{encoder_apply.1} parent=11 // pred_check
        %p465 = pneg %p343
      $region66: #{encoder_apply.1} parent=11 // pred_check_branch
        %467 = sbr.rel (%p465) target = $region68
      $region67: #{encoder_apply.1} parent=11 // pred_region
        _
      $region68: #{encoder_apply.1} parent=11 // pred_fallthru
        _
      // Predicated region
      $region69: #{encoder_apply.1} parent=11 // pred_check
        %p468 = pneg %p364
      $region70: #{encoder_apply.1} parent=11 // pred_check_branch
        %470 = sbr.rel (%p468) target = $region72
      $region71: #{encoder_apply.1} parent=11 // pred_region
        _
      $region72: #{encoder_apply.1} parent=11 // pred_fallthru
        _
      // Predicated region
      $region73: #{encoder_apply.1} parent=11 // pred_check
        %p471 = pneg %p385
      $region74: #{encoder_apply.1} parent=11 // pred_check_branch
        %473 = sbr.rel (%p471) target = $region76
      $region75: #{encoder_apply.1} parent=11 // pred_region
        _
      $region76: #{encoder_apply.1} parent=11 // pred_fallthru
        _
    $region12: #{encoder_apply.1} parent=5 // pred_fallthru
      _
    %p474 = scmp.lt.s32.totalorder %s23, 2
    // Predicated region
    $region77: #{encoder_apply.1} parent=5 // pred_check
      %p475 = pneg %p474
    $region78: #{encoder_apply.1} parent=5 // pred_check_branch
      %477 = sbr.rel (%p475) target = $region80
    $region79: #{encoder_apply.1} parent=5 // pred_region
      // Predicated region
      $region81: #{encoder_apply.1} parent=79 // pred_check
        %p478 = pneg %p43
      $region82: #{encoder_apply.1} parent=79 // pred_check_branch
        %480 = sbr.rel (%p478) target = $region84
      $region83: #{encoder_apply.1} parent=79 // pred_region
        %s481 = smul.u32 16, %s23
        %p482 = scmp.lt.s32.totalorder %s481, 31
        %s483 = scalar_select %p482, %s481, 31
        %s484 = smul.addr %s483, 8
        %s485 = scalar_lea.vmem %s0, %s484
        %s486 = smul.u32 16, %s23
      $region84: #{encoder_apply.1} parent=79 // pred_fallthru
        _
    $region80: #{encoder_apply.1} parent=5 // pred_fallthru
      _
    %p487 = scmp.le.s32.totalorder 1, %s23
    %p488 = scmp.lt.s32.totalorder %s23, 3
    %p489 = pnand %p487, %p488
    %p490 = pneg %p489
    // Predicated region
    $region85: #{encoder_apply.1} parent=5 // pred_check
      _
    $region86: #{encoder_apply.1} parent=5 // pred_check_branch
      %492 = sbr.rel (%p489) target = $region88
    $region87: #{encoder_apply.1} parent=5 // pred_region
      %s493 = ssub.s32 %s23, 1
      %s494 = smul.u32 16, %s28
      %p495 = scmp.lt.s32.totalorder %s494, 31
      %s496 = scalar_select %p495, %s494, 31
      %s497 = smul.addr %s496, 8
      %s498 = scalar_lea.vmem %s0, %s497
      %p499 = pneg %p49
      %p500 = pneg %p46
      %p501 = pneg %p70
      %p502 = pneg %p67
      %p503 = pneg %p91
      %p504 = pneg %p88
      %p505 = pneg %p112
      %p506 = pneg %p109
      %p507 = pneg %p133
      %p508 = pneg %p130
      %p509 = pneg %p154
      %p510 = pneg %p151
      %p511 = pneg %p175
      %p512 = pneg %p172
      %p513 = pneg %p196
      %p514 = pneg %p193
      %p515 = pneg %p217
      %p516 = pneg %p214
      %p517 = pneg %p238
      %p518 = pneg %p235
      %p519 = pneg %p259
      %p520 = pneg %p256
      %p521 = pneg %p280
      %p522 = pneg %p277
      %p523 = pneg %p301
      %p524 = pneg %p298
      %p525 = pneg %p322
      %p526 = pneg %p319
      %p527 = pneg %p343
      %p528 = pneg %p340
      %p529 = pneg %p364
      %p530 = pneg %p361
      %p531 = pneg %p385
      %p532 = pneg %p382
      %p533 = pneg %p411
      %p534 = pneg %p408
      %p535 = scmp.lt.s32.totalorder %s28, 1
      %s536 = scalar_select %p535, %s28, 1
      %s537 = smul.addr %s536, 8
      %s538 = scalar_lea.vmem %s17, %s537
      %s539 = smul.u32 16, %s28
      %p540 = scmp.lt.s32.totalorder %s539, 31
      %s541 = scalar_select %p540, %s539, 31
      %s542 = smul.addr %s541, 8
      %s543 = scalar_lea.vmem %s0, %s542
      %s544 = smul.u32 16, %s28
      %p545 = scmp.lt.s32.totalorder %s28, 1
      %s546 = scalar_select %p545, %s28, 1
      %s547 = smul.addr %s546, 8
      %s548 = scalar_lea.vmem %s17, %s547
      %v549 = vld [vmem:[%s543] sm:$0xff]
      %v550 = vld [vmem:[%s543 + $0x8] sm:$0xff]
      %v551 = vld [vmem:[%s543 + $0x10] sm:$0xff]
      %v552 = vld [vmem:[%s543 + $0x18] sm:$0xff]
      %v553 = vld [vmem:[%s543 + $0x20] sm:$0xff]
      %v554 = vld [vmem:[%s543 + $0x28] sm:$0xff]
      %v555 = vld [vmem:[%s543 + $0x30] sm:$0xff]
      %v556 = vld [vmem:[%s543 + $0x38] sm:$0xff]
      %v557 = vld [vmem:[%s543 + $0x40] sm:$0xff]
      %v558 = vld [vmem:[%s543 + $0x48] sm:$0xff]
      %v559 = vld [vmem:[%s543 + $0x50] sm:$0xff]
      %v560 = vld [vmem:[%s543 + $0x58] sm:$0xff]
      %v561 = vld [vmem:[%s543 + $0x60] sm:$0xff]
      %v562 = vld [vmem:[%s543 + $0x68] sm:$0xff]
      %v563 = vld [vmem:[%s543 + $0x70] sm:$0xff]
      %v564 = vld [vmem:[%s543 + $0x78] sm:$0xff]
      %v565 = vld [vmem:[%s1] sm:$0xf]
      %vm566 = vcmask 31744
      %v568 = vsel %vm566, %v549, 0
      %v571 = vsel %vm566, %v550, 0
      %v574 = vsel %vm566, %v551, 0
      %v577 = vsel %vm566, %v552, 0
      %v580 = vsel %vm566, %v553, 0
      %v583 = vsel %vm566, %v554, 0
      %v586 = vsel %vm566, %v555, 0
      %v589 = vsel %vm566, %v556, 0
      %v592 = vsel %vm566, %v557, 0
      %v595 = vsel %vm566, %v558, 0
      %v598 = vsel %vm566, %v559, 0
      %v601 = vsel %vm566, %v560, 0
      %v604 = vsel %vm566, %v561, 0
      %v607 = vsel %vm566, %v562, 0
      %v610 = vsel %vm566, %v563, 0
      %v613 = vsel %vm566, %v564, 0
      %vm615 = vcmask 1043456
      %v617 = vsel %vm615, %v565, 0
      %619 = vmatprep.subr.mxu0 0.0
      %620 = vmatpush1.msra.mxu0 %v617
      %621 = vmatprep.subr.mxu0 0.0
      %622 = vmatpush1.msra.mxu0 0.0
      %623 = vmatprep.subr.mxu0 0.0
      %624 = vmatpush1.msra.mxu0 0.0
      %625 = vmatprep.subr.mxu0 0.0
      %626 = vmatpush1.msra.mxu0 0.0
      %627 = vmatprep.subr.mxu0 0.0
      %628 = vmatpush1.msra.mxu0 0.0
      %629 = vmatprep.subr.mxu0 0.0
      %630 = vmatpush1.msra.mxu0 0.0
      %631 = vmatprep.subr.mxu0 0.0
      %632 = vmatpush1.msra.mxu0 0.0
      %633 = vmatprep.subr.mxu0 0.0
      %634 = vmatpush1.msra.mxu0 0.0
      %635 = vmatprep.subr.mxu0 0.0
      %636 = vmatpush1.msra.mxu0 0.0
      %637 = vmatprep.subr.mxu0 0.0
      %638 = vmatpush1.msra.mxu0 0.0
      %639 = vmatprep.subr.mxu0 0.0
      %640 = vmatpush1.msra.mxu0 0.0
      %641 = vmatprep.subr.mxu0 0.0
      %642 = vmatpush1.msra.mxu0 0.0
      %643 = vmatprep.subr.mxu0 0.0
      %644 = vmatpush1.msra.mxu0 0.0
      %645 = vmatprep.subr.mxu0 0.0
      %646 = vmatpush1.msra.mxu0 0.0
      %647 = vmatprep.subr.mxu0 0.0
      %648 = vmatpush1.msra.mxu0 0.0
      %649 = vmatprep.subr.mxu0 0.0
      %650 = vmatpush1.msra.mxu0 0.0
      %651 = vmatprep.subr.mxu0 0.0
      %652 = vmatpush1.msra.mxu0 0.0
      %653 = vmatprep.subr.mxu0 0.0
      %654 = vmatpush1.msra.mxu0 0.0
      %655 = vmatprep.subr.mxu0 0.0
      %656 = vmatpush1.msra.mxu0 0.0
      %657 = vmatprep.subr.mxu0 0.0
      %658 = vmatpush1.msra.mxu0 0.0
      %659 = vmatprep.subr.mxu0 0.0
      %660 = vmatpush1.msra.mxu0 0.0
      %661 = vmatprep.subr.mxu0 0.0
      %662 = vmatpush1.msra.mxu0 0.0
      %663 = vmatprep.subr.mxu0 0.0
      %664 = vmatpush1.msra.mxu0 0.0
      %665 = vmatprep.subr.mxu0 0.0
      %666 = vmatpush1.msra.mxu0 0.0
      %667 = vmatprep.subr.mxu0 0.0
      %668 = vmatpush1.msra.mxu0 0.0
      %669 = vmatprep.subr.mxu0 0.0
      %670 = vmatpush1.msra.mxu0 0.0
      %671 = vmatprep.subr.mxu0 0.0
      %672 = vmatpush1.msra.mxu0 0.0
      %673 = vmatprep.subr.mxu0 0.0
      %674 = vmatpush1.msra.mxu0 0.0
      %675 = vmatprep.subr.mxu0 0.0
      %676 = vmatpush1.msra.mxu0 0.0
      %677 = vmatprep.subr.mxu0 0.0
      %678 = vmatpush1.msra.mxu0 0.0
      %679 = vmatprep.subr.mxu0 0.0
      %680 = vmatpush1.msra.mxu0 0.0
      %681 = vmatprep.subr.mxu0 0.0
      %682 = vmatpush1.msra.mxu0 0.0
      %683 = vmatprep.mubr.f32.mxu0 0.0
      %684 = vmatmul.mubr.f32.gmra.mrb[0].mxu0 %v568
      %v685 = vpop.f32.mrb[0].mxu0
      %v686 = vadd.f32 0.0, %v685
      %v687 = vpop.f32.mrb[0].mxu0
      %688 = vmatprep.mubr.f32.mxu0 0.0
      %689 = vmatmul.mubr.f32.gmra.mrb[0].mxu0 %v571
      %v690 = vpop.f32.mrb[0].mxu0
      %v691 = vadd.f32 0.0, %v690
      %v692 = vpop.f32.mrb[0].mxu0
      %693 = vmatprep.mubr.f32.mxu0 0.0
      %694 = vmatmul.mubr.f32.gmra.mrb[0].mxu0 %v574
      %v695 = vpop.f32.mrb[0].mxu0
      %v696 = vadd.f32 0.0, %v695
      %v697 = vpop.f32.mrb[0].mxu0
      %698 = vmatprep.mubr.f32.mxu0 0.0
      %699 = vmatmul.mubr.f32.gmra.mrb[0].mxu0 %v577
      %v700 = vpop.f32.mrb[0].mxu0
      %v701 = vadd.f32 0.0, %v700
      %v702 = vpop.f32.mrb[0].mxu0
      %703 = vmatprep.mubr.f32.mxu0 0.0
      %704 = vmatmul.mubr.f32.gmra.mrb[0].mxu0 %v580
      %v705 = vpop.f32.mrb[0].mxu0
      %v706 = vadd.f32 0.0, %v705
      %v707 = vpop.f32.mrb[0].mxu0
      %708 = vmatprep.mubr.f32.mxu0 0.0
      %709 = vmatmul.mubr.f32.gmra.mrb[0].mxu0 %v583
      %v710 = vpop.f32.mrb[0].mxu0
      %v711 = vadd.f32 0.0, %v710
      %v712 = vpop.f32.mrb[0].mxu0
      %713 = vmatprep.mubr.f32.mxu0 0.0
      %714 = vmatmul.mubr.f32.gmra.mrb[0].mxu0 %v586
      %v715 = vpop.f32.mrb[0].mxu0
      %v716 = vadd.f32 0.0, %v715
      %v717 = vpop.f32.mrb[0].mxu0
      %718 = vmatprep.mubr.f32.mxu0 0.0
      %719 = vmatmul.mubr.f32.gmra.mrb[0].mxu0 %v589
      %v720 = vpop.f32.mrb[0].mxu0
      %v721 = vadd.f32 0.0, %v720
      %v722 = vpop.f32.mrb[0].mxu0
      %723 = vmatprep.mubr.f32.mxu0 0.0
      %724 = vmatmul.mubr.f32.gmra.mrb[0].mxu0 %v592
      %v725 = vpop.f32.mrb[0].mxu0
      %v726 = vadd.f32 0.0, %v725
      %v727 = vpop.f32.mrb[0].mxu0
      %728 = vmatprep.mubr.f32.mxu0 0.0
      %729 = vmatmul.mubr.f32.gmra.mrb[0].mxu0 %v595
      %v730 = vpop.f32.mrb[0].mxu0
      %v731 = vadd.f32 0.0, %v730
      %v732 = vpop.f32.mrb[0].mxu0
      %733 = vmatprep.mubr.f32.mxu0 0.0
      %734 = vmatmul.mubr.f32.gmra.mrb[0].mxu0 %v598
      %v735 = vpop.f32.mrb[0].mxu0
      %v736 = vadd.f32 0.0, %v735
      %v737 = vpop.f32.mrb[0].mxu0
      %738 = vmatprep.mubr.f32.mxu0 0.0
      %739 = vmatmul.mubr.f32.gmra.mrb[0].mxu0 %v601
      %v740 = vpop.f32.mrb[0].mxu0
      %v741 = vadd.f32 0.0, %v740
      %v742 = vpop.f32.mrb[0].mxu0
      %743 = vmatprep.mubr.f32.mxu0 0.0
      %744 = vmatmul.mubr.f32.gmra.mrb[0].mxu0 %v604
      %v745 = vpop.f32.mrb[0].mxu0
      %v746 = vadd.f32 0.0, %v745
      %v747 = vpop.f32.mrb[0].mxu0
      %748 = vmatprep.mubr.f32.mxu0 0.0
      %749 = vmatmul.mubr.f32.gmra.mrb[0].mxu0 %v607
      %v750 = vpop.f32.mrb[0].mxu0
      %v751 = vadd.f32 0.0, %v750
      %v752 = vpop.f32.mrb[0].mxu0
      %753 = vmatprep.mubr.f32.mxu0 0.0
      %754 = vmatmul.mubr.f32.gmra.mrb[0].mxu0 %v610
      %v755 = vpop.f32.mrb[0].mxu0
      %v756 = vadd.f32 0.0, %v755
      %v757 = vpop.f32.mrb[0].mxu0
      %758 = vmatprep.mubr.f32.mxu0 0.0
      %759 = vmatmul.mubr.f32.gmra.mrb[0].mxu0 %v613
      %v760 = vpop.f32.mrb[0].mxu0
      %v761 = vadd.f32 0.0, %v760
      %v762 = vpop.f32.mrb[0].mxu0
      %763 = vdwg.mxu0
      %s764 = scalar_lea.vmem %s1, 4
      %v765 = vld [vmem:[%s764] sm:$0xf]
      %s766 = scalar_lea.vmem %s1, 8
      %v767 = vld [vmem:[%s766] sm:$0xf]
      %v769 = vsel %vm615, %v767, 0
      %771 = vmatprep.subr.mxu0 0.0
      %772 = vmatpush1.msra.mxu0 %v769
      %773 = vmatprep.subr.mxu0 0.0
      %774 = vmatpush1.msra.mxu0 0.0
      %775 = vmatprep.subr.mxu0 0.0
      %776 = vmatpush1.msra.mxu0 0.0
      %777 = vmatprep.subr.mxu0 0.0
      %778 = vmatpush1.msra.mxu0 0.0
      %779 = vmatprep.subr.mxu0 0.0
      %780 = vmatpush1.msra.mxu0 0.0
      %781 = vmatprep.subr.mxu0 0.0
      %782 = vmatpush1.msra.mxu0 0.0
      %783 = vmatprep.subr.mxu0 0.0
      %784 = vmatpush1.msra.mxu0 0.0
      %785 = vmatprep.subr.mxu0 0.0
      %786 = vmatpush1.msra.mxu0 0.0
      %787 = vmatprep.subr.mxu0 0.0
      %788 = vmatpush1.msra.mxu0 0.0
      %789 = vmatprep.subr.mxu0 0.0
      %790 = vmatpush1.msra.mxu0 0.0
      %791 = vmatprep.subr.mxu0 0.0
      %792 = vmatpush1.msra.mxu0 0.0
      %793 = vmatprep.subr.mxu0 0.0
      %794 = vmatpush1.msra.mxu0 0.0
      %795 = vmatprep.subr.mxu0 0.0
      %796 = vmatpush1.msra.mxu0 0.0
      %797 = vmatprep.subr.mxu0 0.0
      %798 = vmatpush1.msra.mxu0 0.0
      %799 = vmatprep.subr.mxu0 0.0
      %800 = vmatpush1.msra.mxu0 0.0
      %801 = vmatprep.subr.mxu0 0.0
      %802 = vmatpush1.msra.mxu0 0.0
      %803 = vmatprep.subr.mxu0 0.0
      %804 = vmatpush1.msra.mxu0 0.0
      %805 = vmatprep.subr.mxu0 0.0
      %806 = vmatpush1.msra.mxu0 0.0
      %807 = vmatprep.subr.mxu0 0.0
      %808 = vmatpush1.msra.mxu0 0.0
      %809 = vmatprep.subr.mxu0 0.0
      %810 = vmatpush1.msra.mxu0 0.0
      %811 = vmatprep.subr.mxu0 0.0
      %812 = vmatpush1.msra.mxu0 0.0
      %813 = vmatprep.subr.mxu0 0.0
      %814 = vmatpush1.msra.mxu0 0.0
      %815 = vmatprep.subr.mxu0 0.0
      %816 = vmatpush1.msra.mxu0 0.0
      %817 = vmatprep.subr.mxu0 0.0
      %818 = vmatpush1.msra.mxu0 0.0
      %819 = vmatprep.subr.mxu0 0.0
      %820 = vmatpush1.msra.mxu0 0.0
      %821 = vmatprep.subr.mxu0 0.0
      %822 = vmatpush1.msra.mxu0 0.0
      %823 = vmatprep.subr.mxu0 0.0
      %824 = vmatpush1.msra.mxu0 0.0
      %825 = vmatprep.subr.mxu0 0.0
      %826 = vmatpush1.msra.mxu0 0.0
      %827 = vmatprep.subr.mxu0 0.0
      %828 = vmatpush1.msra.mxu0 0.0
      %829 = vmatprep.subr.mxu0 0.0
      %830 = vmatpush1.msra.mxu0 0.0
      %831 = vmatprep.subr.mxu0 0.0
      %832 = vmatpush1.msra.mxu0 0.0
      %833 = vmatprep.subr.mxu0 0.0
      %834 = vmatpush1.msra.mxu0 0.0
      %835 = vmatprep.mubr.f32.mxu0 0.0
      %836 = vmatmul.mubr.f32.gmra.mrb[0].mxu0 %v568
      %v837 = vpop.f32.mrb[0].mxu0
      %v838 = vadd.f32 0.0, %v837
      %v839 = vpop.f32.mrb[0].mxu0
      %840 = vmatprep.mubr.f32.mxu0 0.0
      %841 = vmatmul.mubr.f32.gmra.mrb[0].mxu0 %v571
      %v842 = vpop.f32.mrb[0].mxu0
      %v843 = vadd.f32 0.0, %v842
      %v844 = vpop.f32.mrb[0].mxu0
      %845 = vmatprep.mubr.f32.mxu0 0.0
      %846 = vmatmul.mubr.f32.gmra.mrb[0].mxu0 %v574
      %v847 = vpop.f32.mrb[0].mxu0
      %v848 = vadd.f32 0.0, %v847
      %v849 = vpop.f32.mrb[0].mxu0
      %850 = vmatprep.mubr.f32.mxu0 0.0
      %851 = vmatmul.mubr.f32.gmra.mrb[0].mxu0 %v577
      %v852 = vpop.f32.mrb[0].mxu0
      %v853 = vadd.f32 0.0, %v852
      %v854 = vpop.f32.mrb[0].mxu0
      %855 = vmatprep.mubr.f32.mxu0 0.0
      %856 = vmatmul.mubr.f32.gmra.mrb[0].mxu0 %v580
      %v857 = vpop.f32.mrb[0].mxu0
      %v858 = vadd.f32 0.0, %v857
      %v859 = vpop.f32.mrb[0].mxu0
      %860 = vmatprep.mubr.f32.mxu0 0.0
      %861 = vmatmul.mubr.f32.gmra.mrb[0].mxu0 %v583
      %v862 = vpop.f32.mrb[0].mxu0
      %v863 = vadd.f32 0.0, %v862
      %v864 = vpop.f32.mrb[0].mxu0
      %865 = vmatprep.mubr.f32.mxu0 0.0
      %866 = vmatmul.mubr.f32.gmra.mrb[0].mxu0 %v586
      %v867 = vpop.f32.mrb[0].mxu0
      %v868 = vadd.f32 0.0, %v867
      %v869 = vpop.f32.mrb[0].mxu0
      %870 = vmatprep.mubr.f32.mxu0 0.0
      %871 = vmatmul.mubr.f32.gmra.mrb[0].mxu0 %v589
      %v872 = vpop.f32.mrb[0].mxu0
      %v873 = vadd.f32 0.0, %v872
      %v874 = vpop.f32.mrb[0].mxu0
      %875 = vmatprep.mubr.f32.mxu0 0.0
      %876 = vmatmul.mubr.f32.gmra.mrb[0].mxu0 %v592
      %v877 = vpop.f32.mrb[0].mxu0
      %v878 = vadd.f32 0.0, %v877
      %v879 = vpop.f32.mrb[0].mxu0
      %880 = vmatprep.mubr.f32.mxu0 0.0
      %881 = vmatmul.mubr.f32.gmra.mrb[0].mxu0 %v595
      %v882 = vpop.f32.mrb[0].mxu0
      %v883 = vadd.f32 0.0, %v882
      %v884 = vpop.f32.mrb[0].mxu0
      %885 = vmatprep.mubr.f32.mxu0 0.0
      %886 = vmatmul.mubr.f32.gmra.mrb[0].mxu0 %v598
      %v887 = vpop.f32.mrb[0].mxu0
      %v888 = vadd.f32 0.0, %v887
      %v889 = vpop.f32.mrb[0].mxu0
      %890 = vmatprep.mubr.f32.mxu0 0.0
      %891 = vmatmul.mubr.f32.gmra.mrb[0].mxu0 %v601
      %v892 = vpop.f32.mrb[0].mxu0
      %v893 = vadd.f32 0.0, %v892
      %v894 = vpop.f32.mrb[0].mxu0
      %895 = vmatprep.mubr.f32.mxu0 0.0
      %896 = vmatmul.mubr.f32.gmra.mrb[0].mxu0 %v604
      %v897 = vpop.f32.mrb[0].mxu0
      %v898 = vadd.f32 0.0, %v897
      %v899 = vpop.f32.mrb[0].mxu0
      %900 = vmatprep.mubr.f32.mxu0 0.0
      %901 = vmatmul.mubr.f32.gmra.mrb[0].mxu0 %v607
      %v902 = vpop.f32.mrb[0].mxu0
      %v903 = vadd.f32 0.0, %v902
      %v904 = vpop.f32.mrb[0].mxu0
      %905 = vmatprep.mubr.f32.mxu0 0.0
      %906 = vmatmul.mubr.f32.gmra.mrb[0].mxu0 %v610
      %v907 = vpop.f32.mrb[0].mxu0
      %v908 = vadd.f32 0.0, %v907
      %v909 = vpop.f32.mrb[0].mxu0
      %910 = vmatprep.mubr.f32.mxu0 0.0
      %911 = vmatmul.mubr.f32.gmra.mrb[0].mxu0 %v613
      %v912 = vpop.f32.mrb[0].mxu0
      %v913 = vadd.f32 0.0, %v912
      %v914 = vpop.f32.mrb[0].mxu0
      %915 = vdwg.mxu0
      %v916 = vld [vmem:[%s3] sm:$0xff]
      %v917 = vld [vmem:[%s3 + $0x8] sm:$0xff]
      %v918 = vld [vmem:[%s3 + $0x10] sm:$0xff]
      %v919 = vld [vmem:[%s3 + $0x18] sm:$0xff]
      %v920 = vld [vmem:[%s3 + $0x20] sm:$0xff]
      %v921 = vld [vmem:[%s3 + $0x28] sm:$0xff]
      %v922 = vld [vmem:[%s3 + $0x30] sm:$0xff]
      %v923 = vld [vmem:[%s3 + $0x38] sm:$0xff]
      %v924 = vld [vmem:[%s3 + $0x40] sm:$0xff]
      %v925 = vld [vmem:[%s3 + $0x48] sm:$0xff]
      %v926 = vld [vmem:[%s3 + $0x50] sm:$0xff]
      %v927 = vld [vmem:[%s3 + $0x58] sm:$0xff]
      %v928 = vld [vmem:[%s3 + $0x60] sm:$0xff]
      %v929 = vld [vmem:[%s3 + $0x68] sm:$0xff]
      %v930 = vld [vmem:[%s3 + $0x70] sm:$0xff]
      %v931 = vld [vmem:[%s3 + $0x78] sm:$0xff]
      %s932 = scalar_lea.vmem %s3, 128
      %v933 = vld [vmem:[%s932] sm:$0xff]
      %v934 = vld [vmem:[%s932 + $0x8] sm:$0xff]
      %v935 = vld [vmem:[%s932 + $0x10] sm:$0xff]
      %v936 = vld [vmem:[%s932 + $0x18] sm:$0xff]
      %v937 = vld [vmem:[%s932 + $0x20] sm:$0xff]
      %v938 = vld [vmem:[%s932 + $0x28] sm:$0xff]
      %v939 = vld [vmem:[%s932 + $0x30] sm:$0xff]
      %v940 = vld [vmem:[%s932 + $0x38] sm:$0xff]
      %v941 = vld [vmem:[%s932 + $0x40] sm:$0xff]
      %v942 = vld [vmem:[%s932 + $0x48] sm:$0xff]
      %v943 = vld [vmem:[%s932 + $0x50] sm:$0xff]
      %v944 = vld [vmem:[%s932 + $0x58] sm:$0xff]
      %v945 = vld [vmem:[%s932 + $0x60] sm:$0xff]
      %v946 = vld [vmem:[%s932 + $0x68] sm:$0xff]
      %v947 = vld [vmem:[%s932 + $0x70] sm:$0xff]
      %v948 = vld [vmem:[%s932 + $0x78] sm:$0xff]
      %v949 = vrot.slane %v686, 7
      %v950 = vrot.slane %v691, 7
      %v951 = vrot.slane %v696, 7
      %v952 = vrot.slane %v701, 7
      %v953 = vrot.slane %v706, 7
      %v954 = vrot.slane %v711, 7
      %v955 = vrot.slane %v716, 7
      %v956 = vrot.slane %v721, 7
      %v957 = vrot.slane %v726, 7
      %v958 = vrot.slane %v731, 7
      %v959 = vrot.slane %v736, 7
      %v960 = vrot.slane %v741, 7
      %v961 = vrot.slane %v746, 7
      %v962 = vrot.slane %v751, 7
      %v963 = vrot.slane %v756, 7
      %v964 = vrot.slane %v761, 7
      %v965 = vlaneseq
      %v966 = vshrl.u32 %v965, 7
      %vm967 = vcmp.lt.s32.totalorder %v966, 1
      %v968 = vsel %vm967, %v963, %v964
      %v969 = vsel %vm967, %v962, %v963
      %v970 = vsel %vm967, %v961, %v962
      %v971 = vsel %vm967, %v960, %v961
      %v972 = vsel %vm967, %v959, %v960
      %v973 = vsel %vm967, %v958, %v959
      %v974 = vsel %vm967, %v957, %v958
      %v975 = vsel %vm967, %v956, %v957
      %v976 = vsel %vm967, %v955, %v956
      %v977 = vsel %vm967, %v954, %v955
      %v978 = vsel %vm967, %v953, %v954
      %v979 = vsel %vm967, %v952, %v953
      %v980 = vsel %vm967, %v951, %v952
      %v981 = vsel %vm967, %v950, %v951
      %v982 = vsel %vm967, %v949, %v950
      %v983 = vsel %vm967, %v964, %v949
      %985 = vset.pattern.permute.xlu0 0
      %986 = vperm.xlu0 %985, %v916
      %v987 = vpop.permute.xlu0 %986
      %990 = vset.pattern.permute.xlu0 0
      %991 = vperm.xlu0 %990, %v917
      %v992 = vpop.permute.xlu0 %991
      %995 = vset.pattern.permute.xlu0 0
      %996 = vperm.xlu0 %995, %v918
      %v997 = vpop.permute.xlu0 %996
      %1000 = vset.pattern.permute.xlu0 0
      %1001 = vperm.xlu0 %1000, %v919
      %v1002 = vpop.permute.xlu0 %1001
      %1005 = vset.pattern.permute.xlu0 0
      %1006 = vperm.xlu0 %1005, %v920
      %v1007 = vpop.permute.xlu0 %1006
      %1010 = vset.pattern.permute.xlu0 0
      %1011 = vperm.xlu0 %1010, %v921
      %v1012 = vpop.permute.xlu0 %1011
      %1015 = vset.pattern.permute.xlu0 0
      %1016 = vperm.xlu0 %1015, %v922
      %v1017 = vpop.permute.xlu0 %1016
      %1020 = vset.pattern.permute.xlu0 0
      %1021 = vperm.xlu0 %1020, %v923
      %v1022 = vpop.permute.xlu0 %1021
      %1025 = vset.pattern.permute.xlu0 0
      %1026 = vperm.xlu0 %1025, %v924
      %v1027 = vpop.permute.xlu0 %1026
      %1030 = vset.pattern.permute.xlu0 0
      %1031 = vperm.xlu0 %1030, %v925
      %v1032 = vpop.permute.xlu0 %1031
      %1035 = vset.pattern.permute.xlu0 0
      %1036 = vperm.xlu0 %1035, %v926
      %v1037 = vpop.permute.xlu0 %1036
      %1040 = vset.pattern.permute.xlu0 0
      %1041 = vperm.xlu0 %1040, %v927
      %v1042 = vpop.permute.xlu0 %1041
      %1045 = vset.pattern.permute.xlu0 0
      %1046 = vperm.xlu0 %1045, %v928
      %v1047 = vpop.permute.xlu0 %1046
      %1050 = vset.pattern.permute.xlu0 0
      %1051 = vperm.xlu0 %1050, %v929
      %v1052 = vpop.permute.xlu0 %1051
      %1055 = vset.pattern.permute.xlu0 0
      %1056 = vperm.xlu0 %1055, %v930
      %v1057 = vpop.permute.xlu0 %1056
      %1060 = vset.pattern.permute.xlu0 0
      %1061 = vperm.xlu0 %1060, %v931
      %v1062 = vpop.permute.xlu0 %1061
      %v1064 = vmul.f32 %v987, %v983
      %v1065 = vmul.f32 %v992, %v982
      %v1066 = vmul.f32 %v997, %v981
      %v1067 = vmul.f32 %v1002, %v980
      %v1068 = vmul.f32 %v1007, %v979
      %v1069 = vmul.f32 %v1012, %v978
      %v1070 = vmul.f32 %v1017, %v977
      %v1071 = vmul.f32 %v1022, %v976
      %v1072 = vmul.f32 %v1027, %v975
      %v1073 = vmul.f32 %v1032, %v974
      %v1074 = vmul.f32 %v1037, %v973
      %v1075 = vmul.f32 %v1042, %v972
      %v1076 = vmul.f32 %v1047, %v971
      %v1077 = vmul.f32 %v1052, %v970
      %v1078 = vmul.f32 %v1057, %v969
      %v1079 = vmul.f32 %v1062, %v968
      %v1081 = vsel %vm615, %v765, 0
      %1083 = vmatprep.subr.mxu0 0.0
      %1084 = vmatpush1.msra.mxu0 %v1081
      %1085 = vmatprep.subr.mxu0 0.0
      %1086 = vmatpush1.msra.mxu0 0.0
      %1087 = vmatprep.subr.mxu0 0.0
      %1088 = vmatpush1.msra.mxu0 0.0
      %1089 = vmatprep.subr.mxu0 0.0
      %1090 = vmatpush1.msra.mxu0 0.0
      %1091 = vmatprep.subr.mxu0 0.0
      %1092 = vmatpush1.msra.mxu0 0.0
      %1093 = vmatprep.subr.mxu0 0.0
      %1094 = vmatpush1.msra.mxu0 0.0
      %1095 = vmatprep.subr.mxu0 0.0
      %1096 = vmatpush1.msra.mxu0 0.0
      %1097 = vmatprep.subr.mxu0 0.0
      %1098 = vmatpush1.msra.mxu0 0.0
      %1099 = vmatprep.subr.mxu0 0.0
      %1100 = vmatpush1.msra.mxu0 0.0
      %1101 = vmatprep.subr.mxu0 0.0
      %1102 = vmatpush1.msra.mxu0 0.0
      %1103 = vmatprep.subr.mxu0 0.0
      %1104 = vmatpush1.msra.mxu0 0.0
      %1105 = vmatprep.subr.mxu0 0.0
      %1106 = vmatpush1.msra.mxu0 0.0
      %1107 = vmatprep.subr.mxu0 0.0
      %1108 = vmatpush1.msra.mxu0 0.0
      %1109 = vmatprep.subr.mxu0 0.0
      %1110 = vmatpush1.msra.mxu0 0.0
      %1111 = vmatprep.subr.mxu0 0.0
      %1112 = vmatpush1.msra.mxu0 0.0
      %1113 = vmatprep.subr.mxu0 0.0
      %1114 = vmatpush1.msra.mxu0 0.0
      %1115 = vmatprep.subr.mxu0 0.0
      %1116 = vmatpush1.msra.mxu0 0.0
      %1117 = vmatprep.subr.mxu0 0.0
      %1118 = vmatpush1.msra.mxu0 0.0
      %1119 = vmatprep.subr.mxu0 0.0
      %1120 = vmatpush1.msra.mxu0 0.0
      %1121 = vmatprep.subr.mxu0 0.0
      %1122 = vmatpush1.msra.mxu0 0.0
      %1123 = vmatprep.subr.mxu0 0.0
      %1124 = vmatpush1.msra.mxu0 0.0
      %1125 = vmatprep.subr.mxu0 0.0
      %1126 = vmatpush1.msra.mxu0 0.0
      %1127 = vmatprep.subr.mxu0 0.0
      %1128 = vmatpush1.msra.mxu0 0.0
      %1129 = vmatprep.subr.mxu0 0.0
      %1130 = vmatpush1.msra.mxu0 0.0
      %1131 = vmatprep.subr.mxu0 0.0
      %1132 = vmatpush1.msra.mxu0 0.0
      %1133 = vmatprep.subr.mxu0 0.0
      %1134 = vmatpush1.msra.mxu0 0.0
      %1135 = vmatprep.subr.mxu0 0.0
      %1136 = vmatpush1.msra.mxu0 0.0
      %1137 = vmatprep.subr.mxu0 0.0
      %1138 = vmatpush1.msra.mxu0 0.0
      %1139 = vmatprep.subr.mxu0 0.0
      %1140 = vmatpush1.msra.mxu0 0.0
      %1141 = vmatprep.subr.mxu0 0.0
      %1142 = vmatpush1.msra.mxu0 0.0
      %1143 = vmatprep.subr.mxu0 0.0
      %1144 = vmatpush1.msra.mxu0 0.0
      %1145 = vmatprep.subr.mxu0 0.0
      %1146 = vmatpush1.msra.mxu0 0.0
      %1147 = vmatprep.mubr.f32.mxu0 0.0
      %1148 = vmatmul.mubr.f32.gmra.mrb[0].mxu0 %v568
      %v1149 = vpop.f32.mrb[0].mxu0
      %v1150 = vadd.f32 %v1064, %v1149
      %v1151 = vpop.f32.mrb[0].mxu0
      %1152 = vmatprep.mubr.f32.mxu0 0.0
      %1153 = vmatmul.mubr.f32.gmra.mrb[0].mxu0 %v571
      %v1154 = vpop.f32.mrb[0].mxu0
      %v1155 = vadd.f32 %v1065, %v1154
      %v1156 = vpop.f32.mrb[0].mxu0
      %1157 = vmatprep.mubr.f32.mxu0 0.0
      %1158 = vmatmul.mubr.f32.gmra.mrb[0].mxu0 %v574
      %v1159 = vpop.f32.mrb[0].mxu0
      %v1160 = vadd.f32 %v1066, %v1159
      %v1161 = vpop.f32.mrb[0].mxu0
      %1162 = vmatprep.mubr.f32.mxu0 0.0
      %1163 = vmatmul.mubr.f32.gmra.mrb[0].mxu0 %v577
      %v1164 = vpop.f32.mrb[0].mxu0
      %v1165 = vadd.f32 %v1067, %v1164
      %v1166 = vpop.f32.mrb[0].mxu0
      %1167 = vmatprep.mubr.f32.mxu0 0.0
      %1168 = vmatmul.mubr.f32.gmra.mrb[0].mxu0 %v580
      %v1169 = vpop.f32.mrb[0].mxu0
      %v1170 = vadd.f32 %v1068, %v1169
      %v1171 = vpop.f32.mrb[0].mxu0
      %1172 = vmatprep.mubr.f32.mxu0 0.0
      %1173 = vmatmul.mubr.f32.gmra.mrb[0].mxu0 %v583
      %v1174 = vpop.f32.mrb[0].mxu0
      %v1175 = vadd.f32 %v1069, %v1174
      %v1176 = vpop.f32.mrb[0].mxu0
      %1177 = vmatprep.mubr.f32.mxu0 0.0
      %1178 = vmatmul.mubr.f32.gmra.mrb[0].mxu0 %v586
      %v1179 = vpop.f32.mrb[0].mxu0
      %v1180 = vadd.f32 %v1070, %v1179
      %v1181 = vpop.f32.mrb[0].mxu0
      %1182 = vmatprep.mubr.f32.mxu0 0.0
      %1183 = vmatmul.mubr.f32.gmra.mrb[0].mxu0 %v589
      %v1184 = vpop.f32.mrb[0].mxu0
      %v1185 = vadd.f32 %v1071, %v1184
      %v1186 = vpop.f32.mrb[0].mxu0
      %1187 = vmatprep.mubr.f32.mxu0 0.0
      %1188 = vmatmul.mubr.f32.gmra.mrb[0].mxu0 %v592
      %v1189 = vpop.f32.mrb[0].mxu0
      %v1190 = vadd.f32 %v1072, %v1189
      %v1191 = vpop.f32.mrb[0].mxu0
      %1192 = vmatprep.mubr.f32.mxu0 0.0
      %1193 = vmatmul.mubr.f32.gmra.mrb[0].mxu0 %v595
      %v1194 = vpop.f32.mrb[0].mxu0
      %v1195 = vadd.f32 %v1073, %v1194
      %v1196 = vpop.f32.mrb[0].mxu0
      %1197 = vmatprep.mubr.f32.mxu0 0.0
      %1198 = vmatmul.mubr.f32.gmra.mrb[0].mxu0 %v598
      %v1199 = vpop.f32.mrb[0].mxu0
      %v1200 = vadd.f32 %v1074, %v1199
      %v1201 = vpop.f32.mrb[0].mxu0
      %1202 = vmatprep.mubr.f32.mxu0 0.0
      %1203 = vmatmul.mubr.f32.gmra.mrb[0].mxu0 %v601
      %v1204 = vpop.f32.mrb[0].mxu0
      %v1205 = vadd.f32 %v1075, %v1204
      %v1206 = vpop.f32.mrb[0].mxu0
      %1207 = vmatprep.mubr.f32.mxu0 0.0
      %1208 = vmatmul.mubr.f32.gmra.mrb[0].mxu0 %v604
      %v1209 = vpop.f32.mrb[0].mxu0
      %v1210 = vadd.f32 %v1076, %v1209
      %v1211 = vpop.f32.mrb[0].mxu0
      %1212 = vmatprep.mubr.f32.mxu0 0.0
      %1213 = vmatmul.mubr.f32.gmra.mrb[0].mxu0 %v607
      %v1214 = vpop.f32.mrb[0].mxu0
      %v1215 = vadd.f32 %v1077, %v1214
      %v1216 = vpop.f32.mrb[0].mxu0
      %1217 = vmatprep.mubr.f32.mxu0 0.0
      %1218 = vmatmul.mubr.f32.gmra.mrb[0].mxu0 %v610
      %v1219 = vpop.f32.mrb[0].mxu0
      %v1220 = vadd.f32 %v1078, %v1219
      %v1221 = vpop.f32.mrb[0].mxu0
      %1222 = vmatprep.mubr.f32.mxu0 0.0
      %1223 = vmatmul.mubr.f32.gmra.mrb[0].mxu0 %v613
      %v1224 = vpop.f32.mrb[0].mxu0
      %v1225 = vadd.f32 %v1079, %v1224
      %v1226 = vpop.f32.mrb[0].mxu0
      %1227 = vdwg.mxu0
      %v1228 = vrot.slane %v838, 1
      %v1229 = vrot.slane %v843, 1
      %v1230 = vrot.slane %v848, 1
      %v1231 = vrot.slane %v853, 1
      %v1232 = vrot.slane %v858, 1
      %v1233 = vrot.slane %v863, 1
      %v1234 = vrot.slane %v868, 1
      %v1235 = vrot.slane %v873, 1
      %v1236 = vrot.slane %v878, 1
      %v1237 = vrot.slane %v883, 1
      %v1238 = vrot.slane %v888, 1
      %v1239 = vrot.slane %v893, 1
      %v1240 = vrot.slane %v898, 1
      %v1241 = vrot.slane %v903, 1
      %v1242 = vrot.slane %v908, 1
      %v1243 = vrot.slane %v913, 1
      %vm1244 = vcmp.lt.s32.totalorder %v966, 7
      %v1245 = vsel %vm1244, %v1242, %v1243
      %v1246 = vsel %vm1244, %v1241, %v1242
      %v1247 = vsel %vm1244, %v1240, %v1241
      %v1248 = vsel %vm1244, %v1239, %v1240
      %v1249 = vsel %vm1244, %v1238, %v1239
      %v1250 = vsel %vm1244, %v1237, %v1238
      %v1251 = vsel %vm1244, %v1236, %v1237
      %v1252 = vsel %vm1244, %v1235, %v1236
      %v1253 = vsel %vm1244, %v1234, %v1235
      %v1254 = vsel %vm1244, %v1233, %v1234
      %v1255 = vsel %vm1244, %v1232, %v1233
      %v1256 = vsel %vm1244, %v1231, %v1232
      %v1257 = vsel %vm1244, %v1230, %v1231
      %v1258 = vsel %vm1244, %v1229, %v1230
      %v1259 = vsel %vm1244, %v1228, %v1229
      %v1260 = vsel %vm1244, %v1243, %v1228
      %1262 = vset.pattern.permute.xlu0 0
      %1263 = vperm.xlu0 %1262, %v933
      %v1264 = vpop.permute.xlu0 %1263
      %1267 = vset.pattern.permute.xlu0 0
      %1268 = vperm.xlu0 %1267, %v934
      %v1269 = vpop.permute.xlu0 %1268
      %1272 = vset.pattern.permute.xlu0 0
      %1273 = vperm.xlu0 %1272, %v935
      %v1274 = vpop.permute.xlu0 %1273
      %1277 = vset.pattern.permute.xlu0 0
      %1278 = vperm.xlu0 %1277, %v936
      %v1279 = vpop.permute.xlu0 %1278
      %1282 = vset.pattern.permute.xlu0 0
      %1283 = vperm.xlu0 %1282, %v937
      %v1284 = vpop.permute.xlu0 %1283
      %1287 = vset.pattern.permute.xlu0 0
      %1288 = vperm.xlu0 %1287, %v938
      %v1289 = vpop.permute.xlu0 %1288
      %1292 = vset.pattern.permute.xlu0 0
      %1293 = vperm.xlu0 %1292, %v939
      %v1294 = vpop.permute.xlu0 %1293
      %1297 = vset.pattern.permute.xlu0 0
      %1298 = vperm.xlu0 %1297, %v940
      %v1299 = vpop.permute.xlu0 %1298
      %1302 = vset.pattern.permute.xlu0 0
      %1303 = vperm.xlu0 %1302, %v941
      %v1304 = vpop.permute.xlu0 %1303
      %1307 = vset.pattern.permute.xlu0 0
      %1308 = vperm.xlu0 %1307, %v942
      %v1309 = vpop.permute.xlu0 %1308
      %1312 = vset.pattern.permute.xlu0 0
      %1313 = vperm.xlu0 %1312, %v943
      %v1314 = vpop.permute.xlu0 %1313
      %1317 = vset.pattern.permute.xlu0 0
      %1318 = vperm.xlu0 %1317, %v944
      %v1319 = vpop.permute.xlu0 %1318
      %1322 = vset.pattern.permute.xlu0 0
      %1323 = vperm.xlu0 %1322, %v945
      %v1324 = vpop.permute.xlu0 %1323
      %1327 = vset.pattern.permute.xlu0 0
      %1328 = vperm.xlu0 %1327, %v946
      %v1329 = vpop.permute.xlu0 %1328
      %1332 = vset.pattern.permute.xlu0 0
      %1333 = vperm.xlu0 %1332, %v947
      %v1334 = vpop.permute.xlu0 %1333
      %1337 = vset.pattern.permute.xlu0 0
      %1338 = vperm.xlu0 %1337, %v948
      %v1339 = vpop.permute.xlu0 %1338
      %v1341 = vmul.f32 %v1264, %v1259
      %v1342 = vmul.f32 %v1269, %v1258
      %v1343 = vmul.f32 %v1274, %v1257
      %v1344 = vmul.f32 %v1279, %v1256
      %v1345 = vmul.f32 %v1284, %v1255
      %v1346 = vmul.f32 %v1289, %v1254
      %v1347 = vmul.f32 %v1294, %v1253
      %v1348 = vmul.f32 %v1299, %v1252
      %v1349 = vmul.f32 %v1304, %v1251
      %v1350 = vmul.f32 %v1309, %v1250
      %v1351 = vmul.f32 %v1314, %v1249
      %v1352 = vmul.f32 %v1319, %v1248
      %v1353 = vmul.f32 %v1324, %v1247
      %v1354 = vmul.f32 %v1329, %v1246
      %v1355 = vmul.f32 %v1334, %v1245
      %v1356 = vmul.f32 %v1339, %v1260
      %v1357 = vadd.f32 %v1150, %v1341
      %v1358 = vadd.f32 %v1155, %v1342
      %v1359 = vadd.f32 %v1160, %v1343
      %v1360 = vadd.f32 %v1165, %v1344
      %v1361 = vadd.f32 %v1170, %v1345
      %v1362 = vadd.f32 %v1175, %v1346
      %v1363 = vadd.f32 %v1180, %v1347
      %v1364 = vadd.f32 %v1185, %v1348
      %v1365 = vadd.f32 %v1190, %v1349
      %v1366 = vadd.f32 %v1195, %v1350
      %v1367 = vadd.f32 %v1200, %v1351
      %v1368 = vadd.f32 %v1205, %v1352
      %v1369 = vadd.f32 %v1210, %v1353
      %v1370 = vadd.f32 %v1215, %v1354
      %v1371 = vadd.f32 %v1220, %v1355
      %v1372 = vadd.f32 %v1225, %v1356
      %v1373 = vld [vmem:[%s2] sm:$0x1]
      %v1375 = vlaneseq
      %v1376 = vshrl.u32 %v1375, 7
      %v1377 = vsub.s32 0, %v1376
      %v1378 = vrot.slane %v1373, %v1377
      %v1380 = vadd.f32 %v1357, %v1378
      %v1381 = vadd.f32 %v1358, %v1378
      %v1382 = vadd.f32 %v1359, %v1378
      %v1383 = vadd.f32 %v1360, %v1378
      %v1384 = vadd.f32 %v1361, %v1378
      %v1385 = vadd.f32 %v1362, %v1378
      %v1386 = vadd.f32 %v1363, %v1378
      %v1387 = vadd.f32 %v1364, %v1378
      %v1388 = vadd.f32 %v1365, %v1378
      %v1389 = vadd.f32 %v1366, %v1378
      %v1390 = vadd.f32 %v1367, %v1378
      %v1391 = vadd.f32 %v1368, %v1378
      %v1392 = vadd.f32 %v1369, %v1378
      %v1393 = vadd.f32 %v1370, %v1378
      %v1394 = vadd.f32 %v1371, %v1378
      %v1395 = vadd.f32 %v1372, %v1378
      %v1396 = vmax.f32 %v1380, 0.0
      %v1397 = vmax.f32 %v1381, 0.0
      %v1398 = vmax.f32 %v1382, 0.0
      %v1399 = vmax.f32 %v1383, 0.0
      %v1400 = vmax.f32 %v1384, 0.0
      %v1401 = vmax.f32 %v1385, 0.0
      %v1402 = vmax.f32 %v1386, 0.0
      %v1403 = vmax.f32 %v1387, 0.0
      %v1404 = vmax.f32 %v1388, 0.0
      %v1405 = vmax.f32 %v1389, 0.0
      %v1406 = vmax.f32 %v1390, 0.0
      %v1407 = vmax.f32 %v1391, 0.0
      %v1408 = vmax.f32 %v1392, 0.0
      %v1409 = vmax.f32 %v1393, 0.0
      %v1410 = vmax.f32 %v1394, 0.0
      %v1411 = vmax.f32 %v1395, 0.0
      %v1412 = vrot.slane %v1396, 1
      %v1413 = vrot.slane %v1397, 1
      %v1414 = vrot.slane %v1398, 1
      %v1415 = vrot.slane %v1399, 1
      %v1416 = vrot.slane %v1400, 1
      %v1417 = vrot.slane %v1401, 1
      %v1418 = vrot.slane %v1402, 1
      %v1419 = vrot.slane %v1403, 1
      %v1420 = vrot.slane %v1404, 1
      %v1421 = vrot.slane %v1405, 1
      %v1422 = vrot.slane %v1406, 1
      %v1423 = vrot.slane %v1407, 1
      %v1424 = vrot.slane %v1408, 1
      %v1425 = vrot.slane %v1409, 1
      %v1426 = vrot.slane %v1410, 1
      %v1427 = vrot.slane %v1411, 1
      %v1428 = vsel %vm1244, %v1426, %v1427
      %v1429 = vsel %vm1244, %v1425, %v1426
      %v1430 = vsel %vm1244, %v1424, %v1425
      %v1431 = vsel %vm1244, %v1423, %v1424
      %v1432 = vsel %vm1244, %v1422, %v1423
      %v1433 = vsel %vm1244, %v1421, %v1422
      %v1434 = vsel %vm1244, %v1420, %v1421
      %v1435 = vsel %vm1244, %v1419, %v1420
      %v1436 = vsel %vm1244, %v1418, %v1419
      %v1437 = vsel %vm1244, %v1417, %v1418
      %v1438 = vsel %vm1244, %v1416, %v1417
      %v1439 = vsel %vm1244, %v1415, %v1416
      %v1440 = vsel %vm1244, %v1414, %v1415
      %v1441 = vsel %vm1244, %v1413, %v1414
      %v1442 = vsel %vm1244, %v1412, %v1413
      %v1443 = vsel %vm1244, %v1427, %v1412
      %v1444 = vmax.f32 %v1396, %v1442
      %v1445 = vmax.f32 %v1397, %v1441
      %v1446 = vmax.f32 %v1398, %v1440
      %v1447 = vmax.f32 %v1399, %v1439
      %v1448 = vmax.f32 %v1400, %v1438
      %v1449 = vmax.f32 %v1401, %v1437
      %v1450 = vmax.f32 %v1402, %v1436
      %v1451 = vmax.f32 %v1403, %v1435
      %v1452 = vmax.f32 %v1404, %v1434
      %v1453 = vmax.f32 %v1405, %v1433
      %v1454 = vmax.f32 %v1406, %v1432
      %v1455 = vmax.f32 %v1407, %v1431
      %v1456 = vmax.f32 %v1408, %v1430
      %v1457 = vmax.f32 %v1409, %v1429
      %v1458 = vmax.f32 %v1410, %v1428
      %v1459 = vmax.f32 %v1411, %v1443
      %v1460 = vld [vmem:[%s4] sm:$0xff]
      %v1461 = vld [vmem:[%s4 + $0x8] sm:$0xff]
      %v1462 = vld [vmem:[%s4 + $0x10] sm:$0xff]
      %v1463 = vld [vmem:[%s4 + $0x18] sm:$0xff]
      %v1464 = vld [vmem:[%s4 + $0x20] sm:$0xff]
      %v1465 = vld [vmem:[%s4 + $0x28] sm:$0xff]
      %v1466 = vld [vmem:[%s4 + $0x30] sm:$0xff]
      %v1467 = vld [vmem:[%s4 + $0x38] sm:$0xff]
      %1468 = vmatprep.subr.mxu0 0.0
      %1469 = vmatpush1.msra.mxu0 %v1444
      %1470 = vmatprep.subr.mxu0 0.0
      %1471 = vmatpush1.msra.mxu0 %v1445
      %1472 = vmatprep.subr.mxu0 0.0
      %1473 = vmatpush1.msra.mxu0 %v1446
      %1474 = vmatprep.subr.mxu0 0.0
      %1475 = vmatpush1.msra.mxu0 %v1447
      %1476 = vmatprep.subr.mxu0 0.0
      %1477 = vmatpush1.msra.mxu0 %v1448
      %1478 = vmatprep.subr.mxu0 0.0
      %1479 = vmatpush1.msra.mxu0 %v1449
      %1480 = vmatprep.subr.mxu0 0.0
      %1481 = vmatpush1.msra.mxu0 %v1450
      %1482 = vmatprep.subr.mxu0 0.0
      %1483 = vmatpush1.msra.mxu0 %v1451
      %1484 = vmatprep.subr.mxu0 0.0
      %1485 = vmatpush1.msra.mxu0 %v1452
      %1486 = vmatprep.subr.mxu0 0.0
      %1487 = vmatpush1.msra.mxu0 %v1453
      %1488 = vmatprep.subr.mxu0 0.0
      %1489 = vmatpush1.msra.mxu0 %v1454
      %1490 = vmatprep.subr.mxu0 0.0
      %1491 = vmatpush1.msra.mxu0 %v1455
      %1492 = vmatprep.subr.mxu0 0.0
      %1493 = vmatpush1.msra.mxu0 %v1456
      %1494 = vmatprep.subr.mxu0 0.0
      %1495 = vmatpush1.msra.mxu0 %v1457
      %1496 = vmatprep.subr.mxu0 0.0
      %1497 = vmatpush1.msra.mxu0 %v1458
      %1498 = vmatprep.subr.mxu0 0.0
      %1499 = vmatpush1.msra.mxu0 %v1459
      %1500 = vmatprep.subr.mxu0 0.0
      %1501 = vmatpush1.msra.mxu0 0.0
      %1502 = vmatprep.subr.mxu0 0.0
      %1503 = vmatpush1.msra.mxu0 0.0
      %1504 = vmatprep.subr.mxu0 0.0
      %1505 = vmatpush1.msra.mxu0 0.0
      %1506 = vmatprep.subr.mxu0 0.0
      %1507 = vmatpush1.msra.mxu0 0.0
      %1508 = vmatprep.subr.mxu0 0.0
      %1509 = vmatpush1.msra.mxu0 0.0
      %1510 = vmatprep.subr.mxu0 0.0
      %1511 = vmatpush1.msra.mxu0 0.0
      %1512 = vmatprep.subr.mxu0 0.0
      %1513 = vmatpush1.msra.mxu0 0.0
      %1514 = vmatprep.subr.mxu0 0.0
      %1515 = vmatpush1.msra.mxu0 0.0
      %1516 = vmatprep.subr.mxu0 0.0
      %1517 = vmatpush1.msra.mxu0 0.0
      %1518 = vmatprep.subr.mxu0 0.0
      %1519 = vmatpush1.msra.mxu0 0.0
      %1520 = vmatprep.subr.mxu0 0.0
      %1521 = vmatpush1.msra.mxu0 0.0
      %1522 = vmatprep.subr.mxu0 0.0
      %1523 = vmatpush1.msra.mxu0 0.0
      %1524 = vmatprep.subr.mxu0 0.0
      %1525 = vmatpush1.msra.mxu0 0.0
      %1526 = vmatprep.subr.mxu0 0.0
      %1527 = vmatpush1.msra.mxu0 0.0
      %1528 = vmatprep.subr.mxu0 0.0
      %1529 = vmatpush1.msra.mxu0 0.0
      %1530 = vmatprep.subr.mxu0 0.0
      %1531 = vmatpush1.msra.mxu0 0.0
      %1532 = vmatprep.mubr.f32.mxu0 0.0
      %1533 = vmatmul.mubr.f32.gmra.mrb[0].mxu0 %v1460
      %v1534 = vpop.f32.mrb[0].mxu0
      %v1535 = vadd.f32 0.0, %v1534
      %v1536 = vpop.f32.mrb[0].mxu0
      %1537 = vmatprep.mubr.f32.mxu0 0.0
      %1538 = vmatmul.mubr.f32.gmra.mrb[0].mxu0 %v1461
      %v1539 = vpop.f32.mrb[0].mxu0
      %v1540 = vadd.f32 0.0, %v1539
      %v1541 = vpop.f32.mrb[0].mxu0
      %1542 = vmatprep.mubr.f32.mxu0 0.0
      %1543 = vmatmul.mubr.f32.gmra.mrb[0].mxu0 %v1462
      %v1544 = vpop.f32.mrb[0].mxu0
      %v1545 = vadd.f32 0.0, %v1544
      %v1546 = vpop.f32.mrb[0].mxu0
      %1547 = vmatprep.mubr.f32.mxu0 0.0
      %1548 = vmatmul.mubr.f32.gmra.mrb[0].mxu0 %v1463
      %v1549 = vpop.f32.mrb[0].mxu0
      %v1550 = vadd.f32 0.0, %v1549
      %v1551 = vpop.f32.mrb[0].mxu0
      %1552 = vmatprep.mubr.f32.mxu0 0.0
      %1553 = vmatmul.mubr.f32.gmra.mrb[0].mxu0 %v1464
      %v1554 = vpop.f32.mrb[0].mxu0
      %v1555 = vadd.f32 0.0, %v1554
      %v1556 = vpop.f32.mrb[0].mxu0
      %1557 = vmatprep.mubr.f32.mxu0 0.0
      %1558 = vmatmul.mubr.f32.gmra.mrb[0].mxu0 %v1465
      %v1559 = vpop.f32.mrb[0].mxu0
      %v1560 = vadd.f32 0.0, %v1559
      %v1561 = vpop.f32.mrb[0].mxu0
      %1562 = vmatprep.mubr.f32.mxu0 0.0
      %1563 = vmatmul.mubr.f32.gmra.mrb[0].mxu0 %v1466
      %v1564 = vpop.f32.mrb[0].mxu0
      %v1565 = vadd.f32 0.0, %v1564
      %v1566 = vpop.f32.mrb[0].mxu0
      %1567 = vmatprep.mubr.f32.mxu0 0.0
      %1568 = vmatmul.mubr.f32.gmra.mrb[0].mxu0 %v1467
      %v1569 = vpop.f32.mrb[0].mxu0
      %v1570 = vadd.f32 0.0, %v1569
      %v1571 = vpop.f32.mrb[0].mxu0
      %1572 = vdwg.mxu0
      %v1573 = vld [vmem:[%s5] sm:$0xff]
      %v1574 = vld [vmem:[%s5 + $0x8] sm:$0xff]
      %vm1575 = vcmask 130048
      %v1577 = vsel %vm1575, %v1535, 0
      %v1580 = vsel %vm1575, %v1540, 0
      %v1583 = vsel %vm1575, %v1545, 0
      %v1586 = vsel %vm1575, %v1550, 0
      %v1589 = vsel %vm1575, %v1555, 0
      %v1592 = vsel %vm1575, %v1560, 0
      %v1595 = vsel %vm1575, %v1565, 0
      %v1598 = vsel %vm1575, %v1570, 0
      %1600 = vmatprep.subr.mxu0 0.0
      %1601 = vmatpush1.msra.mxu0 %v1573
      %1602 = vmatprep.subr.mxu0 0.0
      %1603 = vmatpush1.msra.mxu0 %v1574
      %1604 = vmatprep.subr.mxu0 0.0
      %1605 = vmatpush1.msra.mxu0 0.0
      %1606 = vmatprep.subr.mxu0 0.0
      %1607 = vmatpush1.msra.mxu0 0.0
      %1608 = vmatprep.subr.mxu0 0.0
      %1609 = vmatpush1.msra.mxu0 0.0
      %1610 = vmatprep.subr.mxu0 0.0
      %1611 = vmatpush1.msra.mxu0 0.0
      %1612 = vmatprep.subr.mxu0 0.0
      %1613 = vmatpush1.msra.mxu0 0.0
      %1614 = vmatprep.subr.mxu0 0.0
      %1615 = vmatpush1.msra.mxu0 0.0
      %1616 = vmatprep.subr.mxu0 0.0
      %1617 = vmatpush1.msra.mxu0 0.0
      %1618 = vmatprep.subr.mxu0 0.0
      %1619 = vmatpush1.msra.mxu0 0.0
      %1620 = vmatprep.subr.mxu0 0.0
      %1621 = vmatpush1.msra.mxu0 0.0
      %1622 = vmatprep.subr.mxu0 0.0
      %1623 = vmatpush1.msra.mxu0 0.0
      %1624 = vmatprep.subr.mxu0 0.0
      %1625 = vmatpush1.msra.mxu0 0.0
      %1626 = vmatprep.subr.mxu0 0.0
      %1627 = vmatpush1.msra.mxu0 0.0
      %1628 = vmatprep.subr.mxu0 0.0
      %1629 = vmatpush1.msra.mxu0 0.0
      %1630 = vmatprep.subr.mxu0 0.0
      %1631 = vmatpush1.msra.mxu0 0.0
      %1632 = vmatprep.subr.mxu0 0.0
      %1633 = vmatpush1.msra.mxu0 0.0
      %1634 = vmatprep.subr.mxu0 0.0
      %1635 = vmatpush1.msra.mxu0 0.0
      %1636 = vmatprep.subr.mxu0 0.0
      %1637 = vmatpush1.msra.mxu0 0.0
      %1638 = vmatprep.subr.mxu0 0.0
      %1639 = vmatpush1.msra.mxu0 0.0
      %1640 = vmatprep.subr.mxu0 0.0
      %1641 = vmatpush1.msra.mxu0 0.0
      %1642 = vmatprep.subr.mxu0 0.0
      %1643 = vmatpush1.msra.mxu0 0.0
      %1644 = vmatprep.subr.mxu0 0.0
      %1645 = vmatpush1.msra.mxu0 0.0
      %1646 = vmatprep.subr.mxu0 0.0
      %1647 = vmatpush1.msra.mxu0 0.0
      %1648 = vmatprep.subr.mxu0 0.0
      %1649 = vmatpush1.msra.mxu0 0.0
      %1650 = vmatprep.subr.mxu0 0.0
      %1651 = vmatpush1.msra.mxu0 0.0
      %1652 = vmatprep.subr.mxu0 0.0
      %1653 = vmatpush1.msra.mxu0 0.0
      %1654 = vmatprep.subr.mxu0 0.0
      %1655 = vmatpush1.msra.mxu0 0.0
      %1656 = vmatprep.subr.mxu0 0.0
      %1657 = vmatpush1.msra.mxu0 0.0
      %1658 = vmatprep.subr.mxu0 0.0
      %1659 = vmatpush1.msra.mxu0 0.0
      %1660 = vmatprep.subr.mxu0 0.0
      %1661 = vmatpush1.msra.mxu0 0.0
      %1662 = vmatprep.subr.mxu0 0.0
      %1663 = vmatpush1.msra.mxu0 0.0
      %1664 = vmatprep.mubr.f32.mxu0 0.0
      %1665 = vmatmul.mubr.f32.gmra.mrb[0].mxu0 %v1577
      %v1666 = vpop.f32.mrb[0].mxu0
      %v1667 = vadd.f32 0.0, %v1666
      %v1668 = vpop.f32.mrb[0].mxu0
      %1669 = vmatprep.mubr.f32.mxu0 0.0
      %1670 = vmatmul.mubr.f32.gmra.mrb[0].mxu0 %v1580
      %v1671 = vpop.f32.mrb[0].mxu0
      %v1672 = vadd.f32 0.0, %v1671
      %v1673 = vpop.f32.mrb[0].mxu0
      %1674 = vmatprep.mubr.f32.mxu0 0.0
      %1675 = vmatmul.mubr.f32.gmra.mrb[0].mxu0 %v1583
      %v1676 = vpop.f32.mrb[0].mxu0
      %v1677 = vadd.f32 0.0, %v1676
      %v1678 = vpop.f32.mrb[0].mxu0
      %1679 = vmatprep.mubr.f32.mxu0 0.0
      %1680 = vmatmul.mubr.f32.gmra.mrb[0].mxu0 %v1586
      %v1681 = vpop.f32.mrb[0].mxu0
      %v1682 = vadd.f32 0.0, %v1681
      %v1683 = vpop.f32.mrb[0].mxu0
      %1684 = vmatprep.mubr.f32.mxu0 0.0
      %1685 = vmatmul.mubr.f32.gmra.mrb[0].mxu0 %v1589
      %v1686 = vpop.f32.mrb[0].mxu0
      %v1687 = vadd.f32 0.0, %v1686
      %v1688 = vpop.f32.mrb[0].mxu0
      %1689 = vmatprep.mubr.f32.mxu0 0.0
      %1690 = vmatmul.mubr.f32.gmra.mrb[0].mxu0 %v1592
      %v1691 = vpop.f32.mrb[0].mxu0
      %v1692 = vadd.f32 0.0, %v1691
      %v1693 = vpop.f32.mrb[0].mxu0
      %1694 = vmatprep.mubr.f32.mxu0 0.0
      %1695 = vmatmul.mubr.f32.gmra.mrb[0].mxu0 %v1595
      %v1696 = vpop.f32.mrb[0].mxu0
      %v1697 = vadd.f32 0.0, %v1696
      %v1698 = vpop.f32.mrb[0].mxu0
      %1699 = vmatprep.mubr.f32.mxu0 0.0
      %1700 = vmatmul.mubr.f32.gmra.mrb[0].mxu0 %v1598
      %v1701 = vpop.f32.mrb[0].mxu0
      %v1702 = vadd.f32 0.0, %v1701
      %v1703 = vpop.f32.mrb[0].mxu0
      %1704 = vdwg.mxu0
      %s1705 = scalar_lea.vmem %s5, 16
      %v1706 = vld [vmem:[%s1705] sm:$0xff]
      %v1707 = vld [vmem:[%s1705 + $0x8] sm:$0xff]
      %s1708 = scalar_lea.vmem %s5, 32
      %v1709 = vld [vmem:[%s1708] sm:$0xff]
      %v1710 = vld [vmem:[%s1708 + $0x8] sm:$0xff]
      %1711 = vmatprep.subr.mxu0 0.0
      %1712 = vmatpush1.msra.mxu0 %v1709
      %1713 = vmatprep.subr.mxu0 0.0
      %1714 = vmatpush1.msra.mxu0 %v1710
      %1715 = vmatprep.subr.mxu0 0.0
      %1716 = vmatpush1.msra.mxu0 0.0
      %1717 = vmatprep.subr.mxu0 0.0
      %1718 = vmatpush1.msra.mxu0 0.0
      %1719 = vmatprep.subr.mxu0 0.0
      %1720 = vmatpush1.msra.mxu0 0.0
      %1721 = vmatprep.subr.mxu0 0.0
      %1722 = vmatpush1.msra.mxu0 0.0
      %1723 = vmatprep.subr.mxu0 0.0
      %1724 = vmatpush1.msra.mxu0 0.0
      %1725 = vmatprep.subr.mxu0 0.0
      %1726 = vmatpush1.msra.mxu0 0.0
      %1727 = vmatprep.subr.mxu0 0.0
      %1728 = vmatpush1.msra.mxu0 0.0
      %1729 = vmatprep.subr.mxu0 0.0
      %1730 = vmatpush1.msra.mxu0 0.0
      %1731 = vmatprep.subr.mxu0 0.0
      %1732 = vmatpush1.msra.mxu0 0.0
      %1733 = vmatprep.subr.mxu0 0.0
      %1734 = vmatpush1.msra.mxu0 0.0
      %1735 = vmatprep.subr.mxu0 0.0
      %1736 = vmatpush1.msra.mxu0 0.0
      %1737 = vmatprep.subr.mxu0 0.0
      %1738 = vmatpush1.msra.mxu0 0.0
      %1739 = vmatprep.subr.mxu0 0.0
      %1740 = vmatpush1.msra.mxu0 0.0
      %1741 = vmatprep.subr.mxu0 0.0
      %1742 = vmatpush1.msra.mxu0 0.0
      %1743 = vmatprep.subr.mxu0 0.0
      %1744 = vmatpush1.msra.mxu0 0.0
      %1745 = vmatprep.subr.mxu0 0.0
      %1746 = vmatpush1.msra.mxu0 0.0
      %1747 = vmatprep.subr.mxu0 0.0
      %1748 = vmatpush1.msra.mxu0 0.0
      %1749 = vmatprep.subr.mxu0 0.0
      %1750 = vmatpush1.msra.mxu0 0.0
      %1751 = vmatprep.subr.mxu0 0.0
      %1752 = vmatpush1.msra.mxu0 0.0
      %1753 = vmatprep.subr.mxu0 0.0
      %1754 = vmatpush1.msra.mxu0 0.0
      %1755 = vmatprep.subr.mxu0 0.0
      %1756 = vmatpush1.msra.mxu0 0.0
      %1757 = vmatprep.subr.mxu0 0.0
      %1758 = vmatpush1.msra.mxu0 0.0
      %1759 = vmatprep.subr.mxu0 0.0
      %1760 = vmatpush1.msra.mxu0 0.0
      %1761 = vmatprep.subr.mxu0 0.0
      %1762 = vmatpush1.msra.mxu0 0.0
      %1763 = vmatprep.subr.mxu0 0.0
      %1764 = vmatpush1.msra.mxu0 0.0
      %1765 = vmatprep.subr.mxu0 0.0
      %1766 = vmatpush1.msra.mxu0 0.0
      %1767 = vmatprep.subr.mxu0 0.0
      %1768 = vmatpush1.msra.mxu0 0.0
      %1769 = vmatprep.subr.mxu0 0.0
      %1770 = vmatpush1.msra.mxu0 0.0
      %1771 = vmatprep.subr.mxu0 0.0
      %1772 = vmatpush1.msra.mxu0 0.0
      %1773 = vmatprep.subr.mxu0 0.0
      %1774 = vmatpush1.msra.mxu0 0.0
      %1775 = vmatprep.mubr.f32.mxu0 0.0
      %1776 = vmatmul.mubr.f32.gmra.mrb[0].mxu0 %v1577
      %v1777 = vpop.f32.mrb[0].mxu0
      %v1778 = vadd.f32 0.0, %v1777
      %v1779 = vpop.f32.mrb[0].mxu0
      %1780 = vmatprep.mubr.f32.mxu0 0.0
      %1781 = vmatmul.mubr.f32.gmra.mrb[0].mxu0 %v1580
      %v1782 = vpop.f32.mrb[0].mxu0
      %v1783 = vadd.f32 0.0, %v1782
      %v1784 = vpop.f32.mrb[0].mxu0
      %1785 = vmatprep.mubr.f32.mxu0 0.0
      %1786 = vmatmul.mubr.f32.gmra.mrb[0].mxu0 %v1583
      %v1787 = vpop.f32.mrb[0].mxu0
      %v1788 = vadd.f32 0.0, %v1787
      %v1789 = vpop.f32.mrb[0].mxu0
      %1790 = vmatprep.mubr.f32.mxu0 0.0
      %1791 = vmatmul.mubr.f32.gmra.mrb[0].mxu0 %v1586
      %v1792 = vpop.f32.mrb[0].mxu0
      %v1793 = vadd.f32 0.0, %v1792
      %v1794 = vpop.f32.mrb[0].mxu0
      %1795 = vmatprep.mubr.f32.mxu0 0.0
      %1796 = vmatmul.mubr.f32.gmra.mrb[0].mxu0 %v1589
      %v1797 = vpop.f32.mrb[0].mxu0
      %v1798 = vadd.f32 0.0, %v1797
      %v1799 = vpop.f32.mrb[0].mxu0
      %1800 = vmatprep.mubr.f32.mxu0 0.0
      %1801 = vmatmul.mubr.f32.gmra.mrb[0].mxu0 %v1592
      %v1802 = vpop.f32.mrb[0].mxu0
      %v1803 = vadd.f32 0.0, %v1802
      %v1804 = vpop.f32.mrb[0].mxu0
      %1805 = vmatprep.mubr.f32.mxu0 0.0
      %1806 = vmatmul.mubr.f32.gmra.mrb[0].mxu0 %v1595
      %v1807 = vpop.f32.mrb[0].mxu0
      %v1808 = vadd.f32 0.0, %v1807
      %v1809 = vpop.f32.mrb[0].mxu0
      %1810 = vmatprep.mubr.f32.mxu0 0.0
      %1811 = vmatmul.mubr.f32.gmra.mrb[0].mxu0 %v1598
      %v1812 = vpop.f32.mrb[0].mxu0
      %v1813 = vadd.f32 0.0, %v1812
      %v1814 = vpop.f32.mrb[0].mxu0
      %1815 = vdwg.mxu0
      %v1816 = vld [vmem:[%s7] sm:$0xff]
      %v1817 = vld [vmem:[%s7 + $0x8] sm:$0xff]
      %v1818 = vld [vmem:[%s7 + $0x10] sm:$0xff]
      %v1819 = vld [vmem:[%s7 + $0x18] sm:$0xff]
      %v1820 = vld [vmem:[%s7 + $0x20] sm:$0xff]
      %v1821 = vld [vmem:[%s7 + $0x28] sm:$0xff]
      %v1822 = vld [vmem:[%s7 + $0x30] sm:$0xff]
      %v1823 = vld [vmem:[%s7 + $0x38] sm:$0xff]
      %s1824 = scalar_lea.vmem %s7, 64
      %v1825 = vld [vmem:[%s1824] sm:$0xff]
      %v1826 = vld [vmem:[%s1824 + $0x8] sm:$0xff]
      %v1827 = vld [vmem:[%s1824 + $0x10] sm:$0xff]
      %v1828 = vld [vmem:[%s1824 + $0x18] sm:$0xff]
      %v1829 = vld [vmem:[%s1824 + $0x20] sm:$0xff]
      %v1830 = vld [vmem:[%s1824 + $0x28] sm:$0xff]
      %v1831 = vld [vmem:[%s1824 + $0x30] sm:$0xff]
      %v1832 = vld [vmem:[%s1824 + $0x38] sm:$0xff]
      %v1833 = vrot.slane %v1667, 7
      %v1834 = vrot.slane %v1672, 7
      %v1835 = vrot.slane %v1677, 7
      %v1836 = vrot.slane %v1682, 7
      %v1837 = vrot.slane %v1687, 7
      %v1838 = vrot.slane %v1692, 7
      %v1839 = vrot.slane %v1697, 7
      %v1840 = vrot.slane %v1702, 7
      %v1841 = vsel %vm967, %v1839, %v1840
      %v1842 = vsel %vm967, %v1838, %v1839
      %v1843 = vsel %vm967, %v1837, %v1838
      %v1844 = vsel %vm967, %v1836, %v1837
      %v1845 = vsel %vm967, %v1835, %v1836
      %v1846 = vsel %vm967, %v1834, %v1835
      %v1847 = vsel %vm967, %v1833, %v1834
      %v1848 = vsel %vm967, %v1840, %v1833
      %1850 = vset.pattern.permute.xlu0 0
      %1851 = vperm.xlu0 %1850, %v1816
      %v1852 = vpop.permute.xlu0 %1851
      %1855 = vset.pattern.permute.xlu0 0
      %1856 = vperm.xlu0 %1855, %v1817
      %v1857 = vpop.permute.xlu0 %1856
      %1860 = vset.pattern.permute.xlu0 0
      %1861 = vperm.xlu0 %1860, %v1818
      %v1862 = vpop.permute.xlu0 %1861
      %1865 = vset.pattern.permute.xlu0 0
      %1866 = vperm.xlu0 %1865, %v1819
      %v1867 = vpop.permute.xlu0 %1866
      %1870 = vset.pattern.permute.xlu0 0
      %1871 = vperm.xlu0 %1870, %v1820
      %v1872 = vpop.permute.xlu0 %1871
      %1875 = vset.pattern.permute.xlu0 0
      %1876 = vperm.xlu0 %1875, %v1821
      %v1877 = vpop.permute.xlu0 %1876
      %1880 = vset.pattern.permute.xlu0 0
      %1881 = vperm.xlu0 %1880, %v1822
      %v1882 = vpop.permute.xlu0 %1881
      %1885 = vset.pattern.permute.xlu0 0
      %1886 = vperm.xlu0 %1885, %v1823
      %v1887 = vpop.permute.xlu0 %1886
      %v1889 = vmul.f32 %v1852, %v1848
      %v1890 = vmul.f32 %v1857, %v1847
      %v1891 = vmul.f32 %v1862, %v1846
      %v1892 = vmul.f32 %v1867, %v1845
      %v1893 = vmul.f32 %v1872, %v1844
      %v1894 = vmul.f32 %v1877, %v1843
      %v1895 = vmul.f32 %v1882, %v1842
      %v1896 = vmul.f32 %v1887, %v1841
      %1897 = vmatprep.subr.mxu0 0.0
      %1898 = vmatpush1.msra.mxu0 %v1706
      %1899 = vmatprep.subr.mxu0 0.0
      %1900 = vmatpush1.msra.mxu0 %v1707
      %1901 = vmatprep.subr.mxu0 0.0
      %1902 = vmatpush1.msra.mxu0 0.0
      %1903 = vmatprep.subr.mxu0 0.0
      %1904 = vmatpush1.msra.mxu0 0.0
      %1905 = vmatprep.subr.mxu0 0.0
      %1906 = vmatpush1.msra.mxu0 0.0
      %1907 = vmatprep.subr.mxu0 0.0
      %1908 = vmatpush1.msra.mxu0 0.0
      %1909 = vmatprep.subr.mxu0 0.0
      %1910 = vmatpush1.msra.mxu0 0.0
      %1911 = vmatprep.subr.mxu0 0.0
      %1912 = vmatpush1.msra.mxu0 0.0
      %1913 = vmatprep.subr.mxu0 0.0
      %1914 = vmatpush1.msra.mxu0 0.0
      %1915 = vmatprep.subr.mxu0 0.0
      %1916 = vmatpush1.msra.mxu0 0.0
      %1917 = vmatprep.subr.mxu0 0.0
      %1918 = vmatpush1.msra.mxu0 0.0
      %1919 = vmatprep.subr.mxu0 0.0
      %1920 = vmatpush1.msra.mxu0 0.0
      %1921 = vmatprep.subr.mxu0 0.0
      %1922 = vmatpush1.msra.mxu0 0.0
      %1923 = vmatprep.subr.mxu0 0.0
      %1924 = vmatpush1.msra.mxu0 0.0
      %1925 = vmatprep.subr.mxu0 0.0
      %1926 = vmatpush1.msra.mxu0 0.0
      %1927 = vmatprep.subr.mxu0 0.0
      %1928 = vmatpush1.msra.mxu0 0.0
      %1929 = vmatprep.subr.mxu0 0.0
      %1930 = vmatpush1.msra.mxu0 0.0
      %1931 = vmatprep.subr.mxu0 0.0
      %1932 = vmatpush1.msra.mxu0 0.0
      %1933 = vmatprep.subr.mxu0 0.0
      %1934 = vmatpush1.msra.mxu0 0.0
      %1935 = vmatprep.subr.mxu0 0.0
      %1936 = vmatpush1.msra.mxu0 0.0
      %1937 = vmatprep.subr.mxu0 0.0
      %1938 = vmatpush1.msra.mxu0 0.0
      %1939 = vmatprep.subr.mxu0 0.0
      %1940 = vmatpush1.msra.mxu0 0.0
      %1941 = vmatprep.subr.mxu0 0.0
      %1942 = vmatpush1.msra.mxu0 0.0
      %1943 = vmatprep.subr.mxu0 0.0
      %1944 = vmatpush1.msra.mxu0 0.0
      %1945 = vmatprep.subr.mxu0 0.0
      %1946 = vmatpush1.msra.mxu0 0.0
      %1947 = vmatprep.subr.mxu0 0.0
      %1948 = vmatpush1.msra.mxu0 0.0
      %1949 = vmatprep.subr.mxu0 0.0
      %1950 = vmatpush1.msra.mxu0 0.0
      %1951 = vmatprep.subr.mxu0 0.0
      %1952 = vmatpush1.msra.mxu0 0.0
      %1953 = vmatprep.subr.mxu0 0.0
      %1954 = vmatpush1.msra.mxu0 0.0
      %1955 = vmatprep.subr.mxu0 0.0
      %1956 = vmatpush1.msra.mxu0 0.0
      %1957 = vmatprep.subr.mxu0 0.0
      %1958 = vmatpush1.msra.mxu0 0.0
      %1959 = vmatprep.subr.mxu0 0.0
      %1960 = vmatpush1.msra.mxu0 0.0
      %1961 = vmatprep.mubr.f32.mxu0 0.0
      %1962 = vmatmul.mubr.f32.gmra.mrb[0].mxu0 %v1577
      %v1963 = vpop.f32.mrb[0].mxu0
      %v1964 = vadd.f32 %v1889, %v1963
      %v1965 = vpop.f32.mrb[0].mxu0
      %1966 = vmatprep.mubr.f32.mxu0 0.0
      %1967 = vmatmul.mubr.f32.gmra.mrb[0].mxu0 %v1580
      %v1968 = vpop.f32.mrb[0].mxu0
      %v1969 = vadd.f32 %v1890, %v1968
      %v1970 = vpop.f32.mrb[0].mxu0
      %1971 = vmatprep.mubr.f32.mxu0 0.0
      %1972 = vmatmul.mubr.f32.gmra.mrb[0].mxu0 %v1583
      %v1973 = vpop.f32.mrb[0].mxu0
      %v1974 = vadd.f32 %v1891, %v1973
      %v1975 = vpop.f32.mrb[0].mxu0
      %1976 = vmatprep.mubr.f32.mxu0 0.0
      %1977 = vmatmul.mubr.f32.gmra.mrb[0].mxu0 %v1586
      %v1978 = vpop.f32.mrb[0].mxu0
      %v1979 = vadd.f32 %v1892, %v1978
      %v1980 = vpop.f32.mrb[0].mxu0
      %1981 = vmatprep.mubr.f32.mxu0 0.0
      %1982 = vmatmul.mubr.f32.gmra.mrb[0].mxu0 %v1589
      %v1983 = vpop.f32.mrb[0].mxu0
      %v1984 = vadd.f32 %v1893, %v1983
      %v1985 = vpop.f32.mrb[0].mxu0
      %1986 = vmatprep.mubr.f32.mxu0 0.0
      %1987 = vmatmul.mubr.f32.gmra.mrb[0].mxu0 %v1592
      %v1988 = vpop.f32.mrb[0].mxu0
      %v1989 = vadd.f32 %v1894, %v1988
      %v1990 = vpop.f32.mrb[0].mxu0
      %1991 = vmatprep.mubr.f32.mxu0 0.0
      %1992 = vmatmul.mubr.f32.gmra.mrb[0].mxu0 %v1595
      %v1993 = vpop.f32.mrb[0].mxu0
      %v1994 = vadd.f32 %v1895, %v1993
      %v1995 = vpop.f32.mrb[0].mxu0
      %1996 = vmatprep.mubr.f32.mxu0 0.0
      %1997 = vmatmul.mubr.f32.gmra.mrb[0].mxu0 %v1598
      %v1998 = vpop.f32.mrb[0].mxu0
      %v1999 = vadd.f32 %v1896, %v1998
      %v2000 = vpop.f32.mrb[0].mxu0
      %2001 = vdwg.mxu0
      %v2002 = vrot.slane %v1778, 1
      %v2003 = vrot.slane %v1783, 1
      %v2004 = vrot.slane %v1788, 1
      %v2005 = vrot.slane %v1793, 1
      %v2006 = vrot.slane %v1798, 1
      %v2007 = vrot.slane %v1803, 1
      %v2008 = vrot.slane %v1808, 1
      %v2009 = vrot.slane %v1813, 1
      %v2010 = vsel %vm1244, %v2008, %v2009
      %v2011 = vsel %vm1244, %v2007, %v2008
      %v2012 = vsel %vm1244, %v2006, %v2007
      %v2013 = vsel %vm1244, %v2005, %v2006
      %v2014 = vsel %vm1244, %v2004, %v2005
      %v2015 = vsel %vm1244, %v2003, %v2004
      %v2016 = vsel %vm1244, %v2002, %v2003
      %v2017 = vsel %vm1244, %v2009, %v2002
      %2019 = vset.pattern.permute.xlu0 0
      %2020 = vperm.xlu0 %2019, %v1825
      %v2021 = vpop.permute.xlu0 %2020
      %2024 = vset.pattern.permute.xlu0 0
      %2025 = vperm.xlu0 %2024, %v1826
      %v2026 = vpop.permute.xlu0 %2025
      %2029 = vset.pattern.permute.xlu0 0
      %2030 = vperm.xlu0 %2029, %v1827
      %v2031 = vpop.permute.xlu0 %2030
      %2034 = vset.pattern.permute.xlu0 0
      %2035 = vperm.xlu0 %2034, %v1828
      %v2036 = vpop.permute.xlu0 %2035
      %2039 = vset.pattern.permute.xlu0 0
      %2040 = vperm.xlu0 %2039, %v1829
      %v2041 = vpop.permute.xlu0 %2040
      %2044 = vset.pattern.permute.xlu0 0
      %2045 = vperm.xlu0 %2044, %v1830
      %v2046 = vpop.permute.xlu0 %2045
      %2049 = vset.pattern.permute.xlu0 0
      %2050 = vperm.xlu0 %2049, %v1831
      %v2051 = vpop.permute.xlu0 %2050
      %2054 = vset.pattern.permute.xlu0 0
      %2055 = vperm.xlu0 %2054, %v1832
      %v2056 = vpop.permute.xlu0 %2055
      %v2058 = vmul.f32 %v2021, %v2016
      %v2059 = vmul.f32 %v2026, %v2015
      %v2060 = vmul.f32 %v2031, %v2014
      %v2061 = vmul.f32 %v2036, %v2013
      %v2062 = vmul.f32 %v2041, %v2012
      %v2063 = vmul.f32 %v2046, %v2011
      %v2064 = vmul.f32 %v2051, %v2010
      %v2065 = vmul.f32 %v2056, %v2017
      %v2066 = vadd.f32 %v1964, %v2058
      %v2067 = vadd.f32 %v1969, %v2059
      %v2068 = vadd.f32 %v1974, %v2060
      %v2069 = vadd.f32 %v1979, %v2061
      %v2070 = vadd.f32 %v1984, %v2062
      %v2071 = vadd.f32 %v1989, %v2063
      %v2072 = vadd.f32 %v1994, %v2064
      %v2073 = vadd.f32 %v1999, %v2065
      %v2074 = vld [vmem:[%s6] sm:$0x1]
      %v2076 = vlaneseq
      %v2077 = vshrl.u32 %v2076, 7
      %v2078 = vsub.s32 0, %v2077
      %v2079 = vrot.slane %v2074, %v2078
      %v2081 = vadd.f32 %v2066, %v2079
      %v2082 = vadd.f32 %v2067, %v2079
      %v2083 = vadd.f32 %v2068, %v2079
      %v2084 = vadd.f32 %v2069, %v2079
      %v2085 = vadd.f32 %v2070, %v2079
      %v2086 = vadd.f32 %v2071, %v2079
      %v2087 = vadd.f32 %v2072, %v2079
      %v2088 = vadd.f32 %v2073, %v2079
      %v2089 = vmax.f32 %v2081, 0.0
      %v2090 = vmax.f32 %v2082, 0.0
      %v2091 = vmax.f32 %v2083, 0.0
      %v2092 = vmax.f32 %v2084, 0.0
      %v2093 = vmax.f32 %v2085, 0.0
      %v2094 = vmax.f32 %v2086, 0.0
      %v2095 = vmax.f32 %v2087, 0.0
      %v2096 = vmax.f32 %v2088, 0.0
      %v2097 = vrot.slane %v2089, 1
      %v2098 = vrot.slane %v2090, 1
      %v2099 = vrot.slane %v2091, 1
      %v2100 = vrot.slane %v2092, 1
      %v2101 = vrot.slane %v2093, 1
      %v2102 = vrot.slane %v2094, 1
      %v2103 = vrot.slane %v2095, 1
      %v2104 = vrot.slane %v2096, 1
      %v2105 = vsel %vm1244, %v2103, %v2104
      %v2106 = vsel %vm1244, %v2102, %v2103
      %v2107 = vsel %vm1244, %v2101, %v2102
      %v2108 = vsel %vm1244, %v2100, %v2101
      %v2109 = vsel %vm1244, %v2099, %v2100
      %v2110 = vsel %vm1244, %v2098, %v2099
      %v2111 = vsel %vm1244, %v2097, %v2098
      %v2112 = vsel %vm1244, %v2104, %v2097
      %v2113 = vmax.f32 %v2089, %v2111
      %v2114 = vmax.f32 %v2090, %v2110
      %v2115 = vmax.f32 %v2091, %v2109
      %v2116 = vmax.f32 %v2092, %v2108
      %v2117 = vmax.f32 %v2093, %v2107
      %v2118 = vmax.f32 %v2094, %v2106
      %v2119 = vmax.f32 %v2095, %v2105
      %v2120 = vmax.f32 %v2096, %v2112
      %v2121 = vld [vmem:[%s8] sm:$0xff]
      %v2122 = vld [vmem:[%s8 + $0x8] sm:$0xff]
      %v2123 = vld [vmem:[%s8 + $0x10] sm:$0xff]
      %v2124 = vld [vmem:[%s8 + $0x18] sm:$0xff]
      %vm2125 = vcmask 523264
      %v2127 = vsel %vm2125, %v2121, 0
      %v2130 = vsel %vm2125, %v2122, 0
      %v2133 = vsel %vm2125, %v2123, 0
      %v2136 = vsel %vm2125, %v2124, 0
      %2138 = vmatprep.subr.mxu0 0.0
      %2139 = vmatpush1.msra.mxu0 %v2113
      %2140 = vmatprep.subr.mxu0 0.0
      %2141 = vmatpush1.msra.mxu0 %v2114
      %2142 = vmatprep.subr.mxu0 0.0
      %2143 = vmatpush1.msra.mxu0 %v2115
      %2144 = vmatprep.subr.mxu0 0.0
      %2145 = vmatpush1.msra.mxu0 %v2116
      %2146 = vmatprep.subr.mxu0 0.0
      %2147 = vmatpush1.msra.mxu0 %v2117
      %2148 = vmatprep.subr.mxu0 0.0
      %2149 = vmatpush1.msra.mxu0 %v2118
      %2150 = vmatprep.subr.mxu0 0.0
      %2151 = vmatpush1.msra.mxu0 %v2119
      %2152 = vmatprep.subr.mxu0 0.0
      %2153 = vmatpush1.msra.mxu0 %v2120
      %2154 = vmatprep.subr.mxu0 0.0
      %2155 = vmatpush1.msra.mxu0 0.0
      %2156 = vmatprep.subr.mxu0 0.0
      %2157 = vmatpush1.msra.mxu0 0.0
      %2158 = vmatprep.subr.mxu0 0.0
      %2159 = vmatpush1.msra.mxu0 0.0
      %2160 = vmatprep.subr.mxu0 0.0
      %2161 = vmatpush1.msra.mxu0 0.0
      %2162 = vmatprep.subr.mxu0 0.0
      %2163 = vmatpush1.msra.mxu0 0.0
      %2164 = vmatprep.subr.mxu0 0.0
      %2165 = vmatpush1.msra.mxu0 0.0
      %2166 = vmatprep.subr.mxu0 0.0
      %2167 = vmatpush1.msra.mxu0 0.0
      %2168 = vmatprep.subr.mxu0 0.0
      %2169 = vmatpush1.msra.mxu0 0.0
      %2170 = vmatprep.subr.mxu0 0.0
      %2171 = vmatpush1.msra.mxu0 0.0
      %2172 = vmatprep.subr.mxu0 0.0
      %2173 = vmatpush1.msra.mxu0 0.0
      %2174 = vmatprep.subr.mxu0 0.0
      %2175 = vmatpush1.msra.mxu0 0.0
      %2176 = vmatprep.subr.mxu0 0.0
      %2177 = vmatpush1.msra.mxu0 0.0
      %2178 = vmatprep.subr.mxu0 0.0
      %2179 = vmatpush1.msra.mxu0 0.0
      %2180 = vmatprep.subr.mxu0 0.0
      %2181 = vmatpush1.msra.mxu0 0.0
      %2182 = vmatprep.subr.mxu0 0.0
      %2183 = vmatpush1.msra.mxu0 0.0
      %2184 = vmatprep.subr.mxu0 0.0
      %2185 = vmatpush1.msra.mxu0 0.0
      %2186 = vmatprep.subr.mxu0 0.0
      %2187 = vmatpush1.msra.mxu0 0.0
      %2188 = vmatprep.subr.mxu0 0.0
      %2189 = vmatpush1.msra.mxu0 0.0
      %2190 = vmatprep.subr.mxu0 0.0
      %2191 = vmatpush1.msra.mxu0 0.0
      %2192 = vmatprep.subr.mxu0 0.0
      %2193 = vmatpush1.msra.mxu0 0.0
      %2194 = vmatprep.subr.mxu0 0.0
      %2195 = vmatpush1.msra.mxu0 0.0
      %2196 = vmatprep.subr.mxu0 0.0
      %2197 = vmatpush1.msra.mxu0 0.0
      %2198 = vmatprep.subr.mxu0 0.0
      %2199 = vmatpush1.msra.mxu0 0.0
      %2200 = vmatprep.subr.mxu0 0.0
      %2201 = vmatpush1.msra.mxu0 0.0
      %2202 = vmatprep.mubr.f32.mxu0 0.0
      %2203 = vmatmul.mubr.f32.gmra.mrb[0].mxu0 %v2127
      %v2204 = vpop.f32.mrb[0].mxu0
      %v2205 = vadd.f32 0.0, %v2204
      %v2206 = vpop.f32.mrb[0].mxu0
      %2207 = vmatprep.mubr.f32.mxu0 0.0
      %2208 = vmatmul.mubr.f32.gmra.mrb[0].mxu0 %v2130
      %v2209 = vpop.f32.mrb[0].mxu0
      %v2210 = vadd.f32 0.0, %v2209
      %v2211 = vpop.f32.mrb[0].mxu0
      %2212 = vmatprep.mubr.f32.mxu0 0.0
      %2213 = vmatmul.mubr.f32.gmra.mrb[0].mxu0 %v2133
      %v2214 = vpop.f32.mrb[0].mxu0
      %v2215 = vadd.f32 0.0, %v2214
      %v2216 = vpop.f32.mrb[0].mxu0
      %2217 = vmatprep.mubr.f32.mxu0 0.0
      %2218 = vmatmul.mubr.f32.gmra.mrb[0].mxu0 %v2136
      %v2219 = vpop.f32.mrb[0].mxu0
      %v2220 = vadd.f32 0.0, %v2219
      %v2221 = vpop.f32.mrb[0].mxu0
      %2222 = vdwg.mxu0
      %v2223 = vld [vmem:[%s9] sm:$0xff]
      %v2224 = vld [vmem:[%s9 + $0x8] sm:$0xff]
      %v2225 = vld [vmem:[%s9 + $0x10] sm:$0xff]
      %v2226 = vld [vmem:[%s9 + $0x18] sm:$0xff]
      %vm2227 = vcmask 261120
      %v2229 = vsel %vm2227, %v2205, 0
      %v2232 = vsel %vm2227, %v2210, 0
      %v2235 = vsel %vm2227, %v2215, 0
      %v2238 = vsel %vm2227, %v2220, 0
      %2240 = vmatprep.subr.mxu0 0.0
      %2241 = vmatpush1.msra.mxu0 %v2223
      %2242 = vmatprep.subr.mxu0 0.0
      %2243 = vmatpush1.msra.mxu0 %v2224
      %2244 = vmatprep.subr.mxu0 0.0
      %2245 = vmatpush1.msra.mxu0 %v2225
      %2246 = vmatprep.subr.mxu0 0.0
      %2247 = vmatpush1.msra.mxu0 %v2226
      %2248 = vmatprep.subr.mxu0 0.0
      %2249 = vmatpush1.msra.mxu0 0.0
      %2250 = vmatprep.subr.mxu0 0.0
      %2251 = vmatpush1.msra.mxu0 0.0
      %2252 = vmatprep.subr.mxu0 0.0
      %2253 = vmatpush1.msra.mxu0 0.0
      %2254 = vmatprep.subr.mxu0 0.0
      %2255 = vmatpush1.msra.mxu0 0.0
      %2256 = vmatprep.subr.mxu0 0.0
      %2257 = vmatpush1.msra.mxu0 0.0
      %2258 = vmatprep.subr.mxu0 0.0
      %2259 = vmatpush1.msra.mxu0 0.0
      %2260 = vmatprep.subr.mxu0 0.0
      %2261 = vmatpush1.msra.mxu0 0.0
      %2262 = vmatprep.subr.mxu0 0.0
      %2263 = vmatpush1.msra.mxu0 0.0
      %2264 = vmatprep.subr.mxu0 0.0
      %2265 = vmatpush1.msra.mxu0 0.0
      %2266 = vmatprep.subr.mxu0 0.0
      %2267 = vmatpush1.msra.mxu0 0.0
      %2268 = vmatprep.subr.mxu0 0.0
      %2269 = vmatpush1.msra.mxu0 0.0
      %2270 = vmatprep.subr.mxu0 0.0
      %2271 = vmatpush1.msra.mxu0 0.0
      %2272 = vmatprep.subr.mxu0 0.0
      %2273 = vmatpush1.msra.mxu0 0.0
      %2274 = vmatprep.subr.mxu0 0.0
      %2275 = vmatpush1.msra.mxu0 0.0
      %2276 = vmatprep.subr.mxu0 0.0
      %2277 = vmatpush1.msra.mxu0 0.0
      %2278 = vmatprep.subr.mxu0 0.0
      %2279 = vmatpush1.msra.mxu0 0.0
      %2280 = vmatprep.subr.mxu0 0.0
      %2281 = vmatpush1.msra.mxu0 0.0
      %2282 = vmatprep.subr.mxu0 0.0
      %2283 = vmatpush1.msra.mxu0 0.0
      %2284 = vmatprep.subr.mxu0 0.0
      %2285 = vmatpush1.msra.mxu0 0.0
      %2286 = vmatprep.subr.mxu0 0.0
      %2287 = vmatpush1.msra.mxu0 0.0
      %2288 = vmatprep.subr.mxu0 0.0
      %2289 = vmatpush1.msra.mxu0 0.0
      %2290 = vmatprep.subr.mxu0 0.0
      %2291 = vmatpush1.msra.mxu0 0.0
      %2292 = vmatprep.subr.mxu0 0.0
      %2293 = vmatpush1.msra.mxu0 0.0
      %2294 = vmatprep.subr.mxu0 0.0
      %2295 = vmatpush1.msra.mxu0 0.0
      %2296 = vmatprep.subr.mxu0 0.0
      %2297 = vmatpush1.msra.mxu0 0.0
      %2298 = vmatprep.subr.mxu0 0.0
      %2299 = vmatpush1.msra.mxu0 0.0
      %2300 = vmatprep.subr.mxu0 0.0
      %2301 = vmatpush1.msra.mxu0 0.0
      %2302 = vmatprep.subr.mxu0 0.0
      %2303 = vmatpush1.msra.mxu0 0.0
      %2304 = vmatprep.mubr.f32.mxu0 0.0
      %2305 = vmatmul.mubr.f32.gmra.mrb[0].mxu0 %v2229
      %v2306 = vpop.f32.mrb[0].mxu0
      %v2307 = vadd.f32 0.0, %v2306
      %v2308 = vpop.f32.mrb[0].mxu0
      %2309 = vmatprep.mubr.f32.mxu0 0.0
      %2310 = vmatmul.mubr.f32.gmra.mrb[0].mxu0 %v2232
      %v2311 = vpop.f32.mrb[0].mxu0
      %v2312 = vadd.f32 0.0, %v2311
      %v2313 = vpop.f32.mrb[0].mxu0
      %2314 = vmatprep.mubr.f32.mxu0 0.0
      %2315 = vmatmul.mubr.f32.gmra.mrb[0].mxu0 %v2235
      %v2316 = vpop.f32.mrb[0].mxu0
      %v2317 = vadd.f32 0.0, %v2316
      %v2318 = vpop.f32.mrb[0].mxu0
      %2319 = vmatprep.mubr.f32.mxu0 0.0
      %2320 = vmatmul.mubr.f32.gmra.mrb[0].mxu0 %v2238
      %v2321 = vpop.f32.mrb[0].mxu0
      %v2322 = vadd.f32 0.0, %v2321
      %v2323 = vpop.f32.mrb[0].mxu0
      %2324 = vdwg.mxu0
      %s2325 = scalar_lea.vmem %s9, 32
      %v2326 = vld [vmem:[%s2325] sm:$0xff]
      %v2327 = vld [vmem:[%s2325 + $0x8] sm:$0xff]
      %v2328 = vld [vmem:[%s2325 + $0x10] sm:$0xff]
      %v2329 = vld [vmem:[%s2325 + $0x18] sm:$0xff]
      %s2330 = scalar_lea.vmem %s9, 64
      %v2331 = vld [vmem:[%s2330] sm:$0xff]
      %v2332 = vld [vmem:[%s2330 + $0x8] sm:$0xff]
      %v2333 = vld [vmem:[%s2330 + $0x10] sm:$0xff]
      %v2334 = vld [vmem:[%s2330 + $0x18] sm:$0xff]
      %2335 = vmatprep.subr.mxu0 0.0
      %2336 = vmatpush1.msra.mxu0 %v2331
      %2337 = vmatprep.subr.mxu0 0.0
      %2338 = vmatpush1.msra.mxu0 %v2332
      %2339 = vmatprep.subr.mxu0 0.0
      %2340 = vmatpush1.msra.mxu0 %v2333
      %2341 = vmatprep.subr.mxu0 0.0
      %2342 = vmatpush1.msra.mxu0 %v2334
      %2343 = vmatprep.subr.mxu0 0.0
      %2344 = vmatpush1.msra.mxu0 0.0
      %2345 = vmatprep.subr.mxu0 0.0
      %2346 = vmatpush1.msra.mxu0 0.0
      %2347 = vmatprep.subr.mxu0 0.0
      %2348 = vmatpush1.msra.mxu0 0.0
      %2349 = vmatprep.subr.mxu0 0.0
      %2350 = vmatpush1.msra.mxu0 0.0
      %2351 = vmatprep.subr.mxu0 0.0
      %2352 = vmatpush1.msra.mxu0 0.0
      %2353 = vmatprep.subr.mxu0 0.0
      %2354 = vmatpush1.msra.mxu0 0.0
      %2355 = vmatprep.subr.mxu0 0.0
      %2356 = vmatpush1.msra.mxu0 0.0
      %2357 = vmatprep.subr.mxu0 0.0
      %2358 = vmatpush1.msra.mxu0 0.0
      %2359 = vmatprep.subr.mxu0 0.0
      %2360 = vmatpush1.msra.mxu0 0.0
      %2361 = vmatprep.subr.mxu0 0.0
      %2362 = vmatpush1.msra.mxu0 0.0
      %2363 = vmatprep.subr.mxu0 0.0
      %2364 = vmatpush1.msra.mxu0 0.0
      %2365 = vmatprep.subr.mxu0 0.0
      %2366 = vmatpush1.msra.mxu0 0.0
      %2367 = vmatprep.subr.mxu0 0.0
      %2368 = vmatpush1.msra.mxu0 0.0
      %2369 = vmatprep.subr.mxu0 0.0
      %2370 = vmatpush1.msra.mxu0 0.0
      %2371 = vmatprep.subr.mxu0 0.0
      %2372 = vmatpush1.msra.mxu0 0.0
      %2373 = vmatprep.subr.mxu0 0.0
      %2374 = vmatpush1.msra.mxu0 0.0
      %2375 = vmatprep.subr.mxu0 0.0
      %2376 = vmatpush1.msra.mxu0 0.0
      %2377 = vmatprep.subr.mxu0 0.0
      %2378 = vmatpush1.msra.mxu0 0.0
      %2379 = vmatprep.subr.mxu0 0.0
      %2380 = vmatpush1.msra.mxu0 0.0
      %2381 = vmatprep.subr.mxu0 0.0
      %2382 = vmatpush1.msra.mxu0 0.0
      %2383 = vmatprep.subr.mxu0 0.0
      %2384 = vmatpush1.msra.mxu0 0.0
      %2385 = vmatprep.subr.mxu0 0.0
      %2386 = vmatpush1.msra.mxu0 0.0
      %2387 = vmatprep.subr.mxu0 0.0
      %2388 = vmatpush1.msra.mxu0 0.0
      %2389 = vmatprep.subr.mxu0 0.0
      %2390 = vmatpush1.msra.mxu0 0.0
      %2391 = vmatprep.subr.mxu0 0.0
      %2392 = vmatpush1.msra.mxu0 0.0
      %2393 = vmatprep.subr.mxu0 0.0
      %2394 = vmatpush1.msra.mxu0 0.0
      %2395 = vmatprep.subr.mxu0 0.0
      %2396 = vmatpush1.msra.mxu0 0.0
      %2397 = vmatprep.subr.mxu0 0.0
      %2398 = vmatpush1.msra.mxu0 0.0
      %2399 = vmatprep.mubr.f32.mxu0 0.0
      %2400 = vmatmul.mubr.f32.gmra.mrb[0].mxu0 %v2229
      %v2401 = vpop.f32.mrb[0].mxu0
      %v2402 = vadd.f32 0.0, %v2401
      %v2403 = vpop.f32.mrb[0].mxu0
      %2404 = vmatprep.mubr.f32.mxu0 0.0
      %2405 = vmatmul.mubr.f32.gmra.mrb[0].mxu0 %v2232
      %v2406 = vpop.f32.mrb[0].mxu0
      %v2407 = vadd.f32 0.0, %v2406
      %v2408 = vpop.f32.mrb[0].mxu0
      %2409 = vmatprep.mubr.f32.mxu0 0.0
      %2410 = vmatmul.mubr.f32.gmra.mrb[0].mxu0 %v2235
      %v2411 = vpop.f32.mrb[0].mxu0
      %v2412 = vadd.f32 0.0, %v2411
      %v2413 = vpop.f32.mrb[0].mxu0
      %2414 = vmatprep.mubr.f32.mxu0 0.0
      %2415 = vmatmul.mubr.f32.gmra.mrb[0].mxu0 %v2238
      %v2416 = vpop.f32.mrb[0].mxu0
      %v2417 = vadd.f32 0.0, %v2416
      %v2418 = vpop.f32.mrb[0].mxu0
      %2419 = vdwg.mxu0
      %v2420 = vld [vmem:[%s11] sm:$0xff]
      %v2421 = vld [vmem:[%s11 + $0x8] sm:$0xff]
      %v2422 = vld [vmem:[%s11 + $0x10] sm:$0xff]
      %v2423 = vld [vmem:[%s11 + $0x18] sm:$0xff]
      %s2424 = scalar_lea.vmem %s11, 32
      %v2425 = vld [vmem:[%s2424] sm:$0xff]
      %v2426 = vld [vmem:[%s2424 + $0x8] sm:$0xff]
      %v2427 = vld [vmem:[%s2424 + $0x10] sm:$0xff]
      %v2428 = vld [vmem:[%s2424 + $0x18] sm:$0xff]
      %v2429 = vrot.slane %v2307, 7
      %v2430 = vrot.slane %v2312, 7
      %v2431 = vrot.slane %v2317, 7
      %v2432 = vrot.slane %v2322, 7
      %v2433 = vsel %vm967, %v2431, %v2432
      %v2434 = vsel %vm967, %v2430, %v2431
      %v2435 = vsel %vm967, %v2429, %v2430
      %v2436 = vsel %vm967, %v2432, %v2429
      %2438 = vset.pattern.permute.xlu0 0
      %2439 = vperm.xlu0 %2438, %v2420
      %v2440 = vpop.permute.xlu0 %2439
      %2443 = vset.pattern.permute.xlu0 0
      %2444 = vperm.xlu0 %2443, %v2421
      %v2445 = vpop.permute.xlu0 %2444
      %2448 = vset.pattern.permute.xlu0 0
      %2449 = vperm.xlu0 %2448, %v2422
      %v2450 = vpop.permute.xlu0 %2449
      %2453 = vset.pattern.permute.xlu0 0
      %2454 = vperm.xlu0 %2453, %v2423
      %v2455 = vpop.permute.xlu0 %2454
      %v2457 = vmul.f32 %v2440, %v2436
      %v2458 = vmul.f32 %v2445, %v2435
      %v2459 = vmul.f32 %v2450, %v2434
      %v2460 = vmul.f32 %v2455, %v2433
      %2461 = vmatprep.subr.mxu0 0.0
      %2462 = vmatpush1.msra.mxu0 %v2326
      %2463 = vmatprep.subr.mxu0 0.0
      %2464 = vmatpush1.msra.mxu0 %v2327
      %2465 = vmatprep.subr.mxu0 0.0
      %2466 = vmatpush1.msra.mxu0 %v2328
      %2467 = vmatprep.subr.mxu0 0.0
      %2468 = vmatpush1.msra.mxu0 %v2329
      %2469 = vmatprep.subr.mxu0 0.0
      %2470 = vmatpush1.msra.mxu0 0.0
      %2471 = vmatprep.subr.mxu0 0.0
      %2472 = vmatpush1.msra.mxu0 0.0
      %2473 = vmatprep.subr.mxu0 0.0
      %2474 = vmatpush1.msra.mxu0 0.0
      %2475 = vmatprep.subr.mxu0 0.0
      %2476 = vmatpush1.msra.mxu0 0.0
      %2477 = vmatprep.subr.mxu0 0.0
      %2478 = vmatpush1.msra.mxu0 0.0
      %2479 = vmatprep.subr.mxu0 0.0
      %2480 = vmatpush1.msra.mxu0 0.0
      %2481 = vmatprep.subr.mxu0 0.0
      %2482 = vmatpush1.msra.mxu0 0.0
      %2483 = vmatprep.subr.mxu0 0.0
      %2484 = vmatpush1.msra.mxu0 0.0
      %2485 = vmatprep.subr.mxu0 0.0
      %2486 = vmatpush1.msra.mxu0 0.0
      %2487 = vmatprep.subr.mxu0 0.0
      %2488 = vmatpush1.msra.mxu0 0.0
      %2489 = vmatprep.subr.mxu0 0.0
      %2490 = vmatpush1.msra.mxu0 0.0
      %2491 = vmatprep.subr.mxu0 0.0
      %2492 = vmatpush1.msra.mxu0 0.0
      %2493 = vmatprep.subr.mxu0 0.0
      %2494 = vmatpush1.msra.mxu0 0.0
      %2495 = vmatprep.subr.mxu0 0.0
      %2496 = vmatpush1.msra.mxu0 0.0
      %2497 = vmatprep.subr.mxu0 0.0
      %2498 = vmatpush1.msra.mxu0 0.0
      %2499 = vmatprep.subr.mxu0 0.0
      %2500 = vmatpush1.msra.mxu0 0.0
      %2501 = vmatprep.subr.mxu0 0.0
      %2502 = vmatpush1.msra.mxu0 0.0
      %2503 = vmatprep.subr.mxu0 0.0
      %2504 = vmatpush1.msra.mxu0 0.0
      %2505 = vmatprep.subr.mxu0 0.0
      %2506 = vmatpush1.msra.mxu0 0.0
      %2507 = vmatprep.subr.mxu0 0.0
      %2508 = vmatpush1.msra.mxu0 0.0
      %2509 = vmatprep.subr.mxu0 0.0
      %2510 = vmatpush1.msra.mxu0 0.0
      %2511 = vmatprep.subr.mxu0 0.0
      %2512 = vmatpush1.msra.mxu0 0.0
      %2513 = vmatprep.subr.mxu0 0.0
      %2514 = vmatpush1.msra.mxu0 0.0
      %2515 = vmatprep.subr.mxu0 0.0
      %2516 = vmatpush1.msra.mxu0 0.0
      %2517 = vmatprep.subr.mxu0 0.0
      %2518 = vmatpush1.msra.mxu0 0.0
      %2519 = vmatprep.subr.mxu0 0.0
      %2520 = vmatpush1.msra.mxu0 0.0
      %2521 = vmatprep.subr.mxu0 0.0
      %2522 = vmatpush1.msra.mxu0 0.0
      %2523 = vmatprep.subr.mxu0 0.0
      %2524 = vmatpush1.msra.mxu0 0.0
      %2525 = vmatprep.mubr.f32.mxu0 0.0
      %2526 = vmatmul.mubr.f32.gmra.mrb[0].mxu0 %v2229
      %v2527 = vpop.f32.mrb[0].mxu0
      %v2528 = vadd.f32 %v2457, %v2527
      %v2529 = vpop.f32.mrb[0].mxu0
      %2530 = vmatprep.mubr.f32.mxu0 0.0
      %2531 = vmatmul.mubr.f32.gmra.mrb[0].mxu0 %v2232
      %v2532 = vpop.f32.mrb[0].mxu0
      %v2533 = vadd.f32 %v2458, %v2532
      %v2534 = vpop.f32.mrb[0].mxu0
      %2535 = vmatprep.mubr.f32.mxu0 0.0
      %2536 = vmatmul.mubr.f32.gmra.mrb[0].mxu0 %v2235
      %v2537 = vpop.f32.mrb[0].mxu0
      %v2538 = vadd.f32 %v2459, %v2537
      %v2539 = vpop.f32.mrb[0].mxu0
      %2540 = vmatprep.mubr.f32.mxu0 0.0
      %2541 = vmatmul.mubr.f32.gmra.mrb[0].mxu0 %v2238
      %v2542 = vpop.f32.mrb[0].mxu0
      %v2543 = vadd.f32 %v2460, %v2542
      %v2544 = vpop.f32.mrb[0].mxu0
      %2545 = vdwg.mxu0
      %v2546 = vrot.slane %v2402, 1
      %v2547 = vrot.slane %v2407, 1
      %v2548 = vrot.slane %v2412, 1
      %v2549 = vrot.slane %v2417, 1
      %v2550 = vsel %vm1244, %v2548, %v2549
      %v2551 = vsel %vm1244, %v2547, %v2548
      %v2552 = vsel %vm1244, %v2546, %v2547
      %v2553 = vsel %vm1244, %v2549, %v2546
      %2555 = vset.pattern.permute.xlu0 0
      %2556 = vperm.xlu0 %2555, %v2425
      %v2557 = vpop.permute.xlu0 %2556
      %2560 = vset.pattern.permute.xlu0 0
      %2561 = vperm.xlu0 %2560, %v2426
      %v2562 = vpop.permute.xlu0 %2561
      %2565 = vset.pattern.permute.xlu0 0
      %2566 = vperm.xlu0 %2565, %v2427
      %v2567 = vpop.permute.xlu0 %2566
      %2570 = vset.pattern.permute.xlu0 0
      %2571 = vperm.xlu0 %2570, %v2428
      %v2572 = vpop.permute.xlu0 %2571
      %v2574 = vmul.f32 %v2557, %v2552
      %v2575 = vmul.f32 %v2562, %v2551
      %v2576 = vmul.f32 %v2567, %v2550
      %v2577 = vmul.f32 %v2572, %v2553
      %v2578 = vadd.f32 %v2528, %v2574
      %v2579 = vadd.f32 %v2533, %v2575
      %v2580 = vadd.f32 %v2538, %v2576
      %v2581 = vadd.f32 %v2543, %v2577
      %v2582 = vld [vmem:[%s10] sm:$0x1]
      %v2584 = vlaneseq
      %v2585 = vshrl.u32 %v2584, 7
      %v2586 = vsub.s32 0, %v2585
      %v2587 = vrot.slane %v2582, %v2586
      %v2589 = vadd.f32 %v2578, %v2587
      %v2590 = vadd.f32 %v2579, %v2587
      %v2591 = vadd.f32 %v2580, %v2587
      %v2592 = vadd.f32 %v2581, %v2587
      %v2593 = vmax.f32 %v2589, 0.0
      %v2594 = vmax.f32 %v2590, 0.0
      %v2595 = vmax.f32 %v2591, 0.0
      %v2596 = vmax.f32 %v2592, 0.0
      %v2597 = vrot.slane %v2593, 1
      %v2598 = vrot.slane %v2594, 1
      %v2599 = vrot.slane %v2595, 1
      %v2600 = vrot.slane %v2596, 1
      %v2601 = vsel %vm1244, %v2599, %v2600
      %v2602 = vsel %vm1244, %v2598, %v2599
      %v2603 = vsel %vm1244, %v2597, %v2598
      %v2604 = vsel %vm1244, %v2600, %v2597
      %v2605 = vmax.f32 %v2593, %v2603
      %v2606 = vmax.f32 %v2594, %v2602
      %v2607 = vmax.f32 %v2595, %v2601
      %v2608 = vmax.f32 %v2596, %v2604
      %v2609 = vld [vmem:[%s12] sm:$0xff]
      %v2610 = vld [vmem:[%s12 + $0x8] sm:$0xff]
      %v2612 = vsel %vm2227, %v2609, 0
      %v2615 = vsel %vm2227, %v2610, 0
      %2617 = vmatprep.subr.mxu0 0.0
      %2618 = vmatpush1.msra.mxu0 %v2605
      %2619 = vmatprep.subr.mxu0 0.0
      %2620 = vmatpush1.msra.mxu0 %v2606
      %2621 = vmatprep.subr.mxu0 0.0
      %2622 = vmatpush1.msra.mxu0 %v2607
      %2623 = vmatprep.subr.mxu0 0.0
      %2624 = vmatpush1.msra.mxu0 %v2608
      %2625 = vmatprep.subr.mxu0 0.0
      %2626 = vmatpush1.msra.mxu0 0.0
      %2627 = vmatprep.subr.mxu0 0.0
      %2628 = vmatpush1.msra.mxu0 0.0
      %2629 = vmatprep.subr.mxu0 0.0
      %2630 = vmatpush1.msra.mxu0 0.0
      %2631 = vmatprep.subr.mxu0 0.0
      %2632 = vmatpush1.msra.mxu0 0.0
      %2633 = vmatprep.subr.mxu0 0.0
      %2634 = vmatpush1.msra.mxu0 0.0
      %2635 = vmatprep.subr.mxu0 0.0
      %2636 = vmatpush1.msra.mxu0 0.0
      %2637 = vmatprep.subr.mxu0 0.0
      %2638 = vmatpush1.msra.mxu0 0.0
      %2639 = vmatprep.subr.mxu0 0.0
      %2640 = vmatpush1.msra.mxu0 0.0
      %2641 = vmatprep.subr.mxu0 0.0
      %2642 = vmatpush1.msra.mxu0 0.0
      %2643 = vmatprep.subr.mxu0 0.0
      %2644 = vmatpush1.msra.mxu0 0.0
      %2645 = vmatprep.subr.mxu0 0.0
      %2646 = vmatpush1.msra.mxu0 0.0
      %2647 = vmatprep.subr.mxu0 0.0
      %2648 = vmatpush1.msra.mxu0 0.0
      %2649 = vmatprep.subr.mxu0 0.0
      %2650 = vmatpush1.msra.mxu0 0.0
      %2651 = vmatprep.subr.mxu0 0.0
      %2652 = vmatpush1.msra.mxu0 0.0
      %2653 = vmatprep.subr.mxu0 0.0
      %2654 = vmatpush1.msra.mxu0 0.0
      %2655 = vmatprep.subr.mxu0 0.0
      %2656 = vmatpush1.msra.mxu0 0.0
      %2657 = vmatprep.subr.mxu0 0.0
      %2658 = vmatpush1.msra.mxu0 0.0
      %2659 = vmatprep.subr.mxu0 0.0
      %2660 = vmatpush1.msra.mxu0 0.0
      %2661 = vmatprep.subr.mxu0 0.0
      %2662 = vmatpush1.msra.mxu0 0.0
      %2663 = vmatprep.subr.mxu0 0.0
      %2664 = vmatpush1.msra.mxu0 0.0
      %2665 = vmatprep.subr.mxu0 0.0
      %2666 = vmatpush1.msra.mxu0 0.0
      %2667 = vmatprep.subr.mxu0 0.0
      %2668 = vmatpush1.msra.mxu0 0.0
      %2669 = vmatprep.subr.mxu0 0.0
      %2670 = vmatpush1.msra.mxu0 0.0
      %2671 = vmatprep.subr.mxu0 0.0
      %2672 = vmatpush1.msra.mxu0 0.0
      %2673 = vmatprep.subr.mxu0 0.0
      %2674 = vmatpush1.msra.mxu0 0.0
      %2675 = vmatprep.subr.mxu0 0.0
      %2676 = vmatpush1.msra.mxu0 0.0
      %2677 = vmatprep.subr.mxu0 0.0
      %2678 = vmatpush1.msra.mxu0 0.0
      %2679 = vmatprep.subr.mxu0 0.0
      %2680 = vmatpush1.msra.mxu0 0.0
      %2681 = vmatprep.mubr.f32.mxu0 0.0
      %2682 = vmatmul.mubr.f32.gmra.mrb[0].mxu0 %v2612
      %v2683 = vpop.f32.mrb[0].mxu0
      %v2684 = vadd.f32 0.0, %v2683
      %v2685 = vpop.f32.mrb[0].mxu0
      %2686 = vmatprep.mubr.f32.mxu0 0.0
      %2687 = vmatmul.mubr.f32.gmra.mrb[0].mxu0 %v2615
      %v2688 = vpop.f32.mrb[0].mxu0
      %v2689 = vadd.f32 0.0, %v2688
      %v2690 = vpop.f32.mrb[0].mxu0
      %2691 = vdwg.mxu0
      %v2692 = vld [vmem:[%s15] sm:$0xff]
      %v2693 = vld [vmem:[%s15 + $0x8] sm:$0xff]
      %v2694 = vld [vmem:[%s13] sm:$0xff]
      %v2695 = vld [vmem:[%s13 + $0x8] sm:$0xff]
      %v2696 = vld [vmem:[%s13 + $0x10] sm:$0xff]
      %v2697 = vld [vmem:[%s13 + $0x18] sm:$0xff]
      %v2698 = vld [vmem:[%s13 + $0x20] sm:$0xff]
      %v2699 = vld [vmem:[%s13 + $0x28] sm:$0xff]
      %v2700 = vld [vmem:[%s13 + $0x30] sm:$0xff]
      %v2701 = vld [vmem:[%s13 + $0x38] sm:$0xff]
      %v2703 = vsel %vm2125, %v2684, 0
      %v2706 = vsel %vm2125, %v2689, 0
      %2708 = vmatprep.subr.mxu0 0.0
      %2709 = vmatpush1.msra.mxu0 %v2694
      %2710 = vmatprep.subr.mxu0 0.0
      %2711 = vmatpush1.msra.mxu0 %v2695
      %2712 = vmatprep.subr.mxu0 0.0
      %2713 = vmatpush1.msra.mxu0 %v2696
      %2714 = vmatprep.subr.mxu0 0.0
      %2715 = vmatpush1.msra.mxu0 %v2697
      %2716 = vmatprep.subr.mxu0 0.0
      %2717 = vmatpush1.msra.mxu0 %v2698
      %2718 = vmatprep.subr.mxu0 0.0
      %2719 = vmatpush1.msra.mxu0 %v2699
      %2720 = vmatprep.subr.mxu0 0.0
      %2721 = vmatpush1.msra.mxu0 %v2700
      %2722 = vmatprep.subr.mxu0 0.0
      %2723 = vmatpush1.msra.mxu0 %v2701
      %2724 = vmatprep.subr.mxu0 0.0
      %2725 = vmatpush1.msra.mxu0 0.0
      %2726 = vmatprep.subr.mxu0 0.0
      %2727 = vmatpush1.msra.mxu0 0.0
      %2728 = vmatprep.subr.mxu0 0.0
      %2729 = vmatpush1.msra.mxu0 0.0
      %2730 = vmatprep.subr.mxu0 0.0
      %2731 = vmatpush1.msra.mxu0 0.0
      %2732 = vmatprep.subr.mxu0 0.0
      %2733 = vmatpush1.msra.mxu0 0.0
      %2734 = vmatprep.subr.mxu0 0.0
      %2735 = vmatpush1.msra.mxu0 0.0
      %2736 = vmatprep.subr.mxu0 0.0
      %2737 = vmatpush1.msra.mxu0 0.0
      %2738 = vmatprep.subr.mxu0 0.0
      %2739 = vmatpush1.msra.mxu0 0.0
      %2740 = vmatprep.subr.mxu0 0.0
      %2741 = vmatpush1.msra.mxu0 0.0
      %2742 = vmatprep.subr.mxu0 0.0
      %2743 = vmatpush1.msra.mxu0 0.0
      %2744 = vmatprep.subr.mxu0 0.0
      %2745 = vmatpush1.msra.mxu0 0.0
      %2746 = vmatprep.subr.mxu0 0.0
      %2747 = vmatpush1.msra.mxu0 0.0
      %2748 = vmatprep.subr.mxu0 0.0
      %2749 = vmatpush1.msra.mxu0 0.0
      %2750 = vmatprep.subr.mxu0 0.0
      %2751 = vmatpush1.msra.mxu0 0.0
      %2752 = vmatprep.subr.mxu0 0.0
      %2753 = vmatpush1.msra.mxu0 0.0
      %2754 = vmatprep.subr.mxu0 0.0
      %2755 = vmatpush1.msra.mxu0 0.0
      %2756 = vmatprep.subr.mxu0 0.0
      %2757 = vmatpush1.msra.mxu0 0.0
      %2758 = vmatprep.subr.mxu0 0.0
      %2759 = vmatpush1.msra.mxu0 0.0
      %2760 = vmatprep.subr.mxu0 0.0
      %2761 = vmatpush1.msra.mxu0 0.0
      %2762 = vmatprep.subr.mxu0 0.0
      %2763 = vmatpush1.msra.mxu0 0.0
      %2764 = vmatprep.subr.mxu0 0.0
      %2765 = vmatpush1.msra.mxu0 0.0
      %2766 = vmatprep.subr.mxu0 0.0
      %2767 = vmatpush1.msra.mxu0 0.0
      %2768 = vmatprep.subr.mxu0 0.0
      %2769 = vmatpush1.msra.mxu0 0.0
      %2770 = vmatprep.subr.mxu0 0.0
      %2771 = vmatpush1.msra.mxu0 0.0
      %2772 = vmatprep.mubr.f32.mxu0 0.0
      %2773 = vmatmul.mubr.f32.gmra.mrb[0].mxu0 %v2703
      %v2774 = vpop.f32.mrb[0].mxu0
      %v2775 = vadd.f32 0.0, %v2774
      %v2776 = vpop.f32.mrb[0].mxu0
      %2777 = vmatprep.mubr.f32.mxu0 0.0
      %2778 = vmatmul.mubr.f32.gmra.mrb[0].mxu0 %v2706
      %v2779 = vpop.f32.mrb[0].mxu0
      %v2780 = vadd.f32 0.0, %v2779
      %v2781 = vpop.f32.mrb[0].mxu0
      %2782 = vdwg.mxu0
      %2784 = vset.pattern.permute.xlu0 0
      %2785 = vperm.xlu0 %2784, %v2692
      %v2786 = vpop.permute.xlu0 %2785
      %2789 = vset.pattern.permute.xlu0 0
      %2790 = vperm.xlu0 %2789, %v2693
      %v2791 = vpop.permute.xlu0 %2790
      %v2793 = vmul.f32 %v2786, %v2775
      %v2794 = vmul.f32 %v2791, %v2780
      %s2795 = scalar_lea.vmem %s15, 16
      %v2796 = vld [vmem:[%s2795] sm:$0xff]
      %v2797 = vld [vmem:[%s2795 + $0x8] sm:$0xff]
      %s2798 = scalar_lea.vmem %s13, 64
      %v2799 = vld [vmem:[%s2798] sm:$0xff]
      %v2800 = vld [vmem:[%s2798 + $0x8] sm:$0xff]
      %v2801 = vld [vmem:[%s2798 + $0x10] sm:$0xff]
      %v2802 = vld [vmem:[%s2798 + $0x18] sm:$0xff]
      %v2803 = vld [vmem:[%s2798 + $0x20] sm:$0xff]
      %v2804 = vld [vmem:[%s2798 + $0x28] sm:$0xff]
      %v2805 = vld [vmem:[%s2798 + $0x30] sm:$0xff]
      %v2806 = vld [vmem:[%s2798 + $0x38] sm:$0xff]
      %2807 = vmatprep.subr.mxu0 0.0
      %2808 = vmatpush1.msra.mxu0 %v2799
      %2809 = vmatprep.subr.mxu0 0.0
      %2810 = vmatpush1.msra.mxu0 %v2800
      %2811 = vmatprep.subr.mxu0 0.0
      %2812 = vmatpush1.msra.mxu0 %v2801
      %2813 = vmatprep.subr.mxu0 0.0
      %2814 = vmatpush1.msra.mxu0 %v2802
      %2815 = vmatprep.subr.mxu0 0.0
      %2816 = vmatpush1.msra.mxu0 %v2803
      %2817 = vmatprep.subr.mxu0 0.0
      %2818 = vmatpush1.msra.mxu0 %v2804
      %2819 = vmatprep.subr.mxu0 0.0
      %2820 = vmatpush1.msra.mxu0 %v2805
      %2821 = vmatprep.subr.mxu0 0.0
      %2822 = vmatpush1.msra.mxu0 %v2806
      %2823 = vmatprep.subr.mxu0 0.0
      %2824 = vmatpush1.msra.mxu0 0.0
      %2825 = vmatprep.subr.mxu0 0.0
      %2826 = vmatpush1.msra.mxu0 0.0
      %2827 = vmatprep.subr.mxu0 0.0
      %2828 = vmatpush1.msra.mxu0 0.0
      %2829 = vmatprep.subr.mxu0 0.0
      %2830 = vmatpush1.msra.mxu0 0.0
      %2831 = vmatprep.subr.mxu0 0.0
      %2832 = vmatpush1.msra.mxu0 0.0
      %2833 = vmatprep.subr.mxu0 0.0
      %2834 = vmatpush1.msra.mxu0 0.0
      %2835 = vmatprep.subr.mxu0 0.0
      %2836 = vmatpush1.msra.mxu0 0.0
      %2837 = vmatprep.subr.mxu0 0.0
      %2838 = vmatpush1.msra.mxu0 0.0
      %2839 = vmatprep.subr.mxu0 0.0
      %2840 = vmatpush1.msra.mxu0 0.0
      %2841 = vmatprep.subr.mxu0 0.0
      %2842 = vmatpush1.msra.mxu0 0.0
      %2843 = vmatprep.subr.mxu0 0.0
      %2844 = vmatpush1.msra.mxu0 0.0
      %2845 = vmatprep.subr.mxu0 0.0
      %2846 = vmatpush1.msra.mxu0 0.0
      %2847 = vmatprep.subr.mxu0 0.0
      %2848 = vmatpush1.msra.mxu0 0.0
      %2849 = vmatprep.subr.mxu0 0.0
      %2850 = vmatpush1.msra.mxu0 0.0
      %2851 = vmatprep.subr.mxu0 0.0
      %2852 = vmatpush1.msra.mxu0 0.0
      %2853 = vmatprep.subr.mxu0 0.0
      %2854 = vmatpush1.msra.mxu0 0.0
      %2855 = vmatprep.subr.mxu0 0.0
      %2856 = vmatpush1.msra.mxu0 0.0
      %2857 = vmatprep.subr.mxu0 0.0
      %2858 = vmatpush1.msra.mxu0 0.0
      %2859 = vmatprep.subr.mxu0 0.0
      %2860 = vmatpush1.msra.mxu0 0.0
      %2861 = vmatprep.subr.mxu0 0.0
      %2862 = vmatpush1.msra.mxu0 0.0
      %2863 = vmatprep.subr.mxu0 0.0
      %2864 = vmatpush1.msra.mxu0 0.0
      %2865 = vmatprep.subr.mxu0 0.0
      %2866 = vmatpush1.msra.mxu0 0.0
      %2867 = vmatprep.subr.mxu0 0.0
      %2868 = vmatpush1.msra.mxu0 0.0
      %2869 = vmatprep.subr.mxu0 0.0
      %2870 = vmatpush1.msra.mxu0 0.0
      %2871 = vmatprep.mubr.f32.mxu0 0.0
      %2872 = vmatmul.mubr.f32.gmra.mrb[0].mxu0 %v2703
      %v2873 = vpop.f32.mrb[0].mxu0
      %v2874 = vadd.f32 0.0, %v2873
      %v2875 = vpop.f32.mrb[0].mxu0
      %2876 = vmatprep.mubr.f32.mxu0 0.0
      %2877 = vmatmul.mubr.f32.gmra.mrb[0].mxu0 %v2706
      %v2878 = vpop.f32.mrb[0].mxu0
      %v2879 = vadd.f32 0.0, %v2878
      %v2880 = vpop.f32.mrb[0].mxu0
      %2881 = vdwg.mxu0
      %2883 = vset.pattern.permute.xlu0 0
      %2884 = vperm.xlu0 %2883, %v2796
      %v2885 = vpop.permute.xlu0 %2884
      %2888 = vset.pattern.permute.xlu0 0
      %2889 = vperm.xlu0 %2888, %v2797
      %v2890 = vpop.permute.xlu0 %2889
      %v2892 = vmul.f32 %v2885, %v2874
      %v2893 = vmul.f32 %v2890, %v2879
      %v2894 = vadd.f32 %v2793, %v2892
      %v2895 = vadd.f32 %v2794, %v2893
      %v2896 = vld [vmem:[%s16] sm:$0xff]
      %v2897 = vld [vmem:[%s14] sm:$0x1]
      %v2899 = vlaneseq
      %v2900 = vshrl.u32 %v2899, 7
      %v2901 = vsub.s32 0, %v2900
      %v2902 = vrot.slane %v2897, %v2901
      %v2905 = vsel %vm1575, %v2896, 0
      %2907 = vmatprep.subr.mxu0 0.0
      %2908 = vmatpush1.msra.mxu0 %v2894
      %2909 = vmatprep.subr.mxu0 0.0
      %2910 = vmatpush1.msra.mxu0 %v2895
      %2911 = vmatprep.subr.mxu0 0.0
      %2912 = vmatpush1.msra.mxu0 0.0
      %2913 = vmatprep.subr.mxu0 0.0
      %2914 = vmatpush1.msra.mxu0 0.0
      %2915 = vmatprep.subr.mxu0 0.0
      %2916 = vmatpush1.msra.mxu0 0.0
      %2917 = vmatprep.subr.mxu0 0.0
      %2918 = vmatpush1.msra.mxu0 0.0
      %2919 = vmatprep.subr.mxu0 0.0
      %2920 = vmatpush1.msra.mxu0 0.0
      %2921 = vmatprep.subr.mxu0 0.0
      %2922 = vmatpush1.msra.mxu0 0.0
      %2923 = vmatprep.subr.mxu0 0.0
      %2924 = vmatpush1.msra.mxu0 0.0
      %2925 = vmatprep.subr.mxu0 0.0
      %2926 = vmatpush1.msra.mxu0 0.0
      %2927 = vmatprep.subr.mxu0 0.0
      %2928 = vmatpush1.msra.mxu0 0.0
      %2929 = vmatprep.subr.mxu0 0.0
      %2930 = vmatpush1.msra.mxu0 0.0
      %2931 = vmatprep.subr.mxu0 0.0
      %2932 = vmatpush1.msra.mxu0 0.0
      %2933 = vmatprep.subr.mxu0 0.0
      %2934 = vmatpush1.msra.mxu0 0.0
      %2935 = vmatprep.subr.mxu0 0.0
      %2936 = vmatpush1.msra.mxu0 0.0
      %2937 = vmatprep.subr.mxu0 0.0
      %2938 = vmatpush1.msra.mxu0 0.0
      %2939 = vmatprep.subr.mxu0 0.0
      %2940 = vmatpush1.msra.mxu0 0.0
      %2941 = vmatprep.subr.mxu0 0.0
      %2942 = vmatpush1.msra.mxu0 0.0
      %2943 = vmatprep.subr.mxu0 0.0
      %2944 = vmatpush1.msra.mxu0 0.0
      %2945 = vmatprep.subr.mxu0 0.0
      %2946 = vmatpush1.msra.mxu0 0.0
      %2947 = vmatprep.subr.mxu0 0.0
      %2948 = vmatpush1.msra.mxu0 0.0
      %2949 = vmatprep.subr.mxu0 0.0
      %2950 = vmatpush1.msra.mxu0 0.0
      %2951 = vmatprep.subr.mxu0 0.0
      %2952 = vmatpush1.msra.mxu0 0.0
      %2953 = vmatprep.subr.mxu0 0.0
      %2954 = vmatpush1.msra.mxu0 0.0
      %2955 = vmatprep.subr.mxu0 0.0
      %2956 = vmatpush1.msra.mxu0 0.0
      %2957 = vmatprep.subr.mxu0 0.0
      %2958 = vmatpush1.msra.mxu0 0.0
      %2959 = vmatprep.subr.mxu0 0.0
      %2960 = vmatpush1.msra.mxu0 0.0
      %2961 = vmatprep.subr.mxu0 0.0
      %2962 = vmatpush1.msra.mxu0 0.0
      %2963 = vmatprep.subr.mxu0 0.0
      %2964 = vmatpush1.msra.mxu0 0.0
      %2965 = vmatprep.subr.mxu0 0.0
      %2966 = vmatpush1.msra.mxu0 0.0
      %2967 = vmatprep.subr.mxu0 0.0
      %2968 = vmatpush1.msra.mxu0 0.0
      %2969 = vmatprep.subr.mxu0 0.0
      %2970 = vmatpush1.msra.mxu0 0.0
      %2971 = vmatprep.mubr.f32.mxu0 0.0
      %2972 = vmatmul.mubr.f32.gmra.mrb[0].mxu0 %v2905
      %v2973 = vpop.f32.mrb[0].mxu0
      %v2974 = vadd.f32 %v2902, %v2973
      %v2975 = vpop.f32.mrb[0].mxu0
      %2976 = vdwg.mxu0
      %v2977 = vmax.f32 %v2974, 0.0
      %2978 = vst.msk [vmem:[%s548] sm:$0xff] %vm2227, %v2977
      %p2979 = scmp.lt.s32.totalorder %s28, 1
      %s2980 = scalar_select %p2979, %s28, 1
      %s2981 = smul.addr %s2980, 8
      %s2982 = scalar_lea.vmem %s17, %s2981
      // Predicated region
      $region89: #{encoder_apply.1} parent=87 // pred_check
        %p2983 = pneg %p408
      $region90: #{encoder_apply.1} parent=87 // pred_check_branch
        %2985 = sbr.rel (%p2983) target = $region92
      $region91: #{encoder_apply.1} parent=87 // pred_region
        _
      $region92: #{encoder_apply.1} parent=87 // pred_fallthru
        _
    $region88: #{encoder_apply.1} parent=5 // pred_fallthru
      _
    %p2986 = scmp.le.s32.totalorder 2, %s23
    // Predicated region
    $region93: #{encoder_apply.1} parent=5 // pred_check
      %p2987 = pneg %p2986
    $region94: #{encoder_apply.1} parent=5 // pred_check_branch
      %2989 = sbr.rel (%p2987) target = $region96
    $region95: #{encoder_apply.1} parent=5 // pred_region
      %s2990 = ssub.s32 %s23, 2
      // Predicated region
      $region97: #{encoder_apply.1} parent=95 // pred_check
        %p2991 = pneg %p414
      $region98: #{encoder_apply.1} parent=95 // pred_check_branch
        %2993 = sbr.rel (%p2991) target = $region100
      $region99: #{encoder_apply.1} parent=95 // pred_region
        %p2994 = scmp.lt.s32.totalorder %s29, 1
        %s2995 = scalar_select %p2994, %s29, 1
        %s2996 = smul.addr %s2995, 8
        %s2997 = scalar_lea.vmem %s17, %s2996
      $region100: #{encoder_apply.1} parent=95 // pred_fallthru
        _
    $region96: #{encoder_apply.1} parent=5 // pred_fallthru
      _
  $region6: #{encoder_apply.1} parent=0 // loop_footer
    %s27 = sadd.s32 1, %s23
  $region7: #{encoder_apply.1} parent=0 // loop_footer_branch
    %22 = sbr.rel target = $region3
  $region8: #{encoder_apply.1} parent=0 // loop_exit
    _

</llo_original>
